<compile_context>
chip_gen: v6e
topology: v6e:2x2x1
jax: 0.10.0
libtpu: 0.0.40
codegen_flags: <defaults>
</compile_context>

<pallas_src>
import jax
import jax.numpy as jnp
from jax.experimental import pallas as pl
from jax.experimental.pallas import tpu as pltpu


def node_update_kernel(node_ref, bd_ref, mask_ref, w1_ref, b1_ref,
                       w2_ref, b2_ref, out_ref):
    m, _ = node_ref.shape            # m = TB*N node rows for this step
    tb, nh2 = out_ref.shape          # lane-dense output block (TB, N*H2)
    n = m // tb                      # nodes per task
    h2 = nh2 // n

    node = node_ref[...]                          # (TB*N, F)
    # Masked block-diagonal edges; cross-task entries are structurally zero.
    bd = bd_ref[...] * mask_ref[...]              # (2*TB*N, TB*N)

    # edge_feat = F.normalize(edge_feat * diag_mask, p=1, dim=-1):
    # the per-row 1/||.||_1 factor commutes with the aggregation matmul, so it
    # is applied to the (2*TB*N, F) result.  approx reciprocal runs on the
    # otherwise-idle EUP slot; one Newton step restores f32-level accuracy.
    row_l1 = jnp.maximum(jnp.sum(jnp.abs(bd), axis=-1, keepdims=True), 1e-12)
    inv = pl.reciprocal(row_l1, approx=True)
    inv = inv * (2.0 - row_l1 * inv)

    # Single block-diagonal aggregation matmul, both edge channels stacked on M.
    aggr = jnp.dot(bd, node, preferred_element_type=jnp.float32) * inv

    # conv0 (1x1, BN folded) + LeakyReLU as ONE K=3F matmul on the
    # lane-concatenated [node | aggr0 | aggr1] features (concat = XLU shifts).
    x = jnp.concatenate([node, aggr[:m], aggr[m:]], axis=-1)      # (TB*N, 3F)
    h = jnp.dot(x, w1_ref[...], preferred_element_type=jnp.float32) + b1_ref[...]
    h = jnp.where(h > 0, h, 0.01 * h)

    # conv1 (1x1, BN folded) + LeakyReLU.
    y = jnp.dot(h, w2_ref[...], preferred_element_type=jnp.float32) + b2_ref[...]
    y = jnp.where(y > 0, y, 0.01 * y)                             # (TB*N, H2)

    # Lane-dense store: (TB*N, H2) -> (TB, N*H2) so the output VMEM buffer and
    # HBM writeback are 256-lane dense instead of 32-lane masked.  The row
    # split is layout-free; the lane concat uses XLU slack.
    y3 = y.reshape(tb, n, h2)
    out_ref[...] = jnp.concatenate([y3[:, i, :] for i in range(n)], axis=-1)


def _block_diag_edges(edge_feat, tb):
    """(T,2,N,N) -> (G*2*TB*N, TB*N) block-diagonal scatter (layout plumbing:
    a broadcast-multiply by an identity, done once per call on the host)."""
    T, C, N, _ = edge_feat.shape
    G = T // tb
    e = edge_feat.reshape(G, tb, C, N, N)
    eye_tb = jnp.eye(tb, dtype=edge_feat.dtype)
    # bd[g, c, t, i, s, j] = e[g, t, c, i, j] * (t == s)
    bd = jnp.einsum('gtcij,ts->gctisj', e, eye_tb)
    return bd.reshape(G * C * tb * N, tb * N)


def _choose_task_block(num_tasks, num_data, device_kind, max_rows=512):
    """TB tasks per grid step.  Single-TC chips (v5e/v6e): one step with all
    tasks (the grid is a serial loop there).  Multi-TC chips (v7x/v4/v5p):
    prefer >=2 steps so the task axis can split across TensorCores.  max_rows
    caps the (2*TB*N, TB*N) block-diag edge tile (~2*(TB*N)^2*4 B in VMEM)."""
    kind = device_kind.lower()
    multi_tc = any(tag in kind for tag in ("v4", "v5p", "v7", "7x"))
    divisors = [d for d in range(1, num_tasks + 1) if num_tasks % d == 0]
    fits = [d for d in divisors if d * num_data <= max_rows] or [1]
    tb = max(fits)
    if multi_tc:
        two_step = [d for d in fits if num_tasks // d >= 2]
        if two_step:
            tb = max(two_step)
    return tb


def _dimension_semantics(num_steps, device_kind):
    if num_steps <= 1:
        return ("arbitrary",)
    kind = device_kind.lower()
    if "v7" in kind or "7x" in kind:
        # Per review: only CORE_PARALLEL changes codegen and actually splits
        # the grid across the two v7x TensorCores; plain "parallel" does not.
        return (pltpu.CORE_PARALLEL,)
    return ("parallel",)


def node_update_forward(node_feat, edge_feat, folded_params, *, task_block=None):
    """node_feat (T,N,F), edge_feat (T,2,N,N) -> (T,N,C_out)."""
    w1, b1, w2, b2 = folded_params
    T, N, F = node_feat.shape
    H1 = w1.shape[1]
    H2 = w2.shape[1]

    kind = jax.devices()[0].device_kind
    tb = _choose_task_block(T, N, kind) if task_block is None else task_block
    assert T % tb == 0, "task_block must divide num_tasks"
    G = T // tb
    M = tb * N                      # node rows per grid step

    # Flat (T*N, F) node view (contiguous, free) and lane-dense block-diagonal
    # edges (host-side scatter).
    node_flat = node_feat.reshape(T * N, F)
    bd = _block_diag_edges(edge_feat, tb)                         # (G*2M, M)
    # Resident diag mask for both channel blocks: zeroes edge[t, c, i, i].
    mask_bd = 1.0 - jnp.concatenate(
        [jnp.eye(M, dtype=jnp.float32)] * 2, axis=0)              # (2M, M)

    def const_spec(shape):
        nd = len(shape)
        return pl.BlockSpec(shape, lambda *_, _nd=nd: (0,) * _nd)

    def build(dim_sem):
        return pl.pallas_call(
            node_update_kernel,
            out_shape=jax.ShapeDtypeStruct((T, N * H2), jnp.float32),
            grid_spec=pltpu.PrefetchScalarGridSpec(
                num_scalar_prefetch=0,
                grid=(G,),
                in_specs=[
                    pl.BlockSpec((M, F), lambda g: (g, 0)),        # node (flat)
                    pl.BlockSpec((2 * M, M), lambda g: (g, 0)),    # block-diag edges
                    const_spec((2 * M, M)),                        # diag mask
                    const_spec((3 * F, H1)),                       # w1 (BN folded)
                    const_spec((1, H1)),                           # b1
                    const_spec((H1, H2)),                          # w2 (BN folded)
                    const_spec((1, H2)),                           # b2
                ],
                out_specs=pl.BlockSpec((tb, N * H2), lambda g: (g, 0)),
            ),
            compiler_params=pltpu.CompilerParams(
                dimension_semantics=dim_sem),
        )

    args = (node_flat, bd, mask_bd, w1, b1, w2, b2)
    primary = _dimension_semantics(G, kind)
    fallback = ("arbitrary",) if G == 1 else ("parallel",)
    try:
        out_flat = build(primary)(*args)
    except Exception:
        # CORE_PARALLEL is the v7x-preferred path; fall back to the portable
        # semantics if this toolchain/chip rejects it rather than not running.
        if primary == fallback:
            raise
        out_flat = build(fallback)(*args)

    return out_flat.reshape(T, N, H2)


def fold_params(params):
    """One-time host-side transform: fold the inference BatchNorm scale into
    the 1x1 conv weights (the kernel then does matmul + bias only)."""
    w1, s1, b1, w2, s2, b2 = params
    return (w1 * s1, b1, w2 * s2, b2)


def reference_forward(node_feat, edge_feat, params):
    """Pure-JAX reference mirroring the PyTorch forward (inference BN)."""
    w1, s1, b1, w2, s2, b2 = params
    T, N, F = node_feat.shape
    eye = jnp.eye(N, dtype=jnp.float32)
    diag_mask = 1.0 - eye[None, None, :, :]
    masked = edge_feat * diag_mask
    normed = masked / jnp.maximum(
        jnp.sum(jnp.abs(masked), axis=-1, keepdims=True), 1e-12)
    aggr0 = jnp.einsum('tij,tjf->tif', normed[:, 0], node_feat)
    aggr1 = jnp.einsum('tij,tjf->tif', normed[:, 1], node_feat)
    x = jnp.concatenate([node_feat, aggr0, aggr1], axis=-1)
    h = jnp.einsum('tnf,fh->tnh', x, w1) * s1 + b1
    h = jnp.where(h > 0, h, 0.01 * h)
    y = jnp.einsum('tnh,hc->tnc', h, w2) * s2 + b2
    y = jnp.where(y > 0, y, 0.01 * y)
    return y


def make_params(key, in_features, num_features, ratio=(2, 1)):
    """Deterministic synthetic parameters (conv weights + inference BatchNorm)."""
    dims = [num_features * r for r in ratio]          # e.g. [64, 32]
    c_in = [in_features * 3, dims[0]]
    keys = jax.random.split(key, 6)
    eps = 1e-5

    # conv weights stored (in, out) so the kernel does x @ W
    w1 = (jax.random.normal(keys[0], (c_in[0], dims[0]), jnp.float32)
          * (1.0 / jnp.sqrt(c_in[0])))
    w2 = (jax.random.normal(keys[1], (c_in[1], dims[1]), jnp.float32)
          * (1.0 / jnp.sqrt(c_in[1])))

    # BatchNorm (inference): gamma, beta, running_mean, running_var folded.
    g1 = 1.0 + 0.1 * jax.random.normal(keys[2], (dims[0],), jnp.float32)
    be1 = 0.1 * jax.random.normal(keys[3], (dims[0],), jnp.float32)
    m1 = jnp.zeros((dims[0],), jnp.float32)
    v1 = jnp.ones((dims[0],), jnp.float32)
    s1 = g1 / jnp.sqrt(v1 + eps)
    b1 = be1 - m1 * s1

    g2 = 1.0 + 0.1 * jax.random.normal(keys[4], (dims[1],), jnp.float32)
    be2 = 0.1 * jax.random.normal(keys[5], (dims[1],), jnp.float32)
    m2 = jnp.zeros((dims[1],), jnp.float32)
    v2 = jnp.ones((dims[1],), jnp.float32)
    s2 = g2 / jnp.sqrt(v2 + eps)
    b2 = be2 - m2 * s2

    return (w1, s1.reshape(1, -1), b1.reshape(1, -1),
            w2, s2.reshape(1, -1), b2.reshape(1, -1))


if __name__ == "__main__":
    key = jax.random.PRNGKey(0)
    k_node, k_edge, k_par = jax.random.split(key, 3)

    T, N = 32, 8                 # num_tasks, num_data
    in_features = 32
    num_features = 32            # output channels = num_features * ratio[-1] = 32

    node_feat = jax.random.normal(k_node, (T, N, in_features), jnp.float32)
    edge_feat = jnp.abs(jax.random.normal(k_edge, (T, 2, N, N), jnp.float32))

    params = make_params(k_par, in_features, num_features)
    folded = fold_params(params)   # host-side, one-time

    out = node_update_forward(node_feat, edge_feat, folded)
    out = jax.block_until_ready(out)

    ref = reference_forward(node_feat, edge_feat, params)
    assert out.shape == (T, N, num_features)
    assert jnp.allclose(out, ref, atol=1e-4, rtol=1e-4), "mismatch vs reference"

    # TODO(synk): train-mode Dropout2d / batch-statistics BatchNorm not modeled
    # (inference semantics only, matching the folded-BN reference).
    print("KERNEL_OK")
</pallas_src>

<mosaic_0001>
module attributes {stable_mosaic.version = 11 : i64} {
  func.func @node_update_kernel(%arg0: i32, %arg1: memref<256x32xf32, #tpu.memory_space<vmem>>, %arg2: memref<512x256xf32, #tpu.memory_space<vmem>>, %arg3: memref<512x256xf32, #tpu.memory_space<vmem>>, %arg4: memref<96x64xf32, #tpu.memory_space<vmem>>, %arg5: memref<1x64xf32, #tpu.memory_space<vmem>>, %arg6: memref<64x32xf32, #tpu.memory_space<vmem>>, %arg7: memref<1x32xf32, #tpu.memory_space<vmem>>, %arg8: memref<32x256xf32, #tpu.memory_space<vmem>>) attributes {dimension_semantics = [#tpu.dimension_semantics<arbitrary>], iteration_bounds = array<i64: 1>, scalar_prefetch = 0 : i64, scratch_operands = 0 : i64, tpu.core_type = #tpu.core_type<tc>, window_params = [{transform_indices = @transform_0, window_bounds = array<i64: 256, 32>}, {transform_indices = @transform_1, window_bounds = array<i64: 512, 256>}, {pipeline_mode = #tpu.pipeline_mode<synchronous>, transform_indices = @transform_2, window_bounds = array<i64: 512, 256>}, {pipeline_mode = #tpu.pipeline_mode<synchronous>, transform_indices = @transform_3, window_bounds = array<i64: 96, 64>}, {pipeline_mode = #tpu.pipeline_mode<synchronous>, transform_indices = @transform_4, window_bounds = array<i64: 1, 64>}, {pipeline_mode = #tpu.pipeline_mode<synchronous>, transform_indices = @transform_5, window_bounds = array<i64: 64, 32>}, {pipeline_mode = #tpu.pipeline_mode<synchronous>, transform_indices = @transform_6, window_bounds = array<i64: 1, 32>}, {transform_indices = @transform_7, window_bounds = array<i64: 32, 256>}]} {
    %c0 = arith.constant 0 : index
    %c0_0 = arith.constant 0 : index
    %0 = vector.load %arg1[%c0, %c0_0] : memref<256x32xf32, #tpu.memory_space<vmem>>, vector<256x32xf32>
    %c0_1 = arith.constant 0 : index
    %c0_2 = arith.constant 0 : index
    %1 = vector.load %arg2[%c0_1, %c0_2] : memref<512x256xf32, #tpu.memory_space<vmem>>, vector<512x256xf32>
    %c0_3 = arith.constant 0 : index
    %c0_4 = arith.constant 0 : index
    %2 = vector.load %arg3[%c0_3, %c0_4] : memref<512x256xf32, #tpu.memory_space<vmem>>, vector<512x256xf32>
    %3 = arith.mulf %1, %2 : vector<512x256xf32>
    %4 = math.absf %3 : vector<512x256xf32>
    %cst = arith.constant dense<0.000000e+00> : vector<512xf32>
    %5 = vector.multi_reduction <add>, %4, %cst [1] : vector<512x256xf32> to vector<512xf32>
    %6 = vector.shape_cast %5 : vector<512xf32> to vector<512x1xf32>
    %cst_5 = arith.constant 9.99999996E-13 : f32
    %7 = vector.broadcast %cst_5 : f32 to vector<512x1xf32>
    %8 = arith.maximumf %6, %7 : vector<512x1xf32>
    %9 = tpu.reciprocal %8 {approx = true} : vector<512x1xf32> -> vector<512x1xf32>
    %10 = arith.mulf %8, %9 : vector<512x1xf32>
    %cst_6 = arith.constant 2.000000e+00 : f32
    %11 = vector.broadcast %cst_6 : f32 to vector<512x1xf32>
    %12 = arith.subf %11, %10 : vector<512x1xf32>
    %13 = arith.mulf %9, %12 : vector<512x1xf32>
    %cst_7 = arith.constant dense<0.000000e+00> : vector<512x32xf32>
    %14 = tpu.matmul %3, %0, %cst_7 {dimension_numbers = #tpu.dot_dimension_numbers<[1], [0], [0], [1], [0, 0, 1, 1], [], []>} : vector<512x256xf32>, vector<256x32xf32>, vector<512x32xf32> -> vector<512x32xf32>
    %15 = vector.broadcast %13 : vector<512x1xf32> to vector<512x32xf32>
    %16 = arith.mulf %14, %15 : vector<512x32xf32>
    %17 = vector.extract_strided_slice %16 {offsets = [0, 0], sizes = [256, 32], strides = [1, 1]} : vector<512x32xf32> to vector<256x32xf32>
    %18 = vector.extract_strided_slice %16 {offsets = [256, 0], sizes = [256, 32], strides = [1, 1]} : vector<512x32xf32> to vector<256x32xf32>
    %19 = tpu.concatenate %0, %17, %18 in 1 : vector<256x32xf32>, vector<256x32xf32>, vector<256x32xf32> -> vector<256x96xf32>
    %c0_8 = arith.constant 0 : index
    %c0_9 = arith.constant 0 : index
    %20 = vector.load %arg4[%c0_8, %c0_9] : memref<96x64xf32, #tpu.memory_space<vmem>>, vector<96x64xf32>
    %cst_10 = arith.constant dense<0.000000e+00> : vector<256x64xf32>
    %21 = tpu.matmul %19, %20, %cst_10 {dimension_numbers = #tpu.dot_dimension_numbers<[1], [0], [0], [1], [0, 0, 1, 1], [], []>} : vector<256x96xf32>, vector<96x64xf32>, vector<256x64xf32> -> vector<256x64xf32>
    %c0_11 = arith.constant 0 : index
    %c0_12 = arith.constant 0 : index
    %22 = vector.load %arg5[%c0_11, %c0_12] : memref<1x64xf32, #tpu.memory_space<vmem>>, vector<1x64xf32>
    %23 = vector.broadcast %22 : vector<1x64xf32> to vector<256x64xf32>
    %24 = arith.addf %21, %23 : vector<256x64xf32>
    %cst_13 = arith.constant 0.000000e+00 : f32
    %25 = vector.broadcast %cst_13 : f32 to vector<256x64xf32>
    %26 = arith.cmpf ogt, %24, %25 : vector<256x64xf32>
    %cst_14 = arith.constant 0.00999999977 : f32
    %27 = vector.broadcast %cst_14 : f32 to vector<256x64xf32>
    %28 = arith.mulf %27, %24 : vector<256x64xf32>
    %29 = arith.select %26, %24, %28 : vector<256x64xi1>, vector<256x64xf32>
    %c0_15 = arith.constant 0 : index
    %c0_16 = arith.constant 0 : index
    %30 = vector.load %arg6[%c0_15, %c0_16] : memref<64x32xf32, #tpu.memory_space<vmem>>, vector<64x32xf32>
    %cst_17 = arith.constant dense<0.000000e+00> : vector<256x32xf32>
    %31 = tpu.matmul %29, %30, %cst_17 {dimension_numbers = #tpu.dot_dimension_numbers<[1], [0], [0], [1], [0, 0, 1, 1], [], []>} : vector<256x64xf32>, vector<64x32xf32>, vector<256x32xf32> -> vector<256x32xf32>
    %c0_18 = arith.constant 0 : index
    %c0_19 = arith.constant 0 : index
    %32 = vector.load %arg7[%c0_18, %c0_19] : memref<1x32xf32, #tpu.memory_space<vmem>>, vector<1x32xf32>
    %33 = vector.broadcast %32 : vector<1x32xf32> to vector<256x32xf32>
    %34 = arith.addf %31, %33 : vector<256x32xf32>
    %cst_20 = arith.constant 0.000000e+00 : f32
    %35 = vector.broadcast %cst_20 : f32 to vector<256x32xf32>
    %36 = arith.cmpf ogt, %34, %35 : vector<256x32xf32>
    %cst_21 = arith.constant 0.00999999977 : f32
    %37 = vector.broadcast %cst_21 : f32 to vector<256x32xf32>
    %38 = arith.mulf %37, %34 : vector<256x32xf32>
    %39 = arith.select %36, %34, %38 : vector<256x32xi1>, vector<256x32xf32>
    %40 = vector.shape_cast %39 : vector<256x32xf32> to vector<32x8x32xf32>
    %41 = vector.extract_strided_slice %40 {offsets = [0, 0, 0], sizes = [32, 1, 32], strides = [1, 1, 1]} : vector<32x8x32xf32> to vector<32x1x32xf32>
    %42 = vector.shape_cast %41 : vector<32x1x32xf32> to vector<32x32xf32>
    %43 = vector.extract_strided_slice %40 {offsets = [0, 1, 0], sizes = [32, 1, 32], strides = [1, 1, 1]} : vector<32x8x32xf32> to vector<32x1x32xf32>
    %44 = vector.shape_cast %43 : vector<32x1x32xf32> to vector<32x32xf32>
    %45 = vector.extract_strided_slice %40 {offsets = [0, 2, 0], sizes = [32, 1, 32], strides = [1, 1, 1]} : vector<32x8x32xf32> to vector<32x1x32xf32>
    %46 = vector.shape_cast %45 : vector<32x1x32xf32> to vector<32x32xf32>
    %47 = vector.extract_strided_slice %40 {offsets = [0, 3, 0], sizes = [32, 1, 32], strides = [1, 1, 1]} : vector<32x8x32xf32> to vector<32x1x32xf32>
    %48 = vector.shape_cast %47 : vector<32x1x32xf32> to vector<32x32xf32>
    %49 = vector.extract_strided_slice %40 {offsets = [0, 4, 0], sizes = [32, 1, 32], strides = [1, 1, 1]} : vector<32x8x32xf32> to vector<32x1x32xf32>
    %50 = vector.shape_cast %49 : vector<32x1x32xf32> to vector<32x32xf32>
    %51 = vector.extract_strided_slice %40 {offsets = [0, 5, 0], sizes = [32, 1, 32], strides = [1, 1, 1]} : vector<32x8x32xf32> to vector<32x1x32xf32>
    %52 = vector.shape_cast %51 : vector<32x1x32xf32> to vector<32x32xf32>
    %53 = vector.extract_strided_slice %40 {offsets = [0, 6, 0], sizes = [32, 1, 32], strides = [1, 1, 1]} : vector<32x8x32xf32> to vector<32x1x32xf32>
    %54 = vector.shape_cast %53 : vector<32x1x32xf32> to vector<32x32xf32>
    %55 = vector.extract_strided_slice %40 {offsets = [0, 7, 0], sizes = [32, 1, 32], strides = [1, 1, 1]} : vector<32x8x32xf32> to vector<32x1x32xf32>
    %56 = vector.shape_cast %55 : vector<32x1x32xf32> to vector<32x32xf32>
    %57 = tpu.concatenate %42, %44, %46, %48, %50, %52, %54, %56 in 1 : vector<32x32xf32>, vector<32x32xf32>, vector<32x32xf32>, vector<32x32xf32>, vector<32x32xf32>, vector<32x32xf32>, vector<32x32xf32>, vector<32x32xf32> -> vector<32x256xf32>
    %c0_22 = arith.constant 0 : index
    %c0_23 = arith.constant 0 : index
    %58 = vector.load %arg8[%c0_22, %c0_23] : memref<32x256xf32, #tpu.memory_space<vmem>>, vector<32x256xf32>
    tpu.vector_store %arg8[%c0_22, %c0_23], %57 {strides = array<i32>} : memref<32x256xf32, #tpu.memory_space<vmem>>, vector<32x256xf32>,
    return
  }
  func.func @transform_0(%arg0: i32) -> (i32, i32) {
    %c0_i32 = arith.constant 0 : i32
    %c0_i32_0 = arith.constant 0 : i32
    return %arg0, %c0_i32 : i32, i32
  }
  func.func @transform_1(%arg0: i32) -> (i32, i32) {
    %c0_i32 = arith.constant 0 : i32
    %c0_i32_0 = arith.constant 0 : i32
    return %arg0, %c0_i32 : i32, i32
  }
  func.func @transform_2(%arg0: i32) -> (i32, i32) {
    %c0_i32 = arith.constant 0 : i32
    %c0_i32_0 = arith.constant 0 : i32
    %c0_i32_1 = arith.constant 0 : i32
    return %c0_i32, %c0_i32_0 : i32, i32
  }
  func.func @transform_3(%arg0: i32) -> (i32, i32) {
    %c0_i32 = arith.constant 0 : i32
    %c0_i32_0 = arith.constant 0 : i32
    %c0_i32_1 = arith.constant 0 : i32
    return %c0_i32, %c0_i32_0 : i32, i32
  }
  func.func @transform_4(%arg0: i32) -> (i32, i32) {
    %c0_i32 = arith.constant 0 : i32
    %c0_i32_0 = arith.constant 0 : i32
    %c0_i32_1 = arith.constant 0 : i32
    return %c0_i32, %c0_i32_0 : i32, i32
  }
  func.func @transform_5(%arg0: i32) -> (i32, i32) {
    %c0_i32 = arith.constant 0 : i32
    %c0_i32_0 = arith.constant 0 : i32
    %c0_i32_1 = arith.constant 0 : i32
    return %c0_i32, %c0_i32_0 : i32, i32
  }
  func.func @transform_6(%arg0: i32) -> (i32, i32) {
    %c0_i32 = arith.constant 0 : i32
    %c0_i32_0 = arith.constant 0 : i32
    %c0_i32_1 = arith.constant 0 : i32
    return %c0_i32, %c0_i32_0 : i32, i32
  }
  func.func @transform_7(%arg0: i32) -> (i32, i32) {
    %c0_i32 = arith.constant 0 : i32
    %c0_i32_0 = arith.constant 0 : i32
    return %arg0, %c0_i32 : i32, i32
  }
}

</mosaic_0001>

<llo_original>
// kernel: tpu_custom_call.1
$region0: #{tpu_custom_call.1}
  #allocation0 [shape = 'u32[]', space=smem, size = 0x4, offset = 0x4, fixed_abs, tag = 'smem constant byte address 0x4 - core index']
  #allocation1 [shape = 'u32[144,128]{1,0:T(1,128)}', space=vmem, size = 0x12000, scoped, tag = 'internal scratch']
  %s0 = inlined_call_operand.vmem [shape: f32[256,32], index: 0, kind: input, shape index: {}]
  %s1 = inlined_call_operand.hbm [shape: f32[512,256], index: 1, kind: input, shape index: {}]
  %s2 = inlined_call_operand.hbm [shape: f32[512,256], index: 2, kind: input, shape index: {}]
  %s3 = inlined_call_operand.vmem [shape: f32[96,64], index: 3, kind: input, shape index: {}]
  %s4 = inlined_call_operand.vmem [shape: f32[1,64], index: 4, kind: input, shape index: {}]
  %s5 = inlined_call_operand.vmem [shape: f32[64,32], index: 5, kind: input, shape index: {}]
  %s6 = inlined_call_operand.vmem [shape: f32[1,32], index: 6, kind: input, shape index: {}]
  %s7 = inlined_call_operand.hbm [shape: f32[32,256], index: 7, kind: output, shape index: {}]
  %s8 = sld [smem:[#allocation0]]
  $region46: #{tpu_custom_call.1} parent=0
    _
  %s10 = ssub.s32 1, %s8
  %s11 = scalar_select 0, %s10, %s8
  $region1: #{tpu_custom_call.1} parent=0
    #allocation2 [shape = 'u8[524288]{0}', space=vmem, size = 0x80000, scoped, tag = 'input window, operand 1, single buffered']
    #allocation3 [shape = 's32[1]{0}', space=sflag, size = 0x4, scoped, tag = 'scoped memory for tpu_custom_call.1']
    #allocation4 [shape = 's32[1]{0}', space=sflag, size = 0x4, scoped, tag = 'scoped memory for tpu_custom_call.1']
    #allocation5 [shape = 'u8[524288]{0}', space=vmem, size = 0x80000, scoped, tag = 'input window, operand 2, single buffered']
    #allocation6 [shape = 's32[1]{0}', space=sflag, size = 0x4, scoped, tag = 'scoped memory for tpu_custom_call.1']
    #allocation7 [shape = 'u8[32768]{0}', space=vmem, size = 0x8000, scoped, tag = 'output window, operand 0, single buffered']
    %12 = vsyncpa [#allocation3], 0
    %13 = vsyncpa [#allocation6], 0
    %14 = vsyncpa [#allocation4], 0
    // Predicated region
    $region2: #{tpu_custom_call.1} parent=1 // pred_check
      _
    $region3: #{tpu_custom_call.1} parent=1 // pred_check_branch
      %16 = sbr.rel (0) target = $region5
    $region4: #{tpu_custom_call.1} parent=1 // pred_region
      _
    $region5: #{tpu_custom_call.1} parent=1 // pred_fallthru
      _
    // Predicated region
    $region6: #{tpu_custom_call.1} parent=1 // pred_check
      _
    $region7: #{tpu_custom_call.1} parent=1 // pred_check_branch
      %18 = sbr.rel (0) target = $region9
    $region8: #{tpu_custom_call.1} parent=1 // pred_region
      %s20 = ssub.s32 16384, 16384
      %21 = vsyncadd [#allocation3], %s20
      %s22 = sshll.u32 [#allocation2], 4
      %s23 = int_to_ptr.vmem [resolvable:$true] %s22
      %28 = dma.hbm_to_vmem [thread:$0]  %s1, 16384, %s23, [#allocation3], 256, 256, 16
    $region9: #{tpu_custom_call.1} parent=1 // pred_fallthru
      _
    // Predicated region
    $region10: #{tpu_custom_call.1} parent=1 // pred_check
      _
    $region11: #{tpu_custom_call.1} parent=1 // pred_check_branch
      %30 = sbr.rel (0) target = $region13
    $region12: #{tpu_custom_call.1} parent=1 // pred_region
      %s32 = ssub.s32 16384, 16384
      %33 = vsyncadd [#allocation6], %s32
      %s34 = sshll.u32 [#allocation5], 4
      %s35 = int_to_ptr.vmem [resolvable:$true] %s34
      %40 = dma.hbm_to_vmem [thread:$0]  %s2, 16384, %s35, [#allocation6], 256, 256, 16
    $region13: #{tpu_custom_call.1} parent=1 // pred_fallthru
      _
    // Predicated region
    $region14: #{tpu_custom_call.1} parent=1 // pred_check
      _
    $region15: #{tpu_custom_call.1} parent=1 // pred_check_branch
      %42 = sbr.rel (0) target = $region17
    $region16: #{tpu_custom_call.1} parent=1 // pred_region
      _
    $region17: #{tpu_custom_call.1} parent=1 // pred_fallthru
      _
    // Predicated region
    $region18: #{tpu_custom_call.1} parent=1 // pred_check
      _
    $region19: #{tpu_custom_call.1} parent=1 // pred_check_branch
      %44 = sbr.rel (0) target = $region21
    $region20: #{tpu_custom_call.1} parent=1 // pred_region
      _
    $region21: #{tpu_custom_call.1} parent=1 // pred_fallthru
      _
    // Predicated region
    $region22: #{tpu_custom_call.1} parent=1 // pred_check
      _
    $region23: #{tpu_custom_call.1} parent=1 // pred_check_branch
      %46 = sbr.rel (0) target = $region25
    $region24: #{tpu_custom_call.1} parent=1 // pred_region
      _
    $region25: #{tpu_custom_call.1} parent=1 // pred_fallthru
      _
    // Predicated region
    $region26: #{tpu_custom_call.1} parent=1 // pred_check
      _
    $region27: #{tpu_custom_call.1} parent=1 // pred_check_branch
      %48 = sbr.rel (0) target = $region29
    $region28: #{tpu_custom_call.1} parent=1 // pred_region
      _
    $region29: #{tpu_custom_call.1} parent=1 // pred_fallthru
      _
    // Predicated region
    $region30: #{tpu_custom_call.1} parent=1 // pred_check
      _
    $region31: #{tpu_custom_call.1} parent=1 // pred_check_branch
      %50 = sbr.rel (0) target = $region33
    $region32: #{tpu_custom_call.1} parent=1 // pred_region
      %51 = dma.done [#allocation3], 16384
    $region33: #{tpu_custom_call.1} parent=1 // pred_fallthru
      _
    // Predicated region
    $region34: #{tpu_custom_call.1} parent=1 // pred_check
      _
    $region35: #{tpu_custom_call.1} parent=1 // pred_check_branch
      %53 = sbr.rel (0) target = $region37
    $region36: #{tpu_custom_call.1} parent=1 // pred_region
      %54 = dma.done [#allocation6], 16384
    $region37: #{tpu_custom_call.1} parent=1 // pred_fallthru
      _
    %v55 = vld [vmem:[%s0] sm:$0xff]
    %v56 = vld [vmem:[%s0 + $0x8] sm:$0xff]
    %v57 = vld [vmem:[%s0 + $0x10] sm:$0xff]
    %v58 = vld [vmem:[%s0 + $0x18] sm:$0xff]
    %v59 = vld [vmem:[%s0 + $0x20] sm:$0xff]
    %v60 = vld [vmem:[%s0 + $0x28] sm:$0xff]
    %v61 = vld [vmem:[%s0 + $0x30] sm:$0xff]
    %v62 = vld [vmem:[%s0 + $0x38] sm:$0xff]
    %v63 = vld [vmem:[%s0 + $0x40] sm:$0xff]
    %v64 = vld [vmem:[%s0 + $0x48] sm:$0xff]
    %v65 = vld [vmem:[%s0 + $0x50] sm:$0xff]
    %v66 = vld [vmem:[%s0 + $0x58] sm:$0xff]
    %v67 = vld [vmem:[%s0 + $0x60] sm:$0xff]
    %v68 = vld [vmem:[%s0 + $0x68] sm:$0xff]
    %v69 = vld [vmem:[%s0 + $0x70] sm:$0xff]
    %v70 = vld [vmem:[%s0 + $0x78] sm:$0xff]
    %v71 = vld [vmem:[%s0 + $0x80] sm:$0xff]
    %v72 = vld [vmem:[%s0 + $0x88] sm:$0xff]
    %v73 = vld [vmem:[%s0 + $0x90] sm:$0xff]
    %v74 = vld [vmem:[%s0 + $0x98] sm:$0xff]
    %v75 = vld [vmem:[%s0 + $0xa0] sm:$0xff]
    %v76 = vld [vmem:[%s0 + $0xa8] sm:$0xff]
    %v77 = vld [vmem:[%s0 + $0xb0] sm:$0xff]
    %v78 = vld [vmem:[%s0 + $0xb8] sm:$0xff]
    %v79 = vld [vmem:[%s0 + $0xc0] sm:$0xff]
    %v80 = vld [vmem:[%s0 + $0xc8] sm:$0xff]
    %v81 = vld [vmem:[%s0 + $0xd0] sm:$0xff]
    %v82 = vld [vmem:[%s0 + $0xd8] sm:$0xff]
    %v83 = vld [vmem:[%s0 + $0xe0] sm:$0xff]
    %v84 = vld [vmem:[%s0 + $0xe8] sm:$0xff]
    %v85 = vld [vmem:[%s0 + $0xf0] sm:$0xff]
    %v86 = vld [vmem:[%s0 + $0xf8] sm:$0xff]
    %v87 = vld [vmem:[#allocation2] sm:$0xff]
    %v88 = vld [vmem:[#allocation2 + $0x8] sm:$0xff]
    %v89 = vld [vmem:[#allocation2 + $0x10] sm:$0xff]
    %v90 = vld [vmem:[#allocation2 + $0x18] sm:$0xff]
    %v91 = vld [vmem:[#allocation2 + $0x20] sm:$0xff]
    %v92 = vld [vmem:[#allocation2 + $0x28] sm:$0xff]
    %v93 = vld [vmem:[#allocation2 + $0x30] sm:$0xff]
    %v94 = vld [vmem:[#allocation2 + $0x38] sm:$0xff]
    %v95 = vld [vmem:[#allocation2 + $0x40] sm:$0xff]
    %v96 = vld [vmem:[#allocation2 + $0x48] sm:$0xff]
    %v97 = vld [vmem:[#allocation2 + $0x50] sm:$0xff]
    %v98 = vld [vmem:[#allocation2 + $0x58] sm:$0xff]
    %v99 = vld [vmem:[#allocation2 + $0x60] sm:$0xff]
    %v100 = vld [vmem:[#allocation2 + $0x68] sm:$0xff]
    %v101 = vld [vmem:[#allocation2 + $0x70] sm:$0xff]
    %v102 = vld [vmem:[#allocation2 + $0x78] sm:$0xff]
    %v103 = vld [vmem:[#allocation2 + $0x80] sm:$0xff]
    %v104 = vld [vmem:[#allocation2 + $0x88] sm:$0xff]
    %v105 = vld [vmem:[#allocation2 + $0x90] sm:$0xff]
    %v106 = vld [vmem:[#allocation2 + $0x98] sm:$0xff]
    %v107 = vld [vmem:[#allocation2 + $0xa0] sm:$0xff]
    %v108 = vld [vmem:[#allocation2 + $0xa8] sm:$0xff]
    %v109 = vld [vmem:[#allocation2 + $0xb0] sm:$0xff]
    %v110 = vld [vmem:[#allocation2 + $0xb8] sm:$0xff]
    %v111 = vld [vmem:[#allocation2 + $0xc0] sm:$0xff]
    %v112 = vld [vmem:[#allocation2 + $0xc8] sm:$0xff]
    %v113 = vld [vmem:[#allocation2 + $0xd0] sm:$0xff]
    %v114 = vld [vmem:[#allocation2 + $0xd8] sm:$0xff]
    %v115 = vld [vmem:[#allocation2 + $0xe0] sm:$0xff]
    %v116 = vld [vmem:[#allocation2 + $0xe8] sm:$0xff]
    %v117 = vld [vmem:[#allocation2 + $0xf0] sm:$0xff]
    %v118 = vld [vmem:[#allocation2 + $0xf8] sm:$0xff]
    %v119 = vld [vmem:[#allocation2 + $0x100] sm:$0xff]
    %v120 = vld [vmem:[#allocation2 + $0x108] sm:$0xff]
    %v121 = vld [vmem:[#allocation2 + $0x110] sm:$0xff]
    %v122 = vld [vmem:[#allocation2 + $0x118] sm:$0xff]
    %v123 = vld [vmem:[#allocation2 + $0x120] sm:$0xff]
    %v124 = vld [vmem:[#allocation2 + $0x128] sm:$0xff]
    %v125 = vld [vmem:[#allocation2 + $0x130] sm:$0xff]
    %v126 = vld [vmem:[#allocation2 + $0x138] sm:$0xff]
    %v127 = vld [vmem:[#allocation2 + $0x140] sm:$0xff]
    %v128 = vld [vmem:[#allocation2 + $0x148] sm:$0xff]
    %v129 = vld [vmem:[#allocation2 + $0x150] sm:$0xff]
    %v130 = vld [vmem:[#allocation2 + $0x158] sm:$0xff]
    %v131 = vld [vmem:[#allocation2 + $0x160] sm:$0xff]
    %v132 = vld [vmem:[#allocation2 + $0x168] sm:$0xff]
    %v133 = vld [vmem:[#allocation2 + $0x170] sm:$0xff]
    %v134 = vld [vmem:[#allocation2 + $0x178] sm:$0xff]
    %v135 = vld [vmem:[#allocation2 + $0x180] sm:$0xff]
    %v136 = vld [vmem:[#allocation2 + $0x188] sm:$0xff]
    %v137 = vld [vmem:[#allocation2 + $0x190] sm:$0xff]
    %v138 = vld [vmem:[#allocation2 + $0x198] sm:$0xff]
    %v139 = vld [vmem:[#allocation2 + $0x1a0] sm:$0xff]
    %v140 = vld [vmem:[#allocation2 + $0x1a8] sm:$0xff]
    %v141 = vld [vmem:[#allocation2 + $0x1b0] sm:$0xff]
    %v142 = vld [vmem:[#allocation2 + $0x1b8] sm:$0xff]
    %v143 = vld [vmem:[#allocation2 + $0x1c0] sm:$0xff]
    %v144 = vld [vmem:[#allocation2 + $0x1c8] sm:$0xff]
    %v145 = vld [vmem:[#allocation2 + $0x1d0] sm:$0xff]
    %v146 = vld [vmem:[#allocation2 + $0x1d8] sm:$0xff]
    %v147 = vld [vmem:[#allocation2 + $0x1e0] sm:$0xff]
    %v148 = vld [vmem:[#allocation2 + $0x1e8] sm:$0xff]
    %v149 = vld [vmem:[#allocation2 + $0x1f0] sm:$0xff]
    %v150 = vld [vmem:[#allocation2 + $0x1f8] sm:$0xff]
    %v151 = vld [vmem:[#allocation2 + $0x200] sm:$0xff]
    %v152 = vld [vmem:[#allocation2 + $0x208] sm:$0xff]
    %v153 = vld [vmem:[#allocation2 + $0x210] sm:$0xff]
    %v154 = vld [vmem:[#allocation2 + $0x218] sm:$0xff]
    %v155 = vld [vmem:[#allocation2 + $0x220] sm:$0xff]
    %v156 = vld [vmem:[#allocation2 + $0x228] sm:$0xff]
    %v157 = vld [vmem:[#allocation2 + $0x230] sm:$0xff]
    %v158 = vld [vmem:[#allocation2 + $0x238] sm:$0xff]
    %v159 = vld [vmem:[#allocation2 + $0x240] sm:$0xff]
    %v160 = vld [vmem:[#allocation2 + $0x248] sm:$0xff]
    %v161 = vld [vmem:[#allocation2 + $0x250] sm:$0xff]
    %v162 = vld [vmem:[#allocation2 + $0x258] sm:$0xff]
    %v163 = vld [vmem:[#allocation2 + $0x260] sm:$0xff]
    %v164 = vld [vmem:[#allocation2 + $0x268] sm:$0xff]
    %v165 = vld [vmem:[#allocation2 + $0x270] sm:$0xff]
    %v166 = vld [vmem:[#allocation2 + $0x278] sm:$0xff]
    %v167 = vld [vmem:[#allocation2 + $0x280] sm:$0xff]
    %v168 = vld [vmem:[#allocation2 + $0x288] sm:$0xff]
    %v169 = vld [vmem:[#allocation2 + $0x290] sm:$0xff]
    %v170 = vld [vmem:[#allocation2 + $0x298] sm:$0xff]
    %v171 = vld [vmem:[#allocation2 + $0x2a0] sm:$0xff]
    %v172 = vld [vmem:[#allocation2 + $0x2a8] sm:$0xff]
    %v173 = vld [vmem:[#allocation2 + $0x2b0] sm:$0xff]
    %v174 = vld [vmem:[#allocation2 + $0x2b8] sm:$0xff]
    %v175 = vld [vmem:[#allocation2 + $0x2c0] sm:$0xff]
    %v176 = vld [vmem:[#allocation2 + $0x2c8] sm:$0xff]
    %v177 = vld [vmem:[#allocation2 + $0x2d0] sm:$0xff]
    %v178 = vld [vmem:[#allocation2 + $0x2d8] sm:$0xff]
    %v179 = vld [vmem:[#allocation2 + $0x2e0] sm:$0xff]
    %v180 = vld [vmem:[#allocation2 + $0x2e8] sm:$0xff]
    %v181 = vld [vmem:[#allocation2 + $0x2f0] sm:$0xff]
    %v182 = vld [vmem:[#allocation2 + $0x2f8] sm:$0xff]
    %v183 = vld [vmem:[#allocation2 + $0x300] sm:$0xff]
    %v184 = vld [vmem:[#allocation2 + $0x308] sm:$0xff]
    %v185 = vld [vmem:[#allocation2 + $0x310] sm:$0xff]
    %v186 = vld [vmem:[#allocation2 + $0x318] sm:$0xff]
    %v187 = vld [vmem:[#allocation2 + $0x320] sm:$0xff]
    %v188 = vld [vmem:[#allocation2 + $0x328] sm:$0xff]
    %v189 = vld [vmem:[#allocation2 + $0x330] sm:$0xff]
    %v190 = vld [vmem:[#allocation2 + $0x338] sm:$0xff]
    %v191 = vld [vmem:[#allocation2 + $0x340] sm:$0xff]
    %v192 = vld [vmem:[#allocation2 + $0x348] sm:$0xff]
    %v193 = vld [vmem:[#allocation2 + $0x350] sm:$0xff]
    %v194 = vld [vmem:[#allocation2 + $0x358] sm:$0xff]
    %v195 = vld [vmem:[#allocation2 + $0x360] sm:$0xff]
    %v196 = vld [vmem:[#allocation2 + $0x368] sm:$0xff]
    %v197 = vld [vmem:[#allocation2 + $0x370] sm:$0xff]
    %v198 = vld [vmem:[#allocation2 + $0x378] sm:$0xff]
    %v199 = vld [vmem:[#allocation2 + $0x380] sm:$0xff]
    %v200 = vld [vmem:[#allocation2 + $0x388] sm:$0xff]
    %v201 = vld [vmem:[#allocation2 + $0x390] sm:$0xff]
    %v202 = vld [vmem:[#allocation2 + $0x398] sm:$0xff]
    %v203 = vld [vmem:[#allocation2 + $0x3a0] sm:$0xff]
    %v204 = vld [vmem:[#allocation2 + $0x3a8] sm:$0xff]
    %v205 = vld [vmem:[#allocation2 + $0x3b0] sm:$0xff]
    %v206 = vld [vmem:[#allocation2 + $0x3b8] sm:$0xff]
    %v207 = vld [vmem:[#allocation2 + $0x3c0] sm:$0xff]
    %v208 = vld [vmem:[#allocation2 + $0x3c8] sm:$0xff]
    %v209 = vld [vmem:[#allocation2 + $0x3d0] sm:$0xff]
    %v210 = vld [vmem:[#allocation2 + $0x3d8] sm:$0xff]
    %v211 = vld [vmem:[#allocation2 + $0x3e0] sm:$0xff]
    %v212 = vld [vmem:[#allocation2 + $0x3e8] sm:$0xff]
    %v213 = vld [vmem:[#allocation2 + $0x3f0] sm:$0xff]
    %v214 = vld [vmem:[#allocation2 + $0x3f8] sm:$0xff]
    %v215 = vld [vmem:[#allocation5] sm:$0xff]
    %v216 = vld [vmem:[#allocation5 + $0x8] sm:$0xff]
    %v217 = vld [vmem:[#allocation5 + $0x10] sm:$0xff]
    %v218 = vld [vmem:[#allocation5 + $0x18] sm:$0xff]
    %v219 = vld [vmem:[#allocation5 + $0x20] sm:$0xff]
    %v220 = vld [vmem:[#allocation5 + $0x28] sm:$0xff]
    %v221 = vld [vmem:[#allocation5 + $0x30] sm:$0xff]
    %v222 = vld [vmem:[#allocation5 + $0x38] sm:$0xff]
    %v223 = vld [vmem:[#allocation5 + $0x40] sm:$0xff]
    %v224 = vld [vmem:[#allocation5 + $0x48] sm:$0xff]
    %v225 = vld [vmem:[#allocation5 + $0x50] sm:$0xff]
    %v226 = vld [vmem:[#allocation5 + $0x58] sm:$0xff]
    %v227 = vld [vmem:[#allocation5 + $0x60] sm:$0xff]
    %v228 = vld [vmem:[#allocation5 + $0x68] sm:$0xff]
    %v229 = vld [vmem:[#allocation5 + $0x70] sm:$0xff]
    %v230 = vld [vmem:[#allocation5 + $0x78] sm:$0xff]
    %v231 = vld [vmem:[#allocation5 + $0x80] sm:$0xff]
    %v232 = vld [vmem:[#allocation5 + $0x88] sm:$0xff]
    %v233 = vld [vmem:[#allocation5 + $0x90] sm:$0xff]
    %v234 = vld [vmem:[#allocation5 + $0x98] sm:$0xff]
    %v235 = vld [vmem:[#allocation5 + $0xa0] sm:$0xff]
    %v236 = vld [vmem:[#allocation5 + $0xa8] sm:$0xff]
    %v237 = vld [vmem:[#allocation5 + $0xb0] sm:$0xff]
    %v238 = vld [vmem:[#allocation5 + $0xb8] sm:$0xff]
    %v239 = vld [vmem:[#allocation5 + $0xc0] sm:$0xff]
    %v240 = vld [vmem:[#allocation5 + $0xc8] sm:$0xff]
    %v241 = vld [vmem:[#allocation5 + $0xd0] sm:$0xff]
    %v242 = vld [vmem:[#allocation5 + $0xd8] sm:$0xff]
    %v243 = vld [vmem:[#allocation5 + $0xe0] sm:$0xff]
    %v244 = vld [vmem:[#allocation5 + $0xe8] sm:$0xff]
    %v245 = vld [vmem:[#allocation5 + $0xf0] sm:$0xff]
    %v246 = vld [vmem:[#allocation5 + $0xf8] sm:$0xff]
    %v247 = vld [vmem:[#allocation5 + $0x100] sm:$0xff]
    %v248 = vld [vmem:[#allocation5 + $0x108] sm:$0xff]
    %v249 = vld [vmem:[#allocation5 + $0x110] sm:$0xff]
    %v250 = vld [vmem:[#allocation5 + $0x118] sm:$0xff]
    %v251 = vld [vmem:[#allocation5 + $0x120] sm:$0xff]
    %v252 = vld [vmem:[#allocation5 + $0x128] sm:$0xff]
    %v253 = vld [vmem:[#allocation5 + $0x130] sm:$0xff]
    %v254 = vld [vmem:[#allocation5 + $0x138] sm:$0xff]
    %v255 = vld [vmem:[#allocation5 + $0x140] sm:$0xff]
    %v256 = vld [vmem:[#allocation5 + $0x148] sm:$0xff]
    %v257 = vld [vmem:[#allocation5 + $0x150] sm:$0xff]
    %v258 = vld [vmem:[#allocation5 + $0x158] sm:$0xff]
    %v259 = vld [vmem:[#allocation5 + $0x160] sm:$0xff]
    %v260 = vld [vmem:[#allocation5 + $0x168] sm:$0xff]
    %v261 = vld [vmem:[#allocation5 + $0x170] sm:$0xff]
    %v262 = vld [vmem:[#allocation5 + $0x178] sm:$0xff]
    %v263 = vld [vmem:[#allocation5 + $0x180] sm:$0xff]
    %v264 = vld [vmem:[#allocation5 + $0x188] sm:$0xff]
    %v265 = vld [vmem:[#allocation5 + $0x190] sm:$0xff]
    %v266 = vld [vmem:[#allocation5 + $0x198] sm:$0xff]
    %v267 = vld [vmem:[#allocation5 + $0x1a0] sm:$0xff]
    %v268 = vld [vmem:[#allocation5 + $0x1a8] sm:$0xff]
    %v269 = vld [vmem:[#allocation5 + $0x1b0] sm:$0xff]
    %v270 = vld [vmem:[#allocation5 + $0x1b8] sm:$0xff]
    %v271 = vld [vmem:[#allocation5 + $0x1c0] sm:$0xff]
    %v272 = vld [vmem:[#allocation5 + $0x1c8] sm:$0xff]
    %v273 = vld [vmem:[#allocation5 + $0x1d0] sm:$0xff]
    %v274 = vld [vmem:[#allocation5 + $0x1d8] sm:$0xff]
    %v275 = vld [vmem:[#allocation5 + $0x1e0] sm:$0xff]
    %v276 = vld [vmem:[#allocation5 + $0x1e8] sm:$0xff]
    %v277 = vld [vmem:[#allocation5 + $0x1f0] sm:$0xff]
    %v278 = vld [vmem:[#allocation5 + $0x1f8] sm:$0xff]
    %v279 = vld [vmem:[#allocation5 + $0x200] sm:$0xff]
    %v280 = vld [vmem:[#allocation5 + $0x208] sm:$0xff]
    %v281 = vld [vmem:[#allocation5 + $0x210] sm:$0xff]
    %v282 = vld [vmem:[#allocation5 + $0x218] sm:$0xff]
    %v283 = vld [vmem:[#allocation5 + $0x220] sm:$0xff]
    %v284 = vld [vmem:[#allocation5 + $0x228] sm:$0xff]
    %v285 = vld [vmem:[#allocation5 + $0x230] sm:$0xff]
    %v286 = vld [vmem:[#allocation5 + $0x238] sm:$0xff]
    %v287 = vld [vmem:[#allocation5 + $0x240] sm:$0xff]
    %v288 = vld [vmem:[#allocation5 + $0x248] sm:$0xff]
    %v289 = vld [vmem:[#allocation5 + $0x250] sm:$0xff]
    %v290 = vld [vmem:[#allocation5 + $0x258] sm:$0xff]
    %v291 = vld [vmem:[#allocation5 + $0x260] sm:$0xff]
    %v292 = vld [vmem:[#allocation5 + $0x268] sm:$0xff]
    %v293 = vld [vmem:[#allocation5 + $0x270] sm:$0xff]
    %v294 = vld [vmem:[#allocation5 + $0x278] sm:$0xff]
    %v295 = vld [vmem:[#allocation5 + $0x280] sm:$0xff]
    %v296 = vld [vmem:[#allocation5 + $0x288] sm:$0xff]
    %v297 = vld [vmem:[#allocation5 + $0x290] sm:$0xff]
    %v298 = vld [vmem:[#allocation5 + $0x298] sm:$0xff]
    %v299 = vld [vmem:[#allocation5 + $0x2a0] sm:$0xff]
    %v300 = vld [vmem:[#allocation5 + $0x2a8] sm:$0xff]
    %v301 = vld [vmem:[#allocation5 + $0x2b0] sm:$0xff]
    %v302 = vld [vmem:[#allocation5 + $0x2b8] sm:$0xff]
    %v303 = vld [vmem:[#allocation5 + $0x2c0] sm:$0xff]
    %v304 = vld [vmem:[#allocation5 + $0x2c8] sm:$0xff]
    %v305 = vld [vmem:[#allocation5 + $0x2d0] sm:$0xff]
    %v306 = vld [vmem:[#allocation5 + $0x2d8] sm:$0xff]
    %v307 = vld [vmem:[#allocation5 + $0x2e0] sm:$0xff]
    %v308 = vld [vmem:[#allocation5 + $0x2e8] sm:$0xff]
    %v309 = vld [vmem:[#allocation5 + $0x2f0] sm:$0xff]
    %v310 = vld [vmem:[#allocation5 + $0x2f8] sm:$0xff]
    %v311 = vld [vmem:[#allocation5 + $0x300] sm:$0xff]
    %v312 = vld [vmem:[#allocation5 + $0x308] sm:$0xff]
    %v313 = vld [vmem:[#allocation5 + $0x310] sm:$0xff]
    %v314 = vld [vmem:[#allocation5 + $0x318] sm:$0xff]
    %v315 = vld [vmem:[#allocation5 + $0x320] sm:$0xff]
    %v316 = vld [vmem:[#allocation5 + $0x328] sm:$0xff]
    %v317 = vld [vmem:[#allocation5 + $0x330] sm:$0xff]
    %v318 = vld [vmem:[#allocation5 + $0x338] sm:$0xff]
    %v319 = vld [vmem:[#allocation5 + $0x340] sm:$0xff]
    %v320 = vld [vmem:[#allocation5 + $0x348] sm:$0xff]
    %v321 = vld [vmem:[#allocation5 + $0x350] sm:$0xff]
    %v322 = vld [vmem:[#allocation5 + $0x358] sm:$0xff]
    %v323 = vld [vmem:[#allocation5 + $0x360] sm:$0xff]
    %v324 = vld [vmem:[#allocation5 + $0x368] sm:$0xff]
    %v325 = vld [vmem:[#allocation5 + $0x370] sm:$0xff]
    %v326 = vld [vmem:[#allocation5 + $0x378] sm:$0xff]
    %v327 = vld [vmem:[#allocation5 + $0x380] sm:$0xff]
    %v328 = vld [vmem:[#allocation5 + $0x388] sm:$0xff]
    %v329 = vld [vmem:[#allocation5 + $0x390] sm:$0xff]
    %v330 = vld [vmem:[#allocation5 + $0x398] sm:$0xff]
    %v331 = vld [vmem:[#allocation5 + $0x3a0] sm:$0xff]
    %v332 = vld [vmem:[#allocation5 + $0x3a8] sm:$0xff]
    %v333 = vld [vmem:[#allocation5 + $0x3b0] sm:$0xff]
    %v334 = vld [vmem:[#allocation5 + $0x3b8] sm:$0xff]
    %v335 = vld [vmem:[#allocation5 + $0x3c0] sm:$0xff]
    %v336 = vld [vmem:[#allocation5 + $0x3c8] sm:$0xff]
    %v337 = vld [vmem:[#allocation5 + $0x3d0] sm:$0xff]
    %v338 = vld [vmem:[#allocation5 + $0x3d8] sm:$0xff]
    %v339 = vld [vmem:[#allocation5 + $0x3e0] sm:$0xff]
    %v340 = vld [vmem:[#allocation5 + $0x3e8] sm:$0xff]
    %v341 = vld [vmem:[#allocation5 + $0x3f0] sm:$0xff]
    %v342 = vld [vmem:[#allocation5 + $0x3f8] sm:$0xff]
    %v343 = vmul.f32 %v87, %v215
    %v344 = vmul.f32 %v88, %v216
    %v345 = vmul.f32 %v89, %v217
    %v346 = vmul.f32 %v90, %v218
    %v347 = vmul.f32 %v91, %v219
    %v348 = vmul.f32 %v92, %v220
    %v349 = vmul.f32 %v93, %v221
    %v350 = vmul.f32 %v94, %v222
    %v351 = vmul.f32 %v95, %v223
    %v352 = vmul.f32 %v96, %v224
    %v353 = vmul.f32 %v97, %v225
    %v354 = vmul.f32 %v98, %v226
    %v355 = vmul.f32 %v99, %v227
    %v356 = vmul.f32 %v100, %v228
    %v357 = vmul.f32 %v101, %v229
    %v358 = vmul.f32 %v102, %v230
    %v359 = vmul.f32 %v103, %v231
    %v360 = vmul.f32 %v104, %v232
    %v361 = vmul.f32 %v105, %v233
    %v362 = vmul.f32 %v106, %v234
    %v363 = vmul.f32 %v107, %v235
    %v364 = vmul.f32 %v108, %v236
    %v365 = vmul.f32 %v109, %v237
    %v366 = vmul.f32 %v110, %v238
    %v367 = vmul.f32 %v111, %v239
    %v368 = vmul.f32 %v112, %v240
    %v369 = vmul.f32 %v113, %v241
    %v370 = vmul.f32 %v114, %v242
    %v371 = vmul.f32 %v115, %v243
    %v372 = vmul.f32 %v116, %v244
    %v373 = vmul.f32 %v117, %v245
    %v374 = vmul.f32 %v118, %v246
    %v375 = vmul.f32 %v119, %v247
    %v376 = vmul.f32 %v120, %v248
    %v377 = vmul.f32 %v121, %v249
    %v378 = vmul.f32 %v122, %v250
    %v379 = vmul.f32 %v123, %v251
    %v380 = vmul.f32 %v124, %v252
    %v381 = vmul.f32 %v125, %v253
    %v382 = vmul.f32 %v126, %v254
    %v383 = vmul.f32 %v127, %v255
    %v384 = vmul.f32 %v128, %v256
    %v385 = vmul.f32 %v129, %v257
    %v386 = vmul.f32 %v130, %v258
    %v387 = vmul.f32 %v131, %v259
    %v388 = vmul.f32 %v132, %v260
    %v389 = vmul.f32 %v133, %v261
    %v390 = vmul.f32 %v134, %v262
    %v391 = vmul.f32 %v135, %v263
    %v392 = vmul.f32 %v136, %v264
    %v393 = vmul.f32 %v137, %v265
    %v394 = vmul.f32 %v138, %v266
    %v395 = vmul.f32 %v139, %v267
    %v396 = vmul.f32 %v140, %v268
    %v397 = vmul.f32 %v141, %v269
    %v398 = vmul.f32 %v142, %v270
    %v399 = vmul.f32 %v143, %v271
    %v400 = vmul.f32 %v144, %v272
    %v401 = vmul.f32 %v145, %v273
    %v402 = vmul.f32 %v146, %v274
    %v403 = vmul.f32 %v147, %v275
    %v404 = vmul.f32 %v148, %v276
    %v405 = vmul.f32 %v149, %v277
    %v406 = vmul.f32 %v150, %v278
    %v407 = vmul.f32 %v151, %v279
    %v408 = vmul.f32 %v152, %v280
    %v409 = vmul.f32 %v153, %v281
    %v410 = vmul.f32 %v154, %v282
    %v411 = vmul.f32 %v155, %v283
    %v412 = vmul.f32 %v156, %v284
    %v413 = vmul.f32 %v157, %v285
    %v414 = vmul.f32 %v158, %v286
    %v415 = vmul.f32 %v159, %v287
    %v416 = vmul.f32 %v160, %v288
    %v417 = vmul.f32 %v161, %v289
    %v418 = vmul.f32 %v162, %v290
    %v419 = vmul.f32 %v163, %v291
    %v420 = vmul.f32 %v164, %v292
    %v421 = vmul.f32 %v165, %v293
    %v422 = vmul.f32 %v166, %v294
    %v423 = vmul.f32 %v167, %v295
    %v424 = vmul.f32 %v168, %v296
    %v425 = vmul.f32 %v169, %v297
    %v426 = vmul.f32 %v170, %v298
    %v427 = vmul.f32 %v171, %v299
    %v428 = vmul.f32 %v172, %v300
    %v429 = vmul.f32 %v173, %v301
    %v430 = vmul.f32 %v174, %v302
    %v431 = vmul.f32 %v175, %v303
    %v432 = vmul.f32 %v176, %v304
    %v433 = vmul.f32 %v177, %v305
    %v434 = vmul.f32 %v178, %v306
    %v435 = vmul.f32 %v179, %v307
    %v436 = vmul.f32 %v180, %v308
    %v437 = vmul.f32 %v181, %v309
    %v438 = vmul.f32 %v182, %v310
    %v439 = vmul.f32 %v183, %v311
    %v440 = vmul.f32 %v184, %v312
    %v441 = vmul.f32 %v185, %v313
    %v442 = vmul.f32 %v186, %v314
    %v443 = vmul.f32 %v187, %v315
    %v444 = vmul.f32 %v188, %v316
    %v445 = vmul.f32 %v189, %v317
    %v446 = vmul.f32 %v190, %v318
    %v447 = vmul.f32 %v191, %v319
    %v448 = vmul.f32 %v192, %v320
    %v449 = vmul.f32 %v193, %v321
    %v450 = vmul.f32 %v194, %v322
    %v451 = vmul.f32 %v195, %v323
    %v452 = vmul.f32 %v196, %v324
    %v453 = vmul.f32 %v197, %v325
    %v454 = vmul.f32 %v198, %v326
    %v455 = vmul.f32 %v199, %v327
    %v456 = vmul.f32 %v200, %v328
    %v457 = vmul.f32 %v201, %v329
    %v458 = vmul.f32 %v202, %v330
    %v459 = vmul.f32 %v203, %v331
    %v460 = vmul.f32 %v204, %v332
    %v461 = vmul.f32 %v205, %v333
    %v462 = vmul.f32 %v206, %v334
    %v463 = vmul.f32 %v207, %v335
    %v464 = vmul.f32 %v208, %v336
    %v465 = vmul.f32 %v209, %v337
    %v466 = vmul.f32 %v210, %v338
    %v467 = vmul.f32 %v211, %v339
    %v468 = vmul.f32 %v212, %v340
    %v469 = vmul.f32 %v213, %v341
    %v470 = vmul.f32 %v214, %v342
    %v471 = vand.u32 2147483647, %v343
    %v472 = vand.u32 2147483647, %v344
    %v473 = vand.u32 2147483647, %v345
    %v474 = vand.u32 2147483647, %v346
    %v475 = vand.u32 2147483647, %v347
    %v476 = vand.u32 2147483647, %v348
    %v477 = vand.u32 2147483647, %v349
    %v478 = vand.u32 2147483647, %v350
    %v479 = vand.u32 2147483647, %v351
    %v480 = vand.u32 2147483647, %v352
    %v481 = vand.u32 2147483647, %v353
    %v482 = vand.u32 2147483647, %v354
    %v483 = vand.u32 2147483647, %v355
    %v484 = vand.u32 2147483647, %v356
    %v485 = vand.u32 2147483647, %v357
    %v486 = vand.u32 2147483647, %v358
    %v487 = vand.u32 2147483647, %v359
    %v488 = vand.u32 2147483647, %v360
    %v489 = vand.u32 2147483647, %v361
    %v490 = vand.u32 2147483647, %v362
    %v491 = vand.u32 2147483647, %v363
    %v492 = vand.u32 2147483647, %v364
    %v493 = vand.u32 2147483647, %v365
    %v494 = vand.u32 2147483647, %v366
    %v495 = vand.u32 2147483647, %v367
    %v496 = vand.u32 2147483647, %v368
    %v497 = vand.u32 2147483647, %v369
    %v498 = vand.u32 2147483647, %v370
    %v499 = vand.u32 2147483647, %v371
    %v500 = vand.u32 2147483647, %v372
    %v501 = vand.u32 2147483647, %v373
    %v502 = vand.u32 2147483647, %v374
    %v503 = vand.u32 2147483647, %v375
    %v504 = vand.u32 2147483647, %v376
    %v505 = vand.u32 2147483647, %v377
    %v506 = vand.u32 2147483647, %v378
    %v507 = vand.u32 2147483647, %v379
    %v508 = vand.u32 2147483647, %v380
    %v509 = vand.u32 2147483647, %v381
    %v510 = vand.u32 2147483647, %v382
    %v511 = vand.u32 2147483647, %v383
    %v512 = vand.u32 2147483647, %v384
    %v513 = vand.u32 2147483647, %v385
    %v514 = vand.u32 2147483647, %v386
    %v515 = vand.u32 2147483647, %v387
    %v516 = vand.u32 2147483647, %v388
    %v517 = vand.u32 2147483647, %v389
    %v518 = vand.u32 2147483647, %v390
    %v519 = vand.u32 2147483647, %v391
    %v520 = vand.u32 2147483647, %v392
    %v521 = vand.u32 2147483647, %v393
    %v522 = vand.u32 2147483647, %v394
    %v523 = vand.u32 2147483647, %v395
    %v524 = vand.u32 2147483647, %v396
    %v525 = vand.u32 2147483647, %v397
    %v526 = vand.u32 2147483647, %v398
    %v527 = vand.u32 2147483647, %v399
    %v528 = vand.u32 2147483647, %v400
    %v529 = vand.u32 2147483647, %v401
    %v530 = vand.u32 2147483647, %v402
    %v531 = vand.u32 2147483647, %v403
    %v532 = vand.u32 2147483647, %v404
    %v533 = vand.u32 2147483647, %v405
    %v534 = vand.u32 2147483647, %v406
    %v535 = vand.u32 2147483647, %v407
    %v536 = vand.u32 2147483647, %v408
    %v537 = vand.u32 2147483647, %v409
    %v538 = vand.u32 2147483647, %v410
    %v539 = vand.u32 2147483647, %v411
    %v540 = vand.u32 2147483647, %v412
    %v541 = vand.u32 2147483647, %v413
    %v542 = vand.u32 2147483647, %v414
    %v543 = vand.u32 2147483647, %v415
    %v544 = vand.u32 2147483647, %v416
    %v545 = vand.u32 2147483647, %v417
    %v546 = vand.u32 2147483647, %v418
    %v547 = vand.u32 2147483647, %v419
    %v548 = vand.u32 2147483647, %v420
    %v549 = vand.u32 2147483647, %v421
    %v550 = vand.u32 2147483647, %v422
    %v551 = vand.u32 2147483647, %v423
    %v552 = vand.u32 2147483647, %v424
    %v553 = vand.u32 2147483647, %v425
    %v554 = vand.u32 2147483647, %v426
    %v555 = vand.u32 2147483647, %v427
    %v556 = vand.u32 2147483647, %v428
    %v557 = vand.u32 2147483647, %v429
    %v558 = vand.u32 2147483647, %v430
    %v559 = vand.u32 2147483647, %v431
    %v560 = vand.u32 2147483647, %v432
    %v561 = vand.u32 2147483647, %v433
    %v562 = vand.u32 2147483647, %v434
    %v563 = vand.u32 2147483647, %v435
    %v564 = vand.u32 2147483647, %v436
    %v565 = vand.u32 2147483647, %v437
    %v566 = vand.u32 2147483647, %v438
    %v567 = vand.u32 2147483647, %v439
    %v568 = vand.u32 2147483647, %v440
    %v569 = vand.u32 2147483647, %v441
    %v570 = vand.u32 2147483647, %v442
    %v571 = vand.u32 2147483647, %v443
    %v572 = vand.u32 2147483647, %v444
    %v573 = vand.u32 2147483647, %v445
    %v574 = vand.u32 2147483647, %v446
    %v575 = vand.u32 2147483647, %v447
    %v576 = vand.u32 2147483647, %v448
    %v577 = vand.u32 2147483647, %v449
    %v578 = vand.u32 2147483647, %v450
    %v579 = vand.u32 2147483647, %v451
    %v580 = vand.u32 2147483647, %v452
    %v581 = vand.u32 2147483647, %v453
    %v582 = vand.u32 2147483647, %v454
    %v583 = vand.u32 2147483647, %v455
    %v584 = vand.u32 2147483647, %v456
    %v585 = vand.u32 2147483647, %v457
    %v586 = vand.u32 2147483647, %v458
    %v587 = vand.u32 2147483647, %v459
    %v588 = vand.u32 2147483647, %v460
    %v589 = vand.u32 2147483647, %v461
    %v590 = vand.u32 2147483647, %v462
    %v591 = vand.u32 2147483647, %v463
    %v592 = vand.u32 2147483647, %v464
    %v593 = vand.u32 2147483647, %v465
    %v594 = vand.u32 2147483647, %v466
    %v595 = vand.u32 2147483647, %v467
    %v596 = vand.u32 2147483647, %v468
    %v597 = vand.u32 2147483647, %v469
    %v598 = vand.u32 2147483647, %v470
    %v599 = vadd.f32 %v471, %v472
    %600 = vadd.xlane.f32.xlu0 %v599
    %v601 = vpop.xlane.xlu0 %600
    %v602 = vadd.f32 %v473, %v474
    %603 = vadd.xlane.f32.xlu0 %v602
    %v604 = vpop.xlane.xlu0 %603
    %v605 = vadd.f32 %v475, %v476
    %606 = vadd.xlane.f32.xlu0 %v605
    %v607 = vpop.xlane.xlu0 %606
    %v608 = vadd.f32 %v477, %v478
    %609 = vadd.xlane.f32.xlu0 %v608
    %v610 = vpop.xlane.xlu0 %609
    %v611 = vadd.f32 %v479, %v480
    %612 = vadd.xlane.f32.xlu0 %v611
    %v613 = vpop.xlane.xlu0 %612
    %v614 = vadd.f32 %v481, %v482
    %615 = vadd.xlane.f32.xlu0 %v614
    %v616 = vpop.xlane.xlu0 %615
    %v617 = vadd.f32 %v483, %v484
    %618 = vadd.xlane.f32.xlu0 %v617
    %v619 = vpop.xlane.xlu0 %618
    %v620 = vadd.f32 %v485, %v486
    %621 = vadd.xlane.f32.xlu0 %v620
    %v622 = vpop.xlane.xlu0 %621
    %v623 = vadd.f32 %v487, %v488
    %624 = vadd.xlane.f32.xlu0 %v623
    %v625 = vpop.xlane.xlu0 %624
    %v626 = vadd.f32 %v489, %v490
    %627 = vadd.xlane.f32.xlu0 %v626
    %v628 = vpop.xlane.xlu0 %627
    %v629 = vadd.f32 %v491, %v492
    %630 = vadd.xlane.f32.xlu0 %v629
    %v631 = vpop.xlane.xlu0 %630
    %v632 = vadd.f32 %v493, %v494
    %633 = vadd.xlane.f32.xlu0 %v632
    %v634 = vpop.xlane.xlu0 %633
    %v635 = vadd.f32 %v495, %v496
    %636 = vadd.xlane.f32.xlu0 %v635
    %v637 = vpop.xlane.xlu0 %636
    %v638 = vadd.f32 %v497, %v498
    %639 = vadd.xlane.f32.xlu0 %v638
    %v640 = vpop.xlane.xlu0 %639
    %v641 = vadd.f32 %v499, %v500
    %642 = vadd.xlane.f32.xlu0 %v641
    %v643 = vpop.xlane.xlu0 %642
    %v644 = vadd.f32 %v501, %v502
    %645 = vadd.xlane.f32.xlu0 %v644
    %v646 = vpop.xlane.xlu0 %645
    %v647 = vadd.f32 %v503, %v504
    %648 = vadd.xlane.f32.xlu0 %v647
    %v649 = vpop.xlane.xlu0 %648
    %v650 = vadd.f32 %v505, %v506
    %651 = vadd.xlane.f32.xlu0 %v650
    %v652 = vpop.xlane.xlu0 %651
    %v653 = vadd.f32 %v507, %v508
    %654 = vadd.xlane.f32.xlu0 %v653
    %v655 = vpop.xlane.xlu0 %654
    %v656 = vadd.f32 %v509, %v510
    %657 = vadd.xlane.f32.xlu0 %v656
    %v658 = vpop.xlane.xlu0 %657
    %v659 = vadd.f32 %v511, %v512
    %660 = vadd.xlane.f32.xlu0 %v659
    %v661 = vpop.xlane.xlu0 %660
    %v662 = vadd.f32 %v513, %v514
    %663 = vadd.xlane.f32.xlu0 %v662
    %v664 = vpop.xlane.xlu0 %663
    %v665 = vadd.f32 %v515, %v516
    %666 = vadd.xlane.f32.xlu0 %v665
    %v667 = vpop.xlane.xlu0 %666
    %v668 = vadd.f32 %v517, %v518
    %669 = vadd.xlane.f32.xlu0 %v668
    %v670 = vpop.xlane.xlu0 %669
    %v671 = vadd.f32 %v519, %v520
    %672 = vadd.xlane.f32.xlu0 %v671
    %v673 = vpop.xlane.xlu0 %672
    %v674 = vadd.f32 %v521, %v522
    %675 = vadd.xlane.f32.xlu0 %v674
    %v676 = vpop.xlane.xlu0 %675
    %v677 = vadd.f32 %v523, %v524
    %678 = vadd.xlane.f32.xlu0 %v677
    %v679 = vpop.xlane.xlu0 %678
    %v680 = vadd.f32 %v525, %v526
    %681 = vadd.xlane.f32.xlu0 %v680
    %v682 = vpop.xlane.xlu0 %681
    %v683 = vadd.f32 %v527, %v528
    %684 = vadd.xlane.f32.xlu0 %v683
    %v685 = vpop.xlane.xlu0 %684
    %v686 = vadd.f32 %v529, %v530
    %687 = vadd.xlane.f32.xlu0 %v686
    %v688 = vpop.xlane.xlu0 %687
    %v689 = vadd.f32 %v531, %v532
    %690 = vadd.xlane.f32.xlu0 %v689
    %v691 = vpop.xlane.xlu0 %690
    %v692 = vadd.f32 %v533, %v534
    %693 = vadd.xlane.f32.xlu0 %v692
    %v694 = vpop.xlane.xlu0 %693
    %v695 = vadd.f32 %v535, %v536
    %696 = vadd.xlane.f32.xlu0 %v695
    %v697 = vpop.xlane.xlu0 %696
    %v698 = vadd.f32 %v537, %v538
    %699 = vadd.xlane.f32.xlu0 %v698
    %v700 = vpop.xlane.xlu0 %699
    %v701 = vadd.f32 %v539, %v540
    %702 = vadd.xlane.f32.xlu0 %v701
    %v703 = vpop.xlane.xlu0 %702
    %v704 = vadd.f32 %v541, %v542
    %705 = vadd.xlane.f32.xlu0 %v704
    %v706 = vpop.xlane.xlu0 %705
    %v707 = vadd.f32 %v543, %v544
    %708 = vadd.xlane.f32.xlu0 %v707
    %v709 = vpop.xlane.xlu0 %708
    %v710 = vadd.f32 %v545, %v546
    %711 = vadd.xlane.f32.xlu0 %v710
    %v712 = vpop.xlane.xlu0 %711
    %v713 = vadd.f32 %v547, %v548
    %714 = vadd.xlane.f32.xlu0 %v713
    %v715 = vpop.xlane.xlu0 %714
    %v716 = vadd.f32 %v549, %v550
    %717 = vadd.xlane.f32.xlu0 %v716
    %v718 = vpop.xlane.xlu0 %717
    %v719 = vadd.f32 %v551, %v552
    %720 = vadd.xlane.f32.xlu0 %v719
    %v721 = vpop.xlane.xlu0 %720
    %v722 = vadd.f32 %v553, %v554
    %723 = vadd.xlane.f32.xlu0 %v722
    %v724 = vpop.xlane.xlu0 %723
    %v725 = vadd.f32 %v555, %v556
    %726 = vadd.xlane.f32.xlu0 %v725
    %v727 = vpop.xlane.xlu0 %726
    %v728 = vadd.f32 %v557, %v558
    %729 = vadd.xlane.f32.xlu0 %v728
    %v730 = vpop.xlane.xlu0 %729
    %v731 = vadd.f32 %v559, %v560
    %732 = vadd.xlane.f32.xlu0 %v731
    %v733 = vpop.xlane.xlu0 %732
    %v734 = vadd.f32 %v561, %v562
    %735 = vadd.xlane.f32.xlu0 %v734
    %v736 = vpop.xlane.xlu0 %735
    %v737 = vadd.f32 %v563, %v564
    %738 = vadd.xlane.f32.xlu0 %v737
    %v739 = vpop.xlane.xlu0 %738
    %v740 = vadd.f32 %v565, %v566
    %741 = vadd.xlane.f32.xlu0 %v740
    %v742 = vpop.xlane.xlu0 %741
    %v743 = vadd.f32 %v567, %v568
    %744 = vadd.xlane.f32.xlu0 %v743
    %v745 = vpop.xlane.xlu0 %744
    %v746 = vadd.f32 %v569, %v570
    %747 = vadd.xlane.f32.xlu0 %v746
    %v748 = vpop.xlane.xlu0 %747
    %v749 = vadd.f32 %v571, %v572
    %750 = vadd.xlane.f32.xlu0 %v749
    %v751 = vpop.xlane.xlu0 %750
    %v752 = vadd.f32 %v573, %v574
    %753 = vadd.xlane.f32.xlu0 %v752
    %v754 = vpop.xlane.xlu0 %753
    %v755 = vadd.f32 %v575, %v576
    %756 = vadd.xlane.f32.xlu0 %v755
    %v757 = vpop.xlane.xlu0 %756
    %v758 = vadd.f32 %v577, %v578
    %759 = vadd.xlane.f32.xlu0 %v758
    %v760 = vpop.xlane.xlu0 %759
    %v761 = vadd.f32 %v579, %v580
    %762 = vadd.xlane.f32.xlu0 %v761
    %v763 = vpop.xlane.xlu0 %762
    %v764 = vadd.f32 %v581, %v582
    %765 = vadd.xlane.f32.xlu0 %v764
    %v766 = vpop.xlane.xlu0 %765
    %v767 = vadd.f32 %v583, %v584
    %768 = vadd.xlane.f32.xlu0 %v767
    %v769 = vpop.xlane.xlu0 %768
    %v770 = vadd.f32 %v585, %v586
    %771 = vadd.xlane.f32.xlu0 %v770
    %v772 = vpop.xlane.xlu0 %771
    %v773 = vadd.f32 %v587, %v588
    %774 = vadd.xlane.f32.xlu0 %v773
    %v775 = vpop.xlane.xlu0 %774
    %v776 = vadd.f32 %v589, %v590
    %777 = vadd.xlane.f32.xlu0 %v776
    %v778 = vpop.xlane.xlu0 %777
    %v779 = vadd.f32 %v591, %v592
    %780 = vadd.xlane.f32.xlu0 %v779
    %v781 = vpop.xlane.xlu0 %780
    %v782 = vadd.f32 %v593, %v594
    %783 = vadd.xlane.f32.xlu0 %v782
    %v784 = vpop.xlane.xlu0 %783
    %v785 = vadd.f32 %v595, %v596
    %786 = vadd.xlane.f32.xlu0 %v785
    %v787 = vpop.xlane.xlu0 %786
    %v788 = vadd.f32 %v597, %v598
    %789 = vadd.xlane.f32.xlu0 %v788
    %v790 = vpop.xlane.xlu0 %789
    %v791 = vmax.f32 %v601, 1e-12
    %v792 = vmax.f32 %v604, 1e-12
    %v793 = vmax.f32 %v607, 1e-12
    %v794 = vmax.f32 %v610, 1e-12
    %v795 = vmax.f32 %v613, 1e-12
    %v796 = vmax.f32 %v616, 1e-12
    %v797 = vmax.f32 %v619, 1e-12
    %v798 = vmax.f32 %v622, 1e-12
    %v799 = vmax.f32 %v625, 1e-12
    %v800 = vmax.f32 %v628, 1e-12
    %v801 = vmax.f32 %v631, 1e-12
    %v802 = vmax.f32 %v634, 1e-12
    %v803 = vmax.f32 %v637, 1e-12
    %v804 = vmax.f32 %v640, 1e-12
    %v805 = vmax.f32 %v643, 1e-12
    %v806 = vmax.f32 %v646, 1e-12
    %v807 = vmax.f32 %v649, 1e-12
    %v808 = vmax.f32 %v652, 1e-12
    %v809 = vmax.f32 %v655, 1e-12
    %v810 = vmax.f32 %v658, 1e-12
    %v811 = vmax.f32 %v661, 1e-12
    %v812 = vmax.f32 %v664, 1e-12
    %v813 = vmax.f32 %v667, 1e-12
    %v814 = vmax.f32 %v670, 1e-12
    %v815 = vmax.f32 %v673, 1e-12
    %v816 = vmax.f32 %v676, 1e-12
    %v817 = vmax.f32 %v679, 1e-12
    %v818 = vmax.f32 %v682, 1e-12
    %v819 = vmax.f32 %v685, 1e-12
    %v820 = vmax.f32 %v688, 1e-12
    %v821 = vmax.f32 %v691, 1e-12
    %v822 = vmax.f32 %v694, 1e-12
    %v823 = vmax.f32 %v697, 1e-12
    %v824 = vmax.f32 %v700, 1e-12
    %v825 = vmax.f32 %v703, 1e-12
    %v826 = vmax.f32 %v706, 1e-12
    %v827 = vmax.f32 %v709, 1e-12
    %v828 = vmax.f32 %v712, 1e-12
    %v829 = vmax.f32 %v715, 1e-12
    %v830 = vmax.f32 %v718, 1e-12
    %v831 = vmax.f32 %v721, 1e-12
    %v832 = vmax.f32 %v724, 1e-12
    %v833 = vmax.f32 %v727, 1e-12
    %v834 = vmax.f32 %v730, 1e-12
    %v835 = vmax.f32 %v733, 1e-12
    %v836 = vmax.f32 %v736, 1e-12
    %v837 = vmax.f32 %v739, 1e-12
    %v838 = vmax.f32 %v742, 1e-12
    %v839 = vmax.f32 %v745, 1e-12
    %v840 = vmax.f32 %v748, 1e-12
    %v841 = vmax.f32 %v751, 1e-12
    %v842 = vmax.f32 %v754, 1e-12
    %v843 = vmax.f32 %v757, 1e-12
    %v844 = vmax.f32 %v760, 1e-12
    %v845 = vmax.f32 %v763, 1e-12
    %v846 = vmax.f32 %v766, 1e-12
    %v847 = vmax.f32 %v769, 1e-12
    %v848 = vmax.f32 %v772, 1e-12
    %v849 = vmax.f32 %v775, 1e-12
    %v850 = vmax.f32 %v778, 1e-12
    %v851 = vmax.f32 %v781, 1e-12
    %v852 = vmax.f32 %v784, 1e-12
    %v853 = vmax.f32 %v787, 1e-12
    %v854 = vmax.f32 %v790, 1e-12
    %v855 = vrcp.pop %v791
    %v856 = vrcp.pop %v792
    %v857 = vrcp.pop %v793
    %v858 = vrcp.pop %v794
    %v859 = vrcp.pop %v795
    %v860 = vrcp.pop %v796
    %v861 = vrcp.pop %v797
    %v862 = vrcp.pop %v798
    %v863 = vrcp.pop %v799
    %v864 = vrcp.pop %v800
    %v865 = vrcp.pop %v801
    %v866 = vrcp.pop %v802
    %v867 = vrcp.pop %v803
    %v868 = vrcp.pop %v804
    %v869 = vrcp.pop %v805
    %v870 = vrcp.pop %v806
    %v871 = vrcp.pop %v807
    %v872 = vrcp.pop %v808
    %v873 = vrcp.pop %v809
    %v874 = vrcp.pop %v810
    %v875 = vrcp.pop %v811
    %v876 = vrcp.pop %v812
    %v877 = vrcp.pop %v813
    %v878 = vrcp.pop %v814
    %v879 = vrcp.pop %v815
    %v880 = vrcp.pop %v816
    %v881 = vrcp.pop %v817
    %v882 = vrcp.pop %v818
    %v883 = vrcp.pop %v819
    %v884 = vrcp.pop %v820
    %v885 = vrcp.pop %v821
    %v886 = vrcp.pop %v822
    %v887 = vrcp.pop %v823
    %v888 = vrcp.pop %v824
    %v889 = vrcp.pop %v825
    %v890 = vrcp.pop %v826
    %v891 = vrcp.pop %v827
    %v892 = vrcp.pop %v828
    %v893 = vrcp.pop %v829
    %v894 = vrcp.pop %v830
    %v895 = vrcp.pop %v831
    %v896 = vrcp.pop %v832
    %v897 = vrcp.pop %v833
    %v898 = vrcp.pop %v834
    %v899 = vrcp.pop %v835
    %v900 = vrcp.pop %v836
    %v901 = vrcp.pop %v837
    %v902 = vrcp.pop %v838
    %v903 = vrcp.pop %v839
    %v904 = vrcp.pop %v840
    %v905 = vrcp.pop %v841
    %v906 = vrcp.pop %v842
    %v907 = vrcp.pop %v843
    %v908 = vrcp.pop %v844
    %v909 = vrcp.pop %v845
    %v910 = vrcp.pop %v846
    %v911 = vrcp.pop %v847
    %v912 = vrcp.pop %v848
    %v913 = vrcp.pop %v849
    %v914 = vrcp.pop %v850
    %v915 = vrcp.pop %v851
    %v916 = vrcp.pop %v852
    %v917 = vrcp.pop %v853
    %v918 = vrcp.pop %v854
    %v919 = vmul.f32 %v791, %v855
    %v920 = vmul.f32 %v792, %v856
    %v921 = vmul.f32 %v793, %v857
    %v922 = vmul.f32 %v794, %v858
    %v923 = vmul.f32 %v795, %v859
    %v924 = vmul.f32 %v796, %v860
    %v925 = vmul.f32 %v797, %v861
    %v926 = vmul.f32 %v798, %v862
    %v927 = vmul.f32 %v799, %v863
    %v928 = vmul.f32 %v800, %v864
    %v929 = vmul.f32 %v801, %v865
    %v930 = vmul.f32 %v802, %v866
    %v931 = vmul.f32 %v803, %v867
    %v932 = vmul.f32 %v804, %v868
    %v933 = vmul.f32 %v805, %v869
    %v934 = vmul.f32 %v806, %v870
    %v935 = vmul.f32 %v807, %v871
    %v936 = vmul.f32 %v808, %v872
    %v937 = vmul.f32 %v809, %v873
    %v938 = vmul.f32 %v810, %v874
    %v939 = vmul.f32 %v811, %v875
    %v940 = vmul.f32 %v812, %v876
    %v941 = vmul.f32 %v813, %v877
    %v942 = vmul.f32 %v814, %v878
    %v943 = vmul.f32 %v815, %v879
    %v944 = vmul.f32 %v816, %v880
    %v945 = vmul.f32 %v817, %v881
    %v946 = vmul.f32 %v818, %v882
    %v947 = vmul.f32 %v819, %v883
    %v948 = vmul.f32 %v820, %v884
    %v949 = vmul.f32 %v821, %v885
    %v950 = vmul.f32 %v822, %v886
    %v951 = vmul.f32 %v823, %v887
    %v952 = vmul.f32 %v824, %v888
    %v953 = vmul.f32 %v825, %v889
    %v954 = vmul.f32 %v826, %v890
    %v955 = vmul.f32 %v827, %v891
    %v956 = vmul.f32 %v828, %v892
    %v957 = vmul.f32 %v829, %v893
    %v958 = vmul.f32 %v830, %v894
    %v959 = vmul.f32 %v831, %v895
    %v960 = vmul.f32 %v832, %v896
    %v961 = vmul.f32 %v833, %v897
    %v962 = vmul.f32 %v834, %v898
    %v963 = vmul.f32 %v835, %v899
    %v964 = vmul.f32 %v836, %v900
    %v965 = vmul.f32 %v837, %v901
    %v966 = vmul.f32 %v838, %v902
    %v967 = vmul.f32 %v839, %v903
    %v968 = vmul.f32 %v840, %v904
    %v969 = vmul.f32 %v841, %v905
    %v970 = vmul.f32 %v842, %v906
    %v971 = vmul.f32 %v843, %v907
    %v972 = vmul.f32 %v844, %v908
    %v973 = vmul.f32 %v845, %v909
    %v974 = vmul.f32 %v846, %v910
    %v975 = vmul.f32 %v847, %v911
    %v976 = vmul.f32 %v848, %v912
    %v977 = vmul.f32 %v849, %v913
    %v978 = vmul.f32 %v850, %v914
    %v979 = vmul.f32 %v851, %v915
    %v980 = vmul.f32 %v852, %v916
    %v981 = vmul.f32 %v853, %v917
    %v982 = vmul.f32 %v854, %v918
    %v983 = vsub.f32 2.0, %v919
    %v984 = vsub.f32 2.0, %v920
    %v985 = vsub.f32 2.0, %v921
    %v986 = vsub.f32 2.0, %v922
    %v987 = vsub.f32 2.0, %v923
    %v988 = vsub.f32 2.0, %v924
    %v989 = vsub.f32 2.0, %v925
    %v990 = vsub.f32 2.0, %v926
    %v991 = vsub.f32 2.0, %v927
    %v992 = vsub.f32 2.0, %v928
    %v993 = vsub.f32 2.0, %v929
    %v994 = vsub.f32 2.0, %v930
    %v995 = vsub.f32 2.0, %v931
    %v996 = vsub.f32 2.0, %v932
    %v997 = vsub.f32 2.0, %v933
    %v998 = vsub.f32 2.0, %v934
    %v999 = vsub.f32 2.0, %v935
    %v1000 = vsub.f32 2.0, %v936
    %v1001 = vsub.f32 2.0, %v937
    %v1002 = vsub.f32 2.0, %v938
    %v1003 = vsub.f32 2.0, %v939
    %v1004 = vsub.f32 2.0, %v940
    %v1005 = vsub.f32 2.0, %v941
    %v1006 = vsub.f32 2.0, %v942
    %v1007 = vsub.f32 2.0, %v943
    %v1008 = vsub.f32 2.0, %v944
    %v1009 = vsub.f32 2.0, %v945
    %v1010 = vsub.f32 2.0, %v946
    %v1011 = vsub.f32 2.0, %v947
    %v1012 = vsub.f32 2.0, %v948
    %v1013 = vsub.f32 2.0, %v949
    %v1014 = vsub.f32 2.0, %v950
    %v1015 = vsub.f32 2.0, %v951
    %v1016 = vsub.f32 2.0, %v952
    %v1017 = vsub.f32 2.0, %v953
    %v1018 = vsub.f32 2.0, %v954
    %v1019 = vsub.f32 2.0, %v955
    %v1020 = vsub.f32 2.0, %v956
    %v1021 = vsub.f32 2.0, %v957
    %v1022 = vsub.f32 2.0, %v958
    %v1023 = vsub.f32 2.0, %v959
    %v1024 = vsub.f32 2.0, %v960
    %v1025 = vsub.f32 2.0, %v961
    %v1026 = vsub.f32 2.0, %v962
    %v1027 = vsub.f32 2.0, %v963
    %v1028 = vsub.f32 2.0, %v964
    %v1029 = vsub.f32 2.0, %v965
    %v1030 = vsub.f32 2.0, %v966
    %v1031 = vsub.f32 2.0, %v967
    %v1032 = vsub.f32 2.0, %v968
    %v1033 = vsub.f32 2.0, %v969
    %v1034 = vsub.f32 2.0, %v970
    %v1035 = vsub.f32 2.0, %v971
    %v1036 = vsub.f32 2.0, %v972
    %v1037 = vsub.f32 2.0, %v973
    %v1038 = vsub.f32 2.0, %v974
    %v1039 = vsub.f32 2.0, %v975
    %v1040 = vsub.f32 2.0, %v976
    %v1041 = vsub.f32 2.0, %v977
    %v1042 = vsub.f32 2.0, %v978
    %v1043 = vsub.f32 2.0, %v979
    %v1044 = vsub.f32 2.0, %v980
    %v1045 = vsub.f32 2.0, %v981
    %v1046 = vsub.f32 2.0, %v982
    %v1047 = vmul.f32 %v855, %v983
    %v1048 = vmul.f32 %v856, %v984
    %v1049 = vmul.f32 %v857, %v985
    %v1050 = vmul.f32 %v858, %v986
    %v1051 = vmul.f32 %v859, %v987
    %v1052 = vmul.f32 %v860, %v988
    %v1053 = vmul.f32 %v861, %v989
    %v1054 = vmul.f32 %v862, %v990
    %v1055 = vmul.f32 %v863, %v991
    %v1056 = vmul.f32 %v864, %v992
    %v1057 = vmul.f32 %v865, %v993
    %v1058 = vmul.f32 %v866, %v994
    %v1059 = vmul.f32 %v867, %v995
    %v1060 = vmul.f32 %v868, %v996
    %v1061 = vmul.f32 %v869, %v997
    %v1062 = vmul.f32 %v870, %v998
    %v1063 = vmul.f32 %v871, %v999
    %v1064 = vmul.f32 %v872, %v1000
    %v1065 = vmul.f32 %v873, %v1001
    %v1066 = vmul.f32 %v874, %v1002
    %v1067 = vmul.f32 %v875, %v1003
    %v1068 = vmul.f32 %v876, %v1004
    %v1069 = vmul.f32 %v877, %v1005
    %v1070 = vmul.f32 %v878, %v1006
    %v1071 = vmul.f32 %v879, %v1007
    %v1072 = vmul.f32 %v880, %v1008
    %v1073 = vmul.f32 %v881, %v1009
    %v1074 = vmul.f32 %v882, %v1010
    %v1075 = vmul.f32 %v883, %v1011
    %v1076 = vmul.f32 %v884, %v1012
    %v1077 = vmul.f32 %v885, %v1013
    %v1078 = vmul.f32 %v886, %v1014
    %v1079 = vmul.f32 %v887, %v1015
    %v1080 = vmul.f32 %v888, %v1016
    %v1081 = vmul.f32 %v889, %v1017
    %v1082 = vmul.f32 %v890, %v1018
    %v1083 = vmul.f32 %v891, %v1019
    %v1084 = vmul.f32 %v892, %v1020
    %v1085 = vmul.f32 %v893, %v1021
    %v1086 = vmul.f32 %v894, %v1022
    %v1087 = vmul.f32 %v895, %v1023
    %v1088 = vmul.f32 %v896, %v1024
    %v1089 = vmul.f32 %v897, %v1025
    %v1090 = vmul.f32 %v898, %v1026
    %v1091 = vmul.f32 %v899, %v1027
    %v1092 = vmul.f32 %v900, %v1028
    %v1093 = vmul.f32 %v901, %v1029
    %v1094 = vmul.f32 %v902, %v1030
    %v1095 = vmul.f32 %v903, %v1031
    %v1096 = vmul.f32 %v904, %v1032
    %v1097 = vmul.f32 %v905, %v1033
    %v1098 = vmul.f32 %v906, %v1034
    %v1099 = vmul.f32 %v907, %v1035
    %v1100 = vmul.f32 %v908, %v1036
    %v1101 = vmul.f32 %v909, %v1037
    %v1102 = vmul.f32 %v910, %v1038
    %v1103 = vmul.f32 %v911, %v1039
    %v1104 = vmul.f32 %v912, %v1040
    %v1105 = vmul.f32 %v913, %v1041
    %v1106 = vmul.f32 %v914, %v1042
    %v1107 = vmul.f32 %v915, %v1043
    %v1108 = vmul.f32 %v916, %v1044
    %v1109 = vmul.f32 %v917, %v1045
    %v1110 = vmul.f32 %v918, %v1046
    %1111 = vmatprep.subr.mxu0 0.0
    %1112 = vmatpush1.msra.mxu0 %v70
    %1113 = vmatprep.subr.mxu0 0.0
    %1114 = vmatpush1.msra.mxu0 %v69
    %1115 = vmatprep.subr.mxu0 0.0
    %1116 = vmatpush1.msra.mxu0 %v68
    %1117 = vmatprep.subr.mxu0 0.0
    %1118 = vmatpush1.msra.mxu0 %v67
    %1119 = vmatprep.subr.mxu0 0.0
    %1120 = vmatpush1.msra.mxu0 %v66
    %1121 = vmatprep.subr.mxu0 0.0
    %1122 = vmatpush1.msra.mxu0 %v65
    %1123 = vmatprep.subr.mxu0 0.0
    %1124 = vmatpush1.msra.mxu0 %v64
    %1125 = vmatprep.subr.mxu0 0.0
    %1126 = vmatpush1.msra.mxu0 %v63
    %1127 = vmatprep.subr.mxu0 0.0
    %1128 = vmatpush1.msra.mxu0 %v62
    %1129 = vmatprep.subr.mxu0 0.0
    %1130 = vmatpush1.msra.mxu0 %v61
    %1131 = vmatprep.subr.mxu0 0.0
    %1132 = vmatpush1.msra.mxu0 %v60
    %1133 = vmatprep.subr.mxu0 0.0
    %1134 = vmatpush1.msra.mxu0 %v59
    %1135 = vmatprep.subr.mxu0 0.0
    %1136 = vmatpush1.msra.mxu0 %v58
    %1137 = vmatprep.subr.mxu0 0.0
    %1138 = vmatpush1.msra.mxu0 %v57
    %1139 = vmatprep.subr.mxu0 0.0
    %1140 = vmatpush1.msra.mxu0 %v56
    %1141 = vmatprep.subr.mxu0 0.0
    %1142 = vmatpush1.msra.mxu0 %v55
    %1143 = vmatprep.subr.mxu0 0.0
    %1144 = vmatpush2.msra.mxu0 %v86
    %1145 = vmatprep.subr.mxu0 0.0
    %1146 = vmatpush2.msra.mxu0 %v85
    %1147 = vmatprep.subr.mxu0 0.0
    %1148 = vmatpush2.msra.mxu0 %v84
    %1149 = vmatprep.subr.mxu0 0.0
    %1150 = vmatpush2.msra.mxu0 %v83
    %1151 = vmatprep.subr.mxu0 0.0
    %1152 = vmatpush2.msra.mxu0 %v82
    %1153 = vmatprep.subr.mxu0 0.0
    %1154 = vmatpush2.msra.mxu0 %v81
    %1155 = vmatprep.subr.mxu0 0.0
    %1156 = vmatpush2.msra.mxu0 %v80
    %1157 = vmatprep.subr.mxu0 0.0
    %1158 = vmatpush2.msra.mxu0 %v79
    %1159 = vmatprep.subr.mxu0 0.0
    %1160 = vmatpush2.msra.mxu0 %v78
    %1161 = vmatprep.subr.mxu0 0.0
    %1162 = vmatpush2.msra.mxu0 %v77
    %1163 = vmatprep.subr.mxu0 0.0
    %1164 = vmatpush2.msra.mxu0 %v76
    %1165 = vmatprep.subr.mxu0 0.0
    %1166 = vmatpush2.msra.mxu0 %v75
    %1167 = vmatprep.subr.mxu0 0.0
    %1168 = vmatpush2.msra.mxu0 %v74
    %1169 = vmatprep.subr.mxu0 0.0
    %1170 = vmatpush2.msra.mxu0 %v73
    %1171 = vmatprep.subr.mxu0 0.0
    %1172 = vmatpush2.msra.mxu0 %v72
    %1173 = vmatprep.subr.mxu0 0.0
    %1174 = vmatpush2.msra.mxu0 %v71
    %1175 = vmatprep.mubr.f32.mxu0 %v344
    %1176 = vmatmul.mubr.f32.gmra.mxu0 %v343
    %v1177 = vpop.f32.mrf.mxu0
    %v1178 = vadd.f32 0.0, %v1177
    %v1179 = vpop.f32.mrf.mxu0
    %1180 = vmatprep.mubr.f32.mxu0 %v346
    %1181 = vmatmul.mubr.f32.gmra.mxu0 %v345
    %v1182 = vpop.f32.mrf.mxu0
    %v1183 = vadd.f32 0.0, %v1182
    %v1184 = vpop.f32.mrf.mxu0
    %1185 = vmatprep.mubr.f32.mxu0 %v348
    %1186 = vmatmul.mubr.f32.gmra.mxu0 %v347
    %v1187 = vpop.f32.mrf.mxu0
    %v1188 = vadd.f32 0.0, %v1187
    %v1189 = vpop.f32.mrf.mxu0
    %1190 = vmatprep.mubr.f32.mxu0 %v350
    %1191 = vmatmul.mubr.f32.gmra.mxu0 %v349
    %v1192 = vpop.f32.mrf.mxu0
    %v1193 = vadd.f32 0.0, %v1192
    %v1194 = vpop.f32.mrf.mxu0
    %1195 = vmatprep.mubr.f32.mxu0 %v352
    %1196 = vmatmul.mubr.f32.gmra.mxu0 %v351
    %v1197 = vpop.f32.mrf.mxu0
    %v1198 = vadd.f32 0.0, %v1197
    %v1199 = vpop.f32.mrf.mxu0
    %1200 = vmatprep.mubr.f32.mxu0 %v354
    %1201 = vmatmul.mubr.f32.gmra.mxu0 %v353
    %v1202 = vpop.f32.mrf.mxu0
    %v1203 = vadd.f32 0.0, %v1202
    %v1204 = vpop.f32.mrf.mxu0
    %1205 = vmatprep.mubr.f32.mxu0 %v356
    %1206 = vmatmul.mubr.f32.gmra.mxu0 %v355
    %v1207 = vpop.f32.mrf.mxu0
    %v1208 = vadd.f32 0.0, %v1207
    %v1209 = vpop.f32.mrf.mxu0
    %1210 = vmatprep.mubr.f32.mxu0 %v358
    %1211 = vmatmul.mubr.f32.gmra.mxu0 %v357
    %v1212 = vpop.f32.mrf.mxu0
    %v1213 = vadd.f32 0.0, %v1212
    %v1214 = vpop.f32.mrf.mxu0
    %1215 = vmatprep.mubr.f32.mxu0 %v360
    %1216 = vmatmul.mubr.f32.gmra.mxu0 %v359
    %v1217 = vpop.f32.mrf.mxu0
    %v1218 = vadd.f32 0.0, %v1217
    %v1219 = vpop.f32.mrf.mxu0
    %1220 = vmatprep.mubr.f32.mxu0 %v362
    %1221 = vmatmul.mubr.f32.gmra.mxu0 %v361
    %v1222 = vpop.f32.mrf.mxu0
    %v1223 = vadd.f32 0.0, %v1222
    %v1224 = vpop.f32.mrf.mxu0
    %1225 = vmatprep.mubr.f32.mxu0 %v364
    %1226 = vmatmul.mubr.f32.gmra.mxu0 %v363
    %v1227 = vpop.f32.mrf.mxu0
    %v1228 = vadd.f32 0.0, %v1227
    %v1229 = vpop.f32.mrf.mxu0
    %1230 = vmatprep.mubr.f32.mxu0 %v366
    %1231 = vmatmul.mubr.f32.gmra.mxu0 %v365
    %v1232 = vpop.f32.mrf.mxu0
    %v1233 = vadd.f32 0.0, %v1232
    %v1234 = vpop.f32.mrf.mxu0
    %1235 = vmatprep.mubr.f32.mxu0 %v368
    %1236 = vmatmul.mubr.f32.gmra.mxu0 %v367
    %v1237 = vpop.f32.mrf.mxu0
    %v1238 = vadd.f32 0.0, %v1237
    %v1239 = vpop.f32.mrf.mxu0
    %1240 = vmatprep.mubr.f32.mxu0 %v370
    %1241 = vmatmul.mubr.f32.gmra.mxu0 %v369
    %v1242 = vpop.f32.mrf.mxu0
    %v1243 = vadd.f32 0.0, %v1242
    %v1244 = vpop.f32.mrf.mxu0
    %1245 = vmatprep.mubr.f32.mxu0 %v372
    %1246 = vmatmul.mubr.f32.gmra.mxu0 %v371
    %v1247 = vpop.f32.mrf.mxu0
    %v1248 = vadd.f32 0.0, %v1247
    %v1249 = vpop.f32.mrf.mxu0
    %1250 = vmatprep.mubr.f32.mxu0 %v374
    %1251 = vmatmul.mubr.f32.gmra.mxu0 %v373
    %v1252 = vpop.f32.mrf.mxu0
    %v1253 = vadd.f32 0.0, %v1252
    %v1254 = vpop.f32.mrf.mxu0
    %1255 = vmatprep.mubr.f32.mxu0 %v376
    %1256 = vmatmul.mubr.f32.gmra.mxu0 %v375
    %v1257 = vpop.f32.mrf.mxu0
    %v1258 = vadd.f32 0.0, %v1257
    %v1259 = vpop.f32.mrf.mxu0
    %1260 = vmatprep.mubr.f32.mxu0 %v378
    %1261 = vmatmul.mubr.f32.gmra.mxu0 %v377
    %v1262 = vpop.f32.mrf.mxu0
    %v1263 = vadd.f32 0.0, %v1262
    %v1264 = vpop.f32.mrf.mxu0
    %1265 = vmatprep.mubr.f32.mxu0 %v380
    %1266 = vmatmul.mubr.f32.gmra.mxu0 %v379
    %v1267 = vpop.f32.mrf.mxu0
    %v1268 = vadd.f32 0.0, %v1267
    %v1269 = vpop.f32.mrf.mxu0
    %1270 = vmatprep.mubr.f32.mxu0 %v382
    %1271 = vmatmul.mubr.f32.gmra.mxu0 %v381
    %v1272 = vpop.f32.mrf.mxu0
    %v1273 = vadd.f32 0.0, %v1272
    %v1274 = vpop.f32.mrf.mxu0
    %1275 = vmatprep.mubr.f32.mxu0 %v384
    %1276 = vmatmul.mubr.f32.gmra.mxu0 %v383
    %v1277 = vpop.f32.mrf.mxu0
    %v1278 = vadd.f32 0.0, %v1277
    %v1279 = vpop.f32.mrf.mxu0
    %1280 = vmatprep.mubr.f32.mxu0 %v386
    %1281 = vmatmul.mubr.f32.gmra.mxu0 %v385
    %v1282 = vpop.f32.mrf.mxu0
    %v1283 = vadd.f32 0.0, %v1282
    %v1284 = vpop.f32.mrf.mxu0
    %1285 = vmatprep.mubr.f32.mxu0 %v388
    %1286 = vmatmul.mubr.f32.gmra.mxu0 %v387
    %v1287 = vpop.f32.mrf.mxu0
    %v1288 = vadd.f32 0.0, %v1287
    %v1289 = vpop.f32.mrf.mxu0
    %1290 = vmatprep.mubr.f32.mxu0 %v390
    %1291 = vmatmul.mubr.f32.gmra.mxu0 %v389
    %v1292 = vpop.f32.mrf.mxu0
    %v1293 = vadd.f32 0.0, %v1292
    %v1294 = vpop.f32.mrf.mxu0
    %1295 = vmatprep.mubr.f32.mxu0 %v392
    %1296 = vmatmul.mubr.f32.gmra.mxu0 %v391
    %v1297 = vpop.f32.mrf.mxu0
    %v1298 = vadd.f32 0.0, %v1297
    %v1299 = vpop.f32.mrf.mxu0
    %1300 = vmatprep.mubr.f32.mxu0 %v394
    %1301 = vmatmul.mubr.f32.gmra.mxu0 %v393
    %v1302 = vpop.f32.mrf.mxu0
    %v1303 = vadd.f32 0.0, %v1302
    %v1304 = vpop.f32.mrf.mxu0
    %1305 = vmatprep.mubr.f32.mxu0 %v396
    %1306 = vmatmul.mubr.f32.gmra.mxu0 %v395
    %v1307 = vpop.f32.mrf.mxu0
    %v1308 = vadd.f32 0.0, %v1307
    %v1309 = vpop.f32.mrf.mxu0
    %1310 = vmatprep.mubr.f32.mxu0 %v398
    %1311 = vmatmul.mubr.f32.gmra.mxu0 %v397
    %v1312 = vpop.f32.mrf.mxu0
    %v1313 = vadd.f32 0.0, %v1312
    %v1314 = vpop.f32.mrf.mxu0
    %1315 = vmatprep.mubr.f32.mxu0 %v400
    %1316 = vmatmul.mubr.f32.gmra.mxu0 %v399
    %v1317 = vpop.f32.mrf.mxu0
    %v1318 = vadd.f32 0.0, %v1317
    %v1319 = vpop.f32.mrf.mxu0
    %1320 = vmatprep.mubr.f32.mxu0 %v402
    %1321 = vmatmul.mubr.f32.gmra.mxu0 %v401
    %v1322 = vpop.f32.mrf.mxu0
    %v1323 = vadd.f32 0.0, %v1322
    %v1324 = vpop.f32.mrf.mxu0
    %1325 = vmatprep.mubr.f32.mxu0 %v404
    %1326 = vmatmul.mubr.f32.gmra.mxu0 %v403
    %v1327 = vpop.f32.mrf.mxu0
    %v1328 = vadd.f32 0.0, %v1327
    %v1329 = vpop.f32.mrf.mxu0
    %1330 = vmatprep.mubr.f32.mxu0 %v406
    %1331 = vmatmul.mubr.f32.gmra.mxu0 %v405
    %v1332 = vpop.f32.mrf.mxu0
    %v1333 = vadd.f32 0.0, %v1332
    %v1334 = vpop.f32.mrf.mxu0
    %1335 = vmatprep.mubr.f32.mxu0 %v408
    %1336 = vmatmul.mubr.f32.gmra.mxu0 %v407
    %v1337 = vpop.f32.mrf.mxu0
    %v1338 = vadd.f32 0.0, %v1337
    %v1339 = vpop.f32.mrf.mxu0
    %1340 = vmatprep.mubr.f32.mxu0 %v410
    %1341 = vmatmul.mubr.f32.gmra.mxu0 %v409
    %v1342 = vpop.f32.mrf.mxu0
    %v1343 = vadd.f32 0.0, %v1342
    %v1344 = vpop.f32.mrf.mxu0
    %1345 = vmatprep.mubr.f32.mxu0 %v412
    %1346 = vmatmul.mubr.f32.gmra.mxu0 %v411
    %v1347 = vpop.f32.mrf.mxu0
    %v1348 = vadd.f32 0.0, %v1347
    %v1349 = vpop.f32.mrf.mxu0
    %1350 = vmatprep.mubr.f32.mxu0 %v414
    %1351 = vmatmul.mubr.f32.gmra.mxu0 %v413
    %v1352 = vpop.f32.mrf.mxu0
    %v1353 = vadd.f32 0.0, %v1352
    %v1354 = vpop.f32.mrf.mxu0
    %1355 = vmatprep.mubr.f32.mxu0 %v416
    %1356 = vmatmul.mubr.f32.gmra.mxu0 %v415
    %v1357 = vpop.f32.mrf.mxu0
    %v1358 = vadd.f32 0.0, %v1357
    %v1359 = vpop.f32.mrf.mxu0
    %1360 = vmatprep.mubr.f32.mxu0 %v418
    %1361 = vmatmul.mubr.f32.gmra.mxu0 %v417
    %v1362 = vpop.f32.mrf.mxu0
    %v1363 = vadd.f32 0.0, %v1362
    %v1364 = vpop.f32.mrf.mxu0
    %1365 = vmatprep.mubr.f32.mxu0 %v420
    %1366 = vmatmul.mubr.f32.gmra.mxu0 %v419
    %v1367 = vpop.f32.mrf.mxu0
    %v1368 = vadd.f32 0.0, %v1367
    %v1369 = vpop.f32.mrf.mxu0
    %1370 = vmatprep.mubr.f32.mxu0 %v422
    %1371 = vmatmul.mubr.f32.gmra.mxu0 %v421
    %v1372 = vpop.f32.mrf.mxu0
    %v1373 = vadd.f32 0.0, %v1372
    %v1374 = vpop.f32.mrf.mxu0
    %1375 = vmatprep.mubr.f32.mxu0 %v424
    %1376 = vmatmul.mubr.f32.gmra.mxu0 %v423
    %v1377 = vpop.f32.mrf.mxu0
    %v1378 = vadd.f32 0.0, %v1377
    %v1379 = vpop.f32.mrf.mxu0
    %1380 = vmatprep.mubr.f32.mxu0 %v426
    %1381 = vmatmul.mubr.f32.gmra.mxu0 %v425
    %v1382 = vpop.f32.mrf.mxu0
    %v1383 = vadd.f32 0.0, %v1382
    %v1384 = vpop.f32.mrf.mxu0
    %1385 = vmatprep.mubr.f32.mxu0 %v428
    %1386 = vmatmul.mubr.f32.gmra.mxu0 %v427
    %v1387 = vpop.f32.mrf.mxu0
    %v1388 = vadd.f32 0.0, %v1387
    %v1389 = vpop.f32.mrf.mxu0
    %1390 = vmatprep.mubr.f32.mxu0 %v430
    %1391 = vmatmul.mubr.f32.gmra.mxu0 %v429
    %v1392 = vpop.f32.mrf.mxu0
    %v1393 = vadd.f32 0.0, %v1392
    %v1394 = vpop.f32.mrf.mxu0
    %1395 = vmatprep.mubr.f32.mxu0 %v432
    %1396 = vmatmul.mubr.f32.gmra.mxu0 %v431
    %v1397 = vpop.f32.mrf.mxu0
    %v1398 = vadd.f32 0.0, %v1397
    %v1399 = vpop.f32.mrf.mxu0
    %1400 = vmatprep.mubr.f32.mxu0 %v434
    %1401 = vmatmul.mubr.f32.gmra.mxu0 %v433
    %v1402 = vpop.f32.mrf.mxu0
    %v1403 = vadd.f32 0.0, %v1402
    %v1404 = vpop.f32.mrf.mxu0
    %1405 = vmatprep.mubr.f32.mxu0 %v436
    %1406 = vmatmul.mubr.f32.gmra.mxu0 %v435
    %v1407 = vpop.f32.mrf.mxu0
    %v1408 = vadd.f32 0.0, %v1407
    %v1409 = vpop.f32.mrf.mxu0
    %1410 = vmatprep.mubr.f32.mxu0 %v438
    %1411 = vmatmul.mubr.f32.gmra.mxu0 %v437
    %v1412 = vpop.f32.mrf.mxu0
    %v1413 = vadd.f32 0.0, %v1412
    %v1414 = vpop.f32.mrf.mxu0
    %1415 = vmatprep.mubr.f32.mxu0 %v440
    %1416 = vmatmul.mubr.f32.gmra.mxu0 %v439
    %v1417 = vpop.f32.mrf.mxu0
    %v1418 = vadd.f32 0.0, %v1417
    %v1419 = vpop.f32.mrf.mxu0
    %1420 = vmatprep.mubr.f32.mxu0 %v442
    %1421 = vmatmul.mubr.f32.gmra.mxu0 %v441
    %v1422 = vpop.f32.mrf.mxu0
    %v1423 = vadd.f32 0.0, %v1422
    %v1424 = vpop.f32.mrf.mxu0
    %1425 = vmatprep.mubr.f32.mxu0 %v444
    %1426 = vmatmul.mubr.f32.gmra.mxu0 %v443
    %v1427 = vpop.f32.mrf.mxu0
    %v1428 = vadd.f32 0.0, %v1427
    %v1429 = vpop.f32.mrf.mxu0
    %1430 = vmatprep.mubr.f32.mxu0 %v446
    %1431 = vmatmul.mubr.f32.gmra.mxu0 %v445
    %v1432 = vpop.f32.mrf.mxu0
    %v1433 = vadd.f32 0.0, %v1432
    %v1434 = vpop.f32.mrf.mxu0
    %1435 = vmatprep.mubr.f32.mxu0 %v448
    %1436 = vmatmul.mubr.f32.gmra.mxu0 %v447
    %v1437 = vpop.f32.mrf.mxu0
    %v1438 = vadd.f32 0.0, %v1437
    %v1439 = vpop.f32.mrf.mxu0
    %1440 = vmatprep.mubr.f32.mxu0 %v450
    %1441 = vmatmul.mubr.f32.gmra.mxu0 %v449
    %v1442 = vpop.f32.mrf.mxu0
    %v1443 = vadd.f32 0.0, %v1442
    %v1444 = vpop.f32.mrf.mxu0
    %1445 = vmatprep.mubr.f32.mxu0 %v452
    %1446 = vmatmul.mubr.f32.gmra.mxu0 %v451
    %v1447 = vpop.f32.mrf.mxu0
    %v1448 = vadd.f32 0.0, %v1447
    %v1449 = vpop.f32.mrf.mxu0
    %1450 = vmatprep.mubr.f32.mxu0 %v454
    %1451 = vmatmul.mubr.f32.gmra.mxu0 %v453
    %v1452 = vpop.f32.mrf.mxu0
    %v1453 = vadd.f32 0.0, %v1452
    %v1454 = vpop.f32.mrf.mxu0
    %1455 = vmatprep.mubr.f32.mxu0 %v456
    %1456 = vmatmul.mubr.f32.gmra.mxu0 %v455
    %v1457 = vpop.f32.mrf.mxu0
    %v1458 = vadd.f32 0.0, %v1457
    %v1459 = vpop.f32.mrf.mxu0
    %1460 = vmatprep.mubr.f32.mxu0 %v458
    %1461 = vmatmul.mubr.f32.gmra.mxu0 %v457
    %v1462 = vpop.f32.mrf.mxu0
    %v1463 = vadd.f32 0.0, %v1462
    %v1464 = vpop.f32.mrf.mxu0
    %1465 = vmatprep.mubr.f32.mxu0 %v460
    %1466 = vmatmul.mubr.f32.gmra.mxu0 %v459
    %v1467 = vpop.f32.mrf.mxu0
    %v1468 = vadd.f32 0.0, %v1467
    %v1469 = vpop.f32.mrf.mxu0
    %1470 = vmatprep.mubr.f32.mxu0 %v462
    %1471 = vmatmul.mubr.f32.gmra.mxu0 %v461
    %v1472 = vpop.f32.mrf.mxu0
    %v1473 = vadd.f32 0.0, %v1472
    %v1474 = vpop.f32.mrf.mxu0
    %1475 = vmatprep.mubr.f32.mxu0 %v464
    %1476 = vmatmul.mubr.f32.gmra.mxu0 %v463
    %v1477 = vpop.f32.mrf.mxu0
    %v1478 = vadd.f32 0.0, %v1477
    %v1479 = vpop.f32.mrf.mxu0
    %1480 = vmatprep.mubr.f32.mxu0 %v466
    %1481 = vmatmul.mubr.f32.gmra.mxu0 %v465
    %v1482 = vpop.f32.mrf.mxu0
    %v1483 = vadd.f32 0.0, %v1482
    %v1484 = vpop.f32.mrf.mxu0
    %1485 = vmatprep.mubr.f32.mxu0 %v468
    %1486 = vmatmul.mubr.f32.gmra.mxu0 %v467
    %v1487 = vpop.f32.mrf.mxu0
    %v1488 = vadd.f32 0.0, %v1487
    %v1489 = vpop.f32.mrf.mxu0
    %1490 = vmatprep.mubr.f32.mxu0 %v470
    %1491 = vmatmul.mubr.f32.gmra.mxu0 %v469
    %v1492 = vpop.f32.mrf.mxu0
    %v1493 = vadd.f32 0.0, %v1492
    %v1494 = vpop.f32.mrf.mxu0
    %1495 = vdwg.mxu0
    %v1496 = vmul.f32 %v1178, %v1047
    %v1497 = vmul.f32 %v1183, %v1048
    %v1498 = vmul.f32 %v1188, %v1049
    %v1499 = vmul.f32 %v1193, %v1050
    %v1500 = vmul.f32 %v1198, %v1051
    %v1501 = vmul.f32 %v1203, %v1052
    %v1502 = vmul.f32 %v1208, %v1053
    %v1503 = vmul.f32 %v1213, %v1054
    %v1504 = vmul.f32 %v1218, %v1055
    %v1505 = vmul.f32 %v1223, %v1056
    %v1506 = vmul.f32 %v1228, %v1057
    %v1507 = vmul.f32 %v1233, %v1058
    %v1508 = vmul.f32 %v1238, %v1059
    %v1509 = vmul.f32 %v1243, %v1060
    %v1510 = vmul.f32 %v1248, %v1061
    %v1511 = vmul.f32 %v1253, %v1062
    %v1512 = vmul.f32 %v1258, %v1063
    %v1513 = vmul.f32 %v1263, %v1064
    %v1514 = vmul.f32 %v1268, %v1065
    %v1515 = vmul.f32 %v1273, %v1066
    %v1516 = vmul.f32 %v1278, %v1067
    %v1517 = vmul.f32 %v1283, %v1068
    %v1518 = vmul.f32 %v1288, %v1069
    %v1519 = vmul.f32 %v1293, %v1070
    %v1520 = vmul.f32 %v1298, %v1071
    %v1521 = vmul.f32 %v1303, %v1072
    %v1522 = vmul.f32 %v1308, %v1073
    %v1523 = vmul.f32 %v1313, %v1074
    %v1524 = vmul.f32 %v1318, %v1075
    %v1525 = vmul.f32 %v1323, %v1076
    %v1526 = vmul.f32 %v1328, %v1077
    %v1527 = vmul.f32 %v1333, %v1078
    %v1528 = vmul.f32 %v1338, %v1079
    %v1529 = vmul.f32 %v1343, %v1080
    %v1530 = vmul.f32 %v1348, %v1081
    %v1531 = vmul.f32 %v1353, %v1082
    %v1532 = vmul.f32 %v1358, %v1083
    %v1533 = vmul.f32 %v1363, %v1084
    %v1534 = vmul.f32 %v1368, %v1085
    %v1535 = vmul.f32 %v1373, %v1086
    %v1536 = vmul.f32 %v1378, %v1087
    %v1537 = vmul.f32 %v1383, %v1088
    %v1538 = vmul.f32 %v1388, %v1089
    %v1539 = vmul.f32 %v1393, %v1090
    %v1540 = vmul.f32 %v1398, %v1091
    %v1541 = vmul.f32 %v1403, %v1092
    %v1542 = vmul.f32 %v1408, %v1093
    %v1543 = vmul.f32 %v1413, %v1094
    %v1544 = vmul.f32 %v1418, %v1095
    %v1545 = vmul.f32 %v1423, %v1096
    %v1546 = vmul.f32 %v1428, %v1097
    %v1547 = vmul.f32 %v1433, %v1098
    %v1548 = vmul.f32 %v1438, %v1099
    %v1549 = vmul.f32 %v1443, %v1100
    %v1550 = vmul.f32 %v1448, %v1101
    %v1551 = vmul.f32 %v1453, %v1102
    %v1552 = vmul.f32 %v1458, %v1103
    %v1553 = vmul.f32 %v1463, %v1104
    %v1554 = vmul.f32 %v1468, %v1105
    %v1555 = vmul.f32 %v1473, %v1106
    %v1556 = vmul.f32 %v1478, %v1107
    %v1557 = vmul.f32 %v1483, %v1108
    %v1558 = vmul.f32 %v1488, %v1109
    %v1559 = vmul.f32 %v1493, %v1110
    %1592 = vrot.lane.b32.xlu0 %v1496, 32
    %v1593 = vpop.permute.xlu0 %1592
    %1594 = vrot.lane.b32.xlu0 %v1497, 32
    %v1595 = vpop.permute.xlu0 %1594
    %1596 = vrot.lane.b32.xlu0 %v1498, 32
    %v1597 = vpop.permute.xlu0 %1596
    %1598 = vrot.lane.b32.xlu0 %v1499, 32
    %v1599 = vpop.permute.xlu0 %1598
    %1600 = vrot.lane.b32.xlu0 %v1500, 32
    %v1601 = vpop.permute.xlu0 %1600
    %1602 = vrot.lane.b32.xlu0 %v1501, 32
    %v1603 = vpop.permute.xlu0 %1602
    %1604 = vrot.lane.b32.xlu0 %v1502, 32
    %v1605 = vpop.permute.xlu0 %1604
    %1606 = vrot.lane.b32.xlu0 %v1503, 32
    %v1607 = vpop.permute.xlu0 %1606
    %1608 = vrot.lane.b32.xlu0 %v1504, 32
    %v1609 = vpop.permute.xlu0 %1608
    %1610 = vrot.lane.b32.xlu0 %v1505, 32
    %v1611 = vpop.permute.xlu0 %1610
    %1612 = vrot.lane.b32.xlu0 %v1506, 32
    %v1613 = vpop.permute.xlu0 %1612
    %1614 = vrot.lane.b32.xlu0 %v1507, 32
    %v1615 = vpop.permute.xlu0 %1614
    %1616 = vrot.lane.b32.xlu0 %v1508, 32
    %v1617 = vpop.permute.xlu0 %1616
    %1618 = vrot.lane.b32.xlu0 %v1509, 32
    %v1619 = vpop.permute.xlu0 %1618
    %1620 = vrot.lane.b32.xlu0 %v1510, 32
    %v1621 = vpop.permute.xlu0 %1620
    %1622 = vrot.lane.b32.xlu0 %v1511, 32
    %v1623 = vpop.permute.xlu0 %1622
    %1624 = vrot.lane.b32.xlu0 %v1512, 32
    %v1625 = vpop.permute.xlu0 %1624
    %1626 = vrot.lane.b32.xlu0 %v1513, 32
    %v1627 = vpop.permute.xlu0 %1626
    %1628 = vrot.lane.b32.xlu0 %v1514, 32
    %v1629 = vpop.permute.xlu0 %1628
    %1630 = vrot.lane.b32.xlu0 %v1515, 32
    %v1631 = vpop.permute.xlu0 %1630
    %1632 = vrot.lane.b32.xlu0 %v1516, 32
    %v1633 = vpop.permute.xlu0 %1632
    %1634 = vrot.lane.b32.xlu0 %v1517, 32
    %v1635 = vpop.permute.xlu0 %1634
    %1636 = vrot.lane.b32.xlu0 %v1518, 32
    %v1637 = vpop.permute.xlu0 %1636
    %1638 = vrot.lane.b32.xlu0 %v1519, 32
    %v1639 = vpop.permute.xlu0 %1638
    %1640 = vrot.lane.b32.xlu0 %v1520, 32
    %v1641 = vpop.permute.xlu0 %1640
    %1642 = vrot.lane.b32.xlu0 %v1521, 32
    %v1643 = vpop.permute.xlu0 %1642
    %1644 = vrot.lane.b32.xlu0 %v1522, 32
    %v1645 = vpop.permute.xlu0 %1644
    %1646 = vrot.lane.b32.xlu0 %v1523, 32
    %v1647 = vpop.permute.xlu0 %1646
    %1648 = vrot.lane.b32.xlu0 %v1524, 32
    %v1649 = vpop.permute.xlu0 %1648
    %1650 = vrot.lane.b32.xlu0 %v1525, 32
    %v1651 = vpop.permute.xlu0 %1650
    %1652 = vrot.lane.b32.xlu0 %v1526, 32
    %v1653 = vpop.permute.xlu0 %1652
    %1654 = vrot.lane.b32.xlu0 %v1527, 32
    %v1655 = vpop.permute.xlu0 %1654
    %1720 = vrot.lane.b32.xlu0 %v1528, 64
    %v1721 = vpop.permute.xlu0 %1720
    %1722 = vrot.lane.b32.xlu0 %v1529, 64
    %v1723 = vpop.permute.xlu0 %1722
    %1724 = vrot.lane.b32.xlu0 %v1530, 64
    %v1725 = vpop.permute.xlu0 %1724
    %1726 = vrot.lane.b32.xlu0 %v1531, 64
    %v1727 = vpop.permute.xlu0 %1726
    %1728 = vrot.lane.b32.xlu0 %v1532, 64
    %v1729 = vpop.permute.xlu0 %1728
    %1730 = vrot.lane.b32.xlu0 %v1533, 64
    %v1731 = vpop.permute.xlu0 %1730
    %1732 = vrot.lane.b32.xlu0 %v1534, 64
    %v1733 = vpop.permute.xlu0 %1732
    %1734 = vrot.lane.b32.xlu0 %v1535, 64
    %v1735 = vpop.permute.xlu0 %1734
    %1736 = vrot.lane.b32.xlu0 %v1536, 64
    %v1737 = vpop.permute.xlu0 %1736
    %1738 = vrot.lane.b32.xlu0 %v1537, 64
    %v1739 = vpop.permute.xlu0 %1738
    %1740 = vrot.lane.b32.xlu0 %v1538, 64
    %v1741 = vpop.permute.xlu0 %1740
    %1742 = vrot.lane.b32.xlu0 %v1539, 64
    %v1743 = vpop.permute.xlu0 %1742
    %1744 = vrot.lane.b32.xlu0 %v1540, 64
    %v1745 = vpop.permute.xlu0 %1744
    %1746 = vrot.lane.b32.xlu0 %v1541, 64
    %v1747 = vpop.permute.xlu0 %1746
    %1748 = vrot.lane.b32.xlu0 %v1542, 64
    %v1749 = vpop.permute.xlu0 %1748
    %1750 = vrot.lane.b32.xlu0 %v1543, 64
    %v1751 = vpop.permute.xlu0 %1750
    %1752 = vrot.lane.b32.xlu0 %v1544, 64
    %v1753 = vpop.permute.xlu0 %1752
    %1754 = vrot.lane.b32.xlu0 %v1545, 64
    %v1755 = vpop.permute.xlu0 %1754
    %1756 = vrot.lane.b32.xlu0 %v1546, 64
    %v1757 = vpop.permute.xlu0 %1756
    %1758 = vrot.lane.b32.xlu0 %v1547, 64
    %v1759 = vpop.permute.xlu0 %1758
    %1760 = vrot.lane.b32.xlu0 %v1548, 64
    %v1761 = vpop.permute.xlu0 %1760
    %1762 = vrot.lane.b32.xlu0 %v1549, 64
    %v1763 = vpop.permute.xlu0 %1762
    %1764 = vrot.lane.b32.xlu0 %v1550, 64
    %v1765 = vpop.permute.xlu0 %1764
    %1766 = vrot.lane.b32.xlu0 %v1551, 64
    %v1767 = vpop.permute.xlu0 %1766
    %1768 = vrot.lane.b32.xlu0 %v1552, 64
    %v1769 = vpop.permute.xlu0 %1768
    %1770 = vrot.lane.b32.xlu0 %v1553, 64
    %v1771 = vpop.permute.xlu0 %1770
    %1772 = vrot.lane.b32.xlu0 %v1554, 64
    %v1773 = vpop.permute.xlu0 %1772
    %1774 = vrot.lane.b32.xlu0 %v1555, 64
    %v1775 = vpop.permute.xlu0 %1774
    %1776 = vrot.lane.b32.xlu0 %v1556, 64
    %v1777 = vpop.permute.xlu0 %1776
    %1778 = vrot.lane.b32.xlu0 %v1557, 64
    %v1779 = vpop.permute.xlu0 %1778
    %1780 = vrot.lane.b32.xlu0 %v1558, 64
    %v1781 = vpop.permute.xlu0 %1780
    %1782 = vrot.lane.b32.xlu0 %v1559, 64
    %v1783 = vpop.permute.xlu0 %1782
    %vm1816 = vcmask 261120
    %v1817 = vsel %vm1816, %v55, %v1593
    %v1818 = vsel %vm1816, %v56, %v1595
    %v1819 = vsel %vm1816, %v57, %v1597
    %v1820 = vsel %vm1816, %v58, %v1599
    %v1821 = vsel %vm1816, %v59, %v1601
    %v1822 = vsel %vm1816, %v60, %v1603
    %v1823 = vsel %vm1816, %v61, %v1605
    %v1824 = vsel %vm1816, %v62, %v1607
    %v1825 = vsel %vm1816, %v63, %v1609
    %v1826 = vsel %vm1816, %v64, %v1611
    %v1827 = vsel %vm1816, %v65, %v1613
    %v1828 = vsel %vm1816, %v66, %v1615
    %v1829 = vsel %vm1816, %v67, %v1617
    %v1830 = vsel %vm1816, %v68, %v1619
    %v1831 = vsel %vm1816, %v69, %v1621
    %v1832 = vsel %vm1816, %v70, %v1623
    %v1833 = vsel %vm1816, %v71, %v1625
    %v1834 = vsel %vm1816, %v72, %v1627
    %v1835 = vsel %vm1816, %v73, %v1629
    %v1836 = vsel %vm1816, %v74, %v1631
    %v1837 = vsel %vm1816, %v75, %v1633
    %v1838 = vsel %vm1816, %v76, %v1635
    %v1839 = vsel %vm1816, %v77, %v1637
    %v1840 = vsel %vm1816, %v78, %v1639
    %v1841 = vsel %vm1816, %v79, %v1641
    %v1842 = vsel %vm1816, %v80, %v1643
    %v1843 = vsel %vm1816, %v81, %v1645
    %v1844 = vsel %vm1816, %v82, %v1647
    %v1845 = vsel %vm1816, %v83, %v1649
    %v1846 = vsel %vm1816, %v84, %v1651
    %v1847 = vsel %vm1816, %v85, %v1653
    %v1848 = vsel %vm1816, %v86, %v1655
    %vm1849 = vcmask 523264
    %v1850 = vsel %vm1849, %v1817, %v1721
    %v1851 = vsel %vm1849, %v1818, %v1723
    %v1852 = vsel %vm1849, %v1819, %v1725
    %v1853 = vsel %vm1849, %v1820, %v1727
    %v1854 = vsel %vm1849, %v1821, %v1729
    %v1855 = vsel %vm1849, %v1822, %v1731
    %v1856 = vsel %vm1849, %v1823, %v1733
    %v1857 = vsel %vm1849, %v1824, %v1735
    %v1858 = vsel %vm1849, %v1825, %v1737
    %v1859 = vsel %vm1849, %v1826, %v1739
    %v1860 = vsel %vm1849, %v1827, %v1741
    %v1861 = vsel %vm1849, %v1828, %v1743
    %v1862 = vsel %vm1849, %v1829, %v1745
    %v1863 = vsel %vm1849, %v1830, %v1747
    %v1864 = vsel %vm1849, %v1831, %v1749
    %v1865 = vsel %vm1849, %v1832, %v1751
    %v1866 = vsel %vm1849, %v1833, %v1753
    %v1867 = vsel %vm1849, %v1834, %v1755
    %v1868 = vsel %vm1849, %v1835, %v1757
    %v1869 = vsel %vm1849, %v1836, %v1759
    %v1870 = vsel %vm1849, %v1837, %v1761
    %v1871 = vsel %vm1849, %v1838, %v1763
    %v1872 = vsel %vm1849, %v1839, %v1765
    %v1873 = vsel %vm1849, %v1840, %v1767
    %v1874 = vsel %vm1849, %v1841, %v1769
    %v1875 = vsel %vm1849, %v1842, %v1771
    %v1876 = vsel %vm1849, %v1843, %v1773
    %v1877 = vsel %vm1849, %v1844, %v1775
    %v1878 = vsel %vm1849, %v1845, %v1777
    %v1879 = vsel %vm1849, %v1846, %v1779
    %v1880 = vsel %vm1849, %v1847, %v1781
    %v1881 = vsel %vm1849, %v1848, %v1783
    %v1882 = vld [vmem:[%s3] sm:$0xff]
    %v1883 = vld [vmem:[%s3 + $0x8] sm:$0xff]
    %v1884 = vld [vmem:[%s3 + $0x10] sm:$0xff]
    %v1885 = vld [vmem:[%s3 + $0x18] sm:$0xff]
    %v1886 = vld [vmem:[%s3 + $0x20] sm:$0xff]
    %v1887 = vld [vmem:[%s3 + $0x28] sm:$0xff]
    %v1888 = vld [vmem:[%s3 + $0x30] sm:$0xff]
    %v1889 = vld [vmem:[%s3 + $0x38] sm:$0xff]
    %v1890 = vld [vmem:[%s3 + $0x40] sm:$0xff]
    %v1891 = vld [vmem:[%s3 + $0x48] sm:$0xff]
    %v1892 = vld [vmem:[%s3 + $0x50] sm:$0xff]
    %v1893 = vld [vmem:[%s3 + $0x58] sm:$0xff]
    %v1894 = vld [vmem:[%s4] sm:$0x1]
    %v1896 = vlaneseq
    %v1897 = vshrl.u32 %v1896, 7
    %v1898 = vsub.s32 0, %v1897
    %v1899 = vrot.slane %v1894, %v1898
    %vm1901 = vcmask 785408
    %v1903 = vsel %vm1901, %v1850, 0
    %v1906 = vsel %vm1901, %v1851, 0
    %v1909 = vsel %vm1901, %v1852, 0
    %v1912 = vsel %vm1901, %v1853, 0
    %v1915 = vsel %vm1901, %v1854, 0
    %v1918 = vsel %vm1901, %v1855, 0
    %v1921 = vsel %vm1901, %v1856, 0
    %v1924 = vsel %vm1901, %v1857, 0
    %v1927 = vsel %vm1901, %v1858, 0
    %v1930 = vsel %vm1901, %v1859, 0
    %v1933 = vsel %vm1901, %v1860, 0
    %v1936 = vsel %vm1901, %v1861, 0
    %v1939 = vsel %vm1901, %v1862, 0
    %v1942 = vsel %vm1901, %v1863, 0
    %v1945 = vsel %vm1901, %v1864, 0
    %v1948 = vsel %vm1901, %v1865, 0
    %v1951 = vsel %vm1901, %v1866, 0
    %v1954 = vsel %vm1901, %v1867, 0
    %v1957 = vsel %vm1901, %v1868, 0
    %v1960 = vsel %vm1901, %v1869, 0
    %v1963 = vsel %vm1901, %v1870, 0
    %v1966 = vsel %vm1901, %v1871, 0
    %v1969 = vsel %vm1901, %v1872, 0
    %v1972 = vsel %vm1901, %v1873, 0
    %v1975 = vsel %vm1901, %v1874, 0
    %v1978 = vsel %vm1901, %v1875, 0
    %v1981 = vsel %vm1901, %v1876, 0
    %v1984 = vsel %vm1901, %v1877, 0
    %v1987 = vsel %vm1901, %v1878, 0
    %v1990 = vsel %vm1901, %v1879, 0
    %v1993 = vsel %vm1901, %v1880, 0
    %v1996 = vsel %vm1901, %v1881, 0
    %1998 = vmatprep.subr.mxu0 0.0
    %1999 = vmatpush1.msra.mxu0 0.0
    %2000 = vmatprep.subr.mxu0 0.0
    %2001 = vmatpush1.msra.mxu0 0.0
    %2002 = vmatprep.subr.mxu0 0.0
    %2003 = vmatpush1.msra.mxu0 0.0
    %2004 = vmatprep.subr.mxu0 0.0
    %2005 = vmatpush1.msra.mxu0 0.0
    %2006 = vmatprep.subr.mxu0 0.0
    %2007 = vmatpush1.msra.mxu0 %v1893
    %2008 = vmatprep.subr.mxu0 0.0
    %2009 = vmatpush1.msra.mxu0 %v1892
    %2010 = vmatprep.subr.mxu0 0.0
    %2011 = vmatpush1.msra.mxu0 %v1891
    %2012 = vmatprep.subr.mxu0 0.0
    %2013 = vmatpush1.msra.mxu0 %v1890
    %2014 = vmatprep.subr.mxu0 0.0
    %2015 = vmatpush1.msra.mxu0 %v1889
    %2016 = vmatprep.subr.mxu0 0.0
    %2017 = vmatpush1.msra.mxu0 %v1888
    %2018 = vmatprep.subr.mxu0 0.0
    %2019 = vmatpush1.msra.mxu0 %v1887
    %2020 = vmatprep.subr.mxu0 0.0
    %2021 = vmatpush1.msra.mxu0 %v1886
    %2022 = vmatprep.subr.mxu0 0.0
    %2023 = vmatpush1.msra.mxu0 %v1885
    %2024 = vmatprep.subr.mxu0 0.0
    %2025 = vmatpush1.msra.mxu0 %v1884
    %2026 = vmatprep.subr.mxu0 0.0
    %2027 = vmatpush1.msra.mxu0 %v1883
    %2028 = vmatprep.subr.mxu0 0.0
    %2029 = vmatpush1.msra.mxu0 %v1882
    %2030 = vmatprep.subr.mxu0 0.0
    %2031 = vmatpush2.msra.mxu0 0.0
    %2032 = vmatprep.subr.mxu0 0.0
    %2033 = vmatpush2.msra.mxu0 0.0
    %2034 = vmatprep.subr.mxu0 0.0
    %2035 = vmatpush2.msra.mxu0 0.0
    %2036 = vmatprep.subr.mxu0 0.0
    %2037 = vmatpush2.msra.mxu0 0.0
    %2038 = vmatprep.subr.mxu0 0.0
    %2039 = vmatpush2.msra.mxu0 0.0
    %2040 = vmatprep.subr.mxu0 0.0
    %2041 = vmatpush2.msra.mxu0 0.0
    %2042 = vmatprep.subr.mxu0 0.0
    %2043 = vmatpush2.msra.mxu0 0.0
    %2044 = vmatprep.subr.mxu0 0.0
    %2045 = vmatpush2.msra.mxu0 0.0
    %2046 = vmatprep.subr.mxu0 0.0
    %2047 = vmatpush2.msra.mxu0 0.0
    %2048 = vmatprep.subr.mxu0 0.0
    %2049 = vmatpush2.msra.mxu0 0.0
    %2050 = vmatprep.subr.mxu0 0.0
    %2051 = vmatpush2.msra.mxu0 0.0
    %2052 = vmatprep.subr.mxu0 0.0
    %2053 = vmatpush2.msra.mxu0 0.0
    %2054 = vmatprep.subr.mxu0 0.0
    %2055 = vmatpush2.msra.mxu0 0.0
    %2056 = vmatprep.subr.mxu0 0.0
    %2057 = vmatpush2.msra.mxu0 0.0
    %2058 = vmatprep.subr.mxu0 0.0
    %2059 = vmatpush2.msra.mxu0 0.0
    %2060 = vmatprep.subr.mxu0 0.0
    %2061 = vmatpush2.msra.mxu0 0.0
    %2062 = vmatprep.mubr.f32.mxu0 0.0
    %2063 = vmatmul.mubr.f32.gmra.mxu0 %v1903
    %v2064 = vpop.f32.mrf.mxu0
    %v2065 = vadd.f32 %v1899, %v2064
    %v2066 = vpop.f32.mrf.mxu0
    %2067 = vmatprep.mubr.f32.mxu0 0.0
    %2068 = vmatmul.mubr.f32.gmra.mxu0 %v1906
    %v2069 = vpop.f32.mrf.mxu0
    %v2070 = vadd.f32 %v1899, %v2069
    %v2071 = vpop.f32.mrf.mxu0
    %2072 = vmatprep.mubr.f32.mxu0 0.0
    %2073 = vmatmul.mubr.f32.gmra.mxu0 %v1909
    %v2074 = vpop.f32.mrf.mxu0
    %v2075 = vadd.f32 %v1899, %v2074
    %v2076 = vpop.f32.mrf.mxu0
    %2077 = vmatprep.mubr.f32.mxu0 0.0
    %2078 = vmatmul.mubr.f32.gmra.mxu0 %v1912
    %v2079 = vpop.f32.mrf.mxu0
    %v2080 = vadd.f32 %v1899, %v2079
    %v2081 = vpop.f32.mrf.mxu0
    %2082 = vmatprep.mubr.f32.mxu0 0.0
    %2083 = vmatmul.mubr.f32.gmra.mxu0 %v1915
    %v2084 = vpop.f32.mrf.mxu0
    %v2085 = vadd.f32 %v1899, %v2084
    %v2086 = vpop.f32.mrf.mxu0
    %2087 = vmatprep.mubr.f32.mxu0 0.0
    %2088 = vmatmul.mubr.f32.gmra.mxu0 %v1918
    %v2089 = vpop.f32.mrf.mxu0
    %v2090 = vadd.f32 %v1899, %v2089
    %v2091 = vpop.f32.mrf.mxu0
    %2092 = vmatprep.mubr.f32.mxu0 0.0
    %2093 = vmatmul.mubr.f32.gmra.mxu0 %v1921
    %v2094 = vpop.f32.mrf.mxu0
    %v2095 = vadd.f32 %v1899, %v2094
    %v2096 = vpop.f32.mrf.mxu0
    %2097 = vmatprep.mubr.f32.mxu0 0.0
    %2098 = vmatmul.mubr.f32.gmra.mxu0 %v1924
    %v2099 = vpop.f32.mrf.mxu0
    %v2100 = vadd.f32 %v1899, %v2099
    %v2101 = vpop.f32.mrf.mxu0
    %2102 = vmatprep.mubr.f32.mxu0 0.0
    %2103 = vmatmul.mubr.f32.gmra.mxu0 %v1927
    %v2104 = vpop.f32.mrf.mxu0
    %v2105 = vadd.f32 %v1899, %v2104
    %v2106 = vpop.f32.mrf.mxu0
    %2107 = vmatprep.mubr.f32.mxu0 0.0
    %2108 = vmatmul.mubr.f32.gmra.mxu0 %v1930
    %v2109 = vpop.f32.mrf.mxu0
    %v2110 = vadd.f32 %v1899, %v2109
    %v2111 = vpop.f32.mrf.mxu0
    %2112 = vmatprep.mubr.f32.mxu0 0.0
    %2113 = vmatmul.mubr.f32.gmra.mxu0 %v1933
    %v2114 = vpop.f32.mrf.mxu0
    %v2115 = vadd.f32 %v1899, %v2114
    %v2116 = vpop.f32.mrf.mxu0
    %2117 = vmatprep.mubr.f32.mxu0 0.0
    %2118 = vmatmul.mubr.f32.gmra.mxu0 %v1936
    %v2119 = vpop.f32.mrf.mxu0
    %v2120 = vadd.f32 %v1899, %v2119
    %v2121 = vpop.f32.mrf.mxu0
    %2122 = vmatprep.mubr.f32.mxu0 0.0
    %2123 = vmatmul.mubr.f32.gmra.mxu0 %v1939
    %v2124 = vpop.f32.mrf.mxu0
    %v2125 = vadd.f32 %v1899, %v2124
    %v2126 = vpop.f32.mrf.mxu0
    %2127 = vmatprep.mubr.f32.mxu0 0.0
    %2128 = vmatmul.mubr.f32.gmra.mxu0 %v1942
    %v2129 = vpop.f32.mrf.mxu0
    %v2130 = vadd.f32 %v1899, %v2129
    %v2131 = vpop.f32.mrf.mxu0
    %2132 = vmatprep.mubr.f32.mxu0 0.0
    %2133 = vmatmul.mubr.f32.gmra.mxu0 %v1945
    %v2134 = vpop.f32.mrf.mxu0
    %v2135 = vadd.f32 %v1899, %v2134
    %v2136 = vpop.f32.mrf.mxu0
    %2137 = vmatprep.mubr.f32.mxu0 0.0
    %2138 = vmatmul.mubr.f32.gmra.mxu0 %v1948
    %v2139 = vpop.f32.mrf.mxu0
    %v2140 = vadd.f32 %v1899, %v2139
    %v2141 = vpop.f32.mrf.mxu0
    %2142 = vmatprep.mubr.f32.mxu0 0.0
    %2143 = vmatmul.mubr.f32.gmra.mxu0 %v1951
    %v2144 = vpop.f32.mrf.mxu0
    %v2145 = vadd.f32 %v1899, %v2144
    %v2146 = vpop.f32.mrf.mxu0
    %2147 = vmatprep.mubr.f32.mxu0 0.0
    %2148 = vmatmul.mubr.f32.gmra.mxu0 %v1954
    %v2149 = vpop.f32.mrf.mxu0
    %v2150 = vadd.f32 %v1899, %v2149
    %v2151 = vpop.f32.mrf.mxu0
    %2152 = vmatprep.mubr.f32.mxu0 0.0
    %2153 = vmatmul.mubr.f32.gmra.mxu0 %v1957
    %v2154 = vpop.f32.mrf.mxu0
    %v2155 = vadd.f32 %v1899, %v2154
    %v2156 = vpop.f32.mrf.mxu0
    %2157 = vmatprep.mubr.f32.mxu0 0.0
    %2158 = vmatmul.mubr.f32.gmra.mxu0 %v1960
    %v2159 = vpop.f32.mrf.mxu0
    %v2160 = vadd.f32 %v1899, %v2159
    %v2161 = vpop.f32.mrf.mxu0
    %2162 = vmatprep.mubr.f32.mxu0 0.0
    %2163 = vmatmul.mubr.f32.gmra.mxu0 %v1963
    %v2164 = vpop.f32.mrf.mxu0
    %v2165 = vadd.f32 %v1899, %v2164
    %v2166 = vpop.f32.mrf.mxu0
    %2167 = vmatprep.mubr.f32.mxu0 0.0
    %2168 = vmatmul.mubr.f32.gmra.mxu0 %v1966
    %v2169 = vpop.f32.mrf.mxu0
    %v2170 = vadd.f32 %v1899, %v2169
    %v2171 = vpop.f32.mrf.mxu0
    %2172 = vmatprep.mubr.f32.mxu0 0.0
    %2173 = vmatmul.mubr.f32.gmra.mxu0 %v1969
    %v2174 = vpop.f32.mrf.mxu0
    %v2175 = vadd.f32 %v1899, %v2174
    %v2176 = vpop.f32.mrf.mxu0
    %2177 = vmatprep.mubr.f32.mxu0 0.0
    %2178 = vmatmul.mubr.f32.gmra.mxu0 %v1972
    %v2179 = vpop.f32.mrf.mxu0
    %v2180 = vadd.f32 %v1899, %v2179
    %v2181 = vpop.f32.mrf.mxu0
    %2182 = vmatprep.mubr.f32.mxu0 0.0
    %2183 = vmatmul.mubr.f32.gmra.mxu0 %v1975
    %v2184 = vpop.f32.mrf.mxu0
    %v2185 = vadd.f32 %v1899, %v2184
    %v2186 = vpop.f32.mrf.mxu0
    %2187 = vmatprep.mubr.f32.mxu0 0.0
    %2188 = vmatmul.mubr.f32.gmra.mxu0 %v1978
    %v2189 = vpop.f32.mrf.mxu0
    %v2190 = vadd.f32 %v1899, %v2189
    %v2191 = vpop.f32.mrf.mxu0
    %2192 = vmatprep.mubr.f32.mxu0 0.0
    %2193 = vmatmul.mubr.f32.gmra.mxu0 %v1981
    %v2194 = vpop.f32.mrf.mxu0
    %v2195 = vadd.f32 %v1899, %v2194
    %v2196 = vpop.f32.mrf.mxu0
    %2197 = vmatprep.mubr.f32.mxu0 0.0
    %2198 = vmatmul.mubr.f32.gmra.mxu0 %v1984
    %v2199 = vpop.f32.mrf.mxu0
    %v2200 = vadd.f32 %v1899, %v2199
    %v2201 = vpop.f32.mrf.mxu0
    %2202 = vmatprep.mubr.f32.mxu0 0.0
    %2203 = vmatmul.mubr.f32.gmra.mxu0 %v1987
    %v2204 = vpop.f32.mrf.mxu0
    %v2205 = vadd.f32 %v1899, %v2204
    %v2206 = vpop.f32.mrf.mxu0
    %2207 = vmatprep.mubr.f32.mxu0 0.0
    %2208 = vmatmul.mubr.f32.gmra.mxu0 %v1990
    %v2209 = vpop.f32.mrf.mxu0
    %v2210 = vadd.f32 %v1899, %v2209
    %v2211 = vpop.f32.mrf.mxu0
    %2212 = vmatprep.mubr.f32.mxu0 0.0
    %2213 = vmatmul.mubr.f32.gmra.mxu0 %v1993
    %v2214 = vpop.f32.mrf.mxu0
    %v2215 = vadd.f32 %v1899, %v2214
    %v2216 = vpop.f32.mrf.mxu0
    %2217 = vmatprep.mubr.f32.mxu0 0.0
    %2218 = vmatmul.mubr.f32.gmra.mxu0 %v1996
    %v2219 = vpop.f32.mrf.mxu0
    %v2220 = vadd.f32 %v1899, %v2219
    %v2221 = vpop.f32.mrf.mxu0
    %2222 = vdwg.mxu0
    %vm2223 = vcmp.gt.f32.partialorder %v2065, 0.0
    %vm2224 = vcmp.gt.f32.partialorder %v2070, 0.0
    %vm2225 = vcmp.gt.f32.partialorder %v2075, 0.0
    %vm2226 = vcmp.gt.f32.partialorder %v2080, 0.0
    %vm2227 = vcmp.gt.f32.partialorder %v2085, 0.0
    %vm2228 = vcmp.gt.f32.partialorder %v2090, 0.0
    %vm2229 = vcmp.gt.f32.partialorder %v2095, 0.0
    %vm2230 = vcmp.gt.f32.partialorder %v2100, 0.0
    %vm2231 = vcmp.gt.f32.partialorder %v2105, 0.0
    %vm2232 = vcmp.gt.f32.partialorder %v2110, 0.0
    %vm2233 = vcmp.gt.f32.partialorder %v2115, 0.0
    %vm2234 = vcmp.gt.f32.partialorder %v2120, 0.0
    %vm2235 = vcmp.gt.f32.partialorder %v2125, 0.0
    %vm2236 = vcmp.gt.f32.partialorder %v2130, 0.0
    %vm2237 = vcmp.gt.f32.partialorder %v2135, 0.0
    %vm2238 = vcmp.gt.f32.partialorder %v2140, 0.0
    %vm2239 = vcmp.gt.f32.partialorder %v2145, 0.0
    %vm2240 = vcmp.gt.f32.partialorder %v2150, 0.0
    %vm2241 = vcmp.gt.f32.partialorder %v2155, 0.0
    %vm2242 = vcmp.gt.f32.partialorder %v2160, 0.0
    %vm2243 = vcmp.gt.f32.partialorder %v2165, 0.0
    %vm2244 = vcmp.gt.f32.partialorder %v2170, 0.0
    %vm2245 = vcmp.gt.f32.partialorder %v2175, 0.0
    %vm2246 = vcmp.gt.f32.partialorder %v2180, 0.0
    %vm2247 = vcmp.gt.f32.partialorder %v2185, 0.0
    %vm2248 = vcmp.gt.f32.partialorder %v2190, 0.0
    %vm2249 = vcmp.gt.f32.partialorder %v2195, 0.0
    %vm2250 = vcmp.gt.f32.partialorder %v2200, 0.0
    %vm2251 = vcmp.gt.f32.partialorder %v2205, 0.0
    %vm2252 = vcmp.gt.f32.partialorder %v2210, 0.0
    %vm2253 = vcmp.gt.f32.partialorder %v2215, 0.0
    %vm2254 = vcmp.gt.f32.partialorder %v2220, 0.0
    %v2255 = vmul.f32 %v2065, 0.01
    %v2256 = vmul.f32 %v2070, 0.01
    %v2257 = vmul.f32 %v2075, 0.01
    %v2258 = vmul.f32 %v2080, 0.01
    %v2259 = vmul.f32 %v2085, 0.01
    %v2260 = vmul.f32 %v2090, 0.01
    %v2261 = vmul.f32 %v2095, 0.01
    %v2262 = vmul.f32 %v2100, 0.01
    %v2263 = vmul.f32 %v2105, 0.01
    %v2264 = vmul.f32 %v2110, 0.01
    %v2265 = vmul.f32 %v2115, 0.01
    %v2266 = vmul.f32 %v2120, 0.01
    %v2267 = vmul.f32 %v2125, 0.01
    %v2268 = vmul.f32 %v2130, 0.01
    %v2269 = vmul.f32 %v2135, 0.01
    %v2270 = vmul.f32 %v2140, 0.01
    %v2271 = vmul.f32 %v2145, 0.01
    %v2272 = vmul.f32 %v2150, 0.01
    %v2273 = vmul.f32 %v2155, 0.01
    %v2274 = vmul.f32 %v2160, 0.01
    %v2275 = vmul.f32 %v2165, 0.01
    %v2276 = vmul.f32 %v2170, 0.01
    %v2277 = vmul.f32 %v2175, 0.01
    %v2278 = vmul.f32 %v2180, 0.01
    %v2279 = vmul.f32 %v2185, 0.01
    %v2280 = vmul.f32 %v2190, 0.01
    %v2281 = vmul.f32 %v2195, 0.01
    %v2282 = vmul.f32 %v2200, 0.01
    %v2283 = vmul.f32 %v2205, 0.01
    %v2284 = vmul.f32 %v2210, 0.01
    %v2285 = vmul.f32 %v2215, 0.01
    %v2286 = vmul.f32 %v2220, 0.01
    %v2287 = vsel %vm2223, %v2065, %v2255
    %v2288 = vsel %vm2224, %v2070, %v2256
    %v2289 = vsel %vm2225, %v2075, %v2257
    %v2290 = vsel %vm2226, %v2080, %v2258
    %v2291 = vsel %vm2227, %v2085, %v2259
    %v2292 = vsel %vm2228, %v2090, %v2260
    %v2293 = vsel %vm2229, %v2095, %v2261
    %v2294 = vsel %vm2230, %v2100, %v2262
    %v2295 = vsel %vm2231, %v2105, %v2263
    %v2296 = vsel %vm2232, %v2110, %v2264
    %v2297 = vsel %vm2233, %v2115, %v2265
    %v2298 = vsel %vm2234, %v2120, %v2266
    %v2299 = vsel %vm2235, %v2125, %v2267
    %v2300 = vsel %vm2236, %v2130, %v2268
    %v2301 = vsel %vm2237, %v2135, %v2269
    %v2302 = vsel %vm2238, %v2140, %v2270
    %v2303 = vsel %vm2239, %v2145, %v2271
    %v2304 = vsel %vm2240, %v2150, %v2272
    %v2305 = vsel %vm2241, %v2155, %v2273
    %v2306 = vsel %vm2242, %v2160, %v2274
    %v2307 = vsel %vm2243, %v2165, %v2275
    %v2308 = vsel %vm2244, %v2170, %v2276
    %v2309 = vsel %vm2245, %v2175, %v2277
    %v2310 = vsel %vm2246, %v2180, %v2278
    %v2311 = vsel %vm2247, %v2185, %v2279
    %v2312 = vsel %vm2248, %v2190, %v2280
    %v2313 = vsel %vm2249, %v2195, %v2281
    %v2314 = vsel %vm2250, %v2200, %v2282
    %v2315 = vsel %vm2251, %v2205, %v2283
    %v2316 = vsel %vm2252, %v2210, %v2284
    %v2317 = vsel %vm2253, %v2215, %v2285
    %v2318 = vsel %vm2254, %v2220, %v2286
    %v2319 = vld [vmem:[%s5] sm:$0xff]
    %v2320 = vld [vmem:[%s5 + $0x8] sm:$0xff]
    %v2321 = vld [vmem:[%s5 + $0x10] sm:$0xff]
    %v2322 = vld [vmem:[%s5 + $0x18] sm:$0xff]
    %v2323 = vld [vmem:[%s5 + $0x20] sm:$0xff]
    %v2324 = vld [vmem:[%s5 + $0x28] sm:$0xff]
    %v2325 = vld [vmem:[%s5 + $0x30] sm:$0xff]
    %v2326 = vld [vmem:[%s5 + $0x38] sm:$0xff]
    %v2327 = vld [vmem:[%s6] sm:$0x1]
    %v2329 = vlaneseq
    %v2330 = vshrl.u32 %v2329, 7
    %v2331 = vsub.s32 0, %v2330
    %v2332 = vrot.slane %v2327, %v2331
    %v2335 = vsel %vm1849, %v2287, 0
    %v2338 = vsel %vm1849, %v2288, 0
    %v2341 = vsel %vm1849, %v2289, 0
    %v2344 = vsel %vm1849, %v2290, 0
    %v2347 = vsel %vm1849, %v2291, 0
    %v2350 = vsel %vm1849, %v2292, 0
    %v2353 = vsel %vm1849, %v2293, 0
    %v2356 = vsel %vm1849, %v2294, 0
    %v2359 = vsel %vm1849, %v2295, 0
    %v2362 = vsel %vm1849, %v2296, 0
    %v2365 = vsel %vm1849, %v2297, 0
    %v2368 = vsel %vm1849, %v2298, 0
    %v2371 = vsel %vm1849, %v2299, 0
    %v2374 = vsel %vm1849, %v2300, 0
    %v2377 = vsel %vm1849, %v2301, 0
    %v2380 = vsel %vm1849, %v2302, 0
    %v2383 = vsel %vm1849, %v2303, 0
    %v2386 = vsel %vm1849, %v2304, 0
    %v2389 = vsel %vm1849, %v2305, 0
    %v2392 = vsel %vm1849, %v2306, 0
    %v2395 = vsel %vm1849, %v2307, 0
    %v2398 = vsel %vm1849, %v2308, 0
    %v2401 = vsel %vm1849, %v2309, 0
    %v2404 = vsel %vm1849, %v2310, 0
    %v2407 = vsel %vm1849, %v2311, 0
    %v2410 = vsel %vm1849, %v2312, 0
    %v2413 = vsel %vm1849, %v2313, 0
    %v2416 = vsel %vm1849, %v2314, 0
    %v2419 = vsel %vm1849, %v2315, 0
    %v2422 = vsel %vm1849, %v2316, 0
    %v2425 = vsel %vm1849, %v2317, 0
    %v2428 = vsel %vm1849, %v2318, 0
    %2430 = vmatprep.subr.mxu0 0.0
    %2431 = vmatpush1.msra.mxu0 0.0
    %2432 = vmatprep.subr.mxu0 0.0
    %2433 = vmatpush1.msra.mxu0 0.0
    %2434 = vmatprep.subr.mxu0 0.0
    %2435 = vmatpush1.msra.mxu0 0.0
    %2436 = vmatprep.subr.mxu0 0.0
    %2437 = vmatpush1.msra.mxu0 0.0
    %2438 = vmatprep.subr.mxu0 0.0
    %2439 = vmatpush1.msra.mxu0 0.0
    %2440 = vmatprep.subr.mxu0 0.0
    %2441 = vmatpush1.msra.mxu0 0.0
    %2442 = vmatprep.subr.mxu0 0.0
    %2443 = vmatpush1.msra.mxu0 0.0
    %2444 = vmatprep.subr.mxu0 0.0
    %2445 = vmatpush1.msra.mxu0 0.0
    %2446 = vmatprep.subr.mxu0 0.0
    %2447 = vmatpush1.msra.mxu0 %v2326
    %2448 = vmatprep.subr.mxu0 0.0
    %2449 = vmatpush1.msra.mxu0 %v2325
    %2450 = vmatprep.subr.mxu0 0.0
    %2451 = vmatpush1.msra.mxu0 %v2324
    %2452 = vmatprep.subr.mxu0 0.0
    %2453 = vmatpush1.msra.mxu0 %v2323
    %2454 = vmatprep.subr.mxu0 0.0
    %2455 = vmatpush1.msra.mxu0 %v2322
    %2456 = vmatprep.subr.mxu0 0.0
    %2457 = vmatpush1.msra.mxu0 %v2321
    %2458 = vmatprep.subr.mxu0 0.0
    %2459 = vmatpush1.msra.mxu0 %v2320
    %2460 = vmatprep.subr.mxu0 0.0
    %2461 = vmatpush1.msra.mxu0 %v2319
    %2462 = vmatprep.subr.mxu0 0.0
    %2463 = vmatpush2.msra.mxu0 0.0
    %2464 = vmatprep.subr.mxu0 0.0
    %2465 = vmatpush2.msra.mxu0 0.0
    %2466 = vmatprep.subr.mxu0 0.0
    %2467 = vmatpush2.msra.mxu0 0.0
    %2468 = vmatprep.subr.mxu0 0.0
    %2469 = vmatpush2.msra.mxu0 0.0
    %2470 = vmatprep.subr.mxu0 0.0
    %2471 = vmatpush2.msra.mxu0 0.0
    %2472 = vmatprep.subr.mxu0 0.0
    %2473 = vmatpush2.msra.mxu0 0.0
    %2474 = vmatprep.subr.mxu0 0.0
    %2475 = vmatpush2.msra.mxu0 0.0
    %2476 = vmatprep.subr.mxu0 0.0
    %2477 = vmatpush2.msra.mxu0 0.0
    %2478 = vmatprep.subr.mxu0 0.0
    %2479 = vmatpush2.msra.mxu0 0.0
    %2480 = vmatprep.subr.mxu0 0.0
    %2481 = vmatpush2.msra.mxu0 0.0
    %2482 = vmatprep.subr.mxu0 0.0
    %2483 = vmatpush2.msra.mxu0 0.0
    %2484 = vmatprep.subr.mxu0 0.0
    %2485 = vmatpush2.msra.mxu0 0.0
    %2486 = vmatprep.subr.mxu0 0.0
    %2487 = vmatpush2.msra.mxu0 0.0
    %2488 = vmatprep.subr.mxu0 0.0
    %2489 = vmatpush2.msra.mxu0 0.0
    %2490 = vmatprep.subr.mxu0 0.0
    %2491 = vmatpush2.msra.mxu0 0.0
    %2492 = vmatprep.subr.mxu0 0.0
    %2493 = vmatpush2.msra.mxu0 0.0
    %2494 = vmatprep.mubr.f32.mxu0 0.0
    %2495 = vmatmul.mubr.f32.gmra.mxu0 %v2335
    %v2496 = vpop.f32.mrf.mxu0
    %v2497 = vadd.f32 %v2332, %v2496
    %v2498 = vpop.f32.mrf.mxu0
    %2499 = vmatprep.mubr.f32.mxu0 0.0
    %2500 = vmatmul.mubr.f32.gmra.mxu0 %v2338
    %v2501 = vpop.f32.mrf.mxu0
    %v2502 = vadd.f32 %v2332, %v2501
    %v2503 = vpop.f32.mrf.mxu0
    %2504 = vmatprep.mubr.f32.mxu0 0.0
    %2505 = vmatmul.mubr.f32.gmra.mxu0 %v2341
    %v2506 = vpop.f32.mrf.mxu0
    %v2507 = vadd.f32 %v2332, %v2506
    %v2508 = vpop.f32.mrf.mxu0
    %2509 = vmatprep.mubr.f32.mxu0 0.0
    %2510 = vmatmul.mubr.f32.gmra.mxu0 %v2344
    %v2511 = vpop.f32.mrf.mxu0
    %v2512 = vadd.f32 %v2332, %v2511
    %v2513 = vpop.f32.mrf.mxu0
    %2514 = vmatprep.mubr.f32.mxu0 0.0
    %2515 = vmatmul.mubr.f32.gmra.mxu0 %v2347
    %v2516 = vpop.f32.mrf.mxu0
    %v2517 = vadd.f32 %v2332, %v2516
    %v2518 = vpop.f32.mrf.mxu0
    %2519 = vmatprep.mubr.f32.mxu0 0.0
    %2520 = vmatmul.mubr.f32.gmra.mxu0 %v2350
    %v2521 = vpop.f32.mrf.mxu0
    %v2522 = vadd.f32 %v2332, %v2521
    %v2523 = vpop.f32.mrf.mxu0
    %2524 = vmatprep.mubr.f32.mxu0 0.0
    %2525 = vmatmul.mubr.f32.gmra.mxu0 %v2353
    %v2526 = vpop.f32.mrf.mxu0
    %v2527 = vadd.f32 %v2332, %v2526
    %v2528 = vpop.f32.mrf.mxu0
    %2529 = vmatprep.mubr.f32.mxu0 0.0
    %2530 = vmatmul.mubr.f32.gmra.mxu0 %v2356
    %v2531 = vpop.f32.mrf.mxu0
    %v2532 = vadd.f32 %v2332, %v2531
    %v2533 = vpop.f32.mrf.mxu0
    %2534 = vmatprep.mubr.f32.mxu0 0.0
    %2535 = vmatmul.mubr.f32.gmra.mxu0 %v2359
    %v2536 = vpop.f32.mrf.mxu0
    %v2537 = vadd.f32 %v2332, %v2536
    %v2538 = vpop.f32.mrf.mxu0
    %2539 = vmatprep.mubr.f32.mxu0 0.0
    %2540 = vmatmul.mubr.f32.gmra.mxu0 %v2362
    %v2541 = vpop.f32.mrf.mxu0
    %v2542 = vadd.f32 %v2332, %v2541
    %v2543 = vpop.f32.mrf.mxu0
    %2544 = vmatprep.mubr.f32.mxu0 0.0
    %2545 = vmatmul.mubr.f32.gmra.mxu0 %v2365
    %v2546 = vpop.f32.mrf.mxu0
    %v2547 = vadd.f32 %v2332, %v2546
    %v2548 = vpop.f32.mrf.mxu0
    %2549 = vmatprep.mubr.f32.mxu0 0.0
    %2550 = vmatmul.mubr.f32.gmra.mxu0 %v2368
    %v2551 = vpop.f32.mrf.mxu0
    %v2552 = vadd.f32 %v2332, %v2551
    %v2553 = vpop.f32.mrf.mxu0
    %2554 = vmatprep.mubr.f32.mxu0 0.0
    %2555 = vmatmul.mubr.f32.gmra.mxu0 %v2371
    %v2556 = vpop.f32.mrf.mxu0
    %v2557 = vadd.f32 %v2332, %v2556
    %v2558 = vpop.f32.mrf.mxu0
    %2559 = vmatprep.mubr.f32.mxu0 0.0
    %2560 = vmatmul.mubr.f32.gmra.mxu0 %v2374
    %v2561 = vpop.f32.mrf.mxu0
    %v2562 = vadd.f32 %v2332, %v2561
    %v2563 = vpop.f32.mrf.mxu0
    %2564 = vmatprep.mubr.f32.mxu0 0.0
    %2565 = vmatmul.mubr.f32.gmra.mxu0 %v2377
    %v2566 = vpop.f32.mrf.mxu0
    %v2567 = vadd.f32 %v2332, %v2566
    %v2568 = vpop.f32.mrf.mxu0
    %2569 = vmatprep.mubr.f32.mxu0 0.0
    %2570 = vmatmul.mubr.f32.gmra.mxu0 %v2380
    %v2571 = vpop.f32.mrf.mxu0
    %v2572 = vadd.f32 %v2332, %v2571
    %v2573 = vpop.f32.mrf.mxu0
    %2574 = vmatprep.mubr.f32.mxu0 0.0
    %2575 = vmatmul.mubr.f32.gmra.mxu0 %v2383
    %v2576 = vpop.f32.mrf.mxu0
    %v2577 = vadd.f32 %v2332, %v2576
    %v2578 = vpop.f32.mrf.mxu0
    %2579 = vmatprep.mubr.f32.mxu0 0.0
    %2580 = vmatmul.mubr.f32.gmra.mxu0 %v2386
    %v2581 = vpop.f32.mrf.mxu0
    %v2582 = vadd.f32 %v2332, %v2581
    %v2583 = vpop.f32.mrf.mxu0
    %2584 = vmatprep.mubr.f32.mxu0 0.0
    %2585 = vmatmul.mubr.f32.gmra.mxu0 %v2389
    %v2586 = vpop.f32.mrf.mxu0
    %v2587 = vadd.f32 %v2332, %v2586
    %v2588 = vpop.f32.mrf.mxu0
    %2589 = vmatprep.mubr.f32.mxu0 0.0
    %2590 = vmatmul.mubr.f32.gmra.mxu0 %v2392
    %v2591 = vpop.f32.mrf.mxu0
    %v2592 = vadd.f32 %v2332, %v2591
    %v2593 = vpop.f32.mrf.mxu0
    %2594 = vmatprep.mubr.f32.mxu0 0.0
    %2595 = vmatmul.mubr.f32.gmra.mxu0 %v2395
    %v2596 = vpop.f32.mrf.mxu0
    %v2597 = vadd.f32 %v2332, %v2596
    %v2598 = vpop.f32.mrf.mxu0
    %2599 = vmatprep.mubr.f32.mxu0 0.0
    %2600 = vmatmul.mubr.f32.gmra.mxu0 %v2398
    %v2601 = vpop.f32.mrf.mxu0
    %v2602 = vadd.f32 %v2332, %v2601
    %v2603 = vpop.f32.mrf.mxu0
    %2604 = vmatprep.mubr.f32.mxu0 0.0
    %2605 = vmatmul.mubr.f32.gmra.mxu0 %v2401
    %v2606 = vpop.f32.mrf.mxu0
    %v2607 = vadd.f32 %v2332, %v2606
    %v2608 = vpop.f32.mrf.mxu0
    %2609 = vmatprep.mubr.f32.mxu0 0.0
    %2610 = vmatmul.mubr.f32.gmra.mxu0 %v2404
    %v2611 = vpop.f32.mrf.mxu0
    %v2612 = vadd.f32 %v2332, %v2611
    %v2613 = vpop.f32.mrf.mxu0
    %2614 = vmatprep.mubr.f32.mxu0 0.0
    %2615 = vmatmul.mubr.f32.gmra.mxu0 %v2407
    %v2616 = vpop.f32.mrf.mxu0
    %v2617 = vadd.f32 %v2332, %v2616
    %v2618 = vpop.f32.mrf.mxu0
    %2619 = vmatprep.mubr.f32.mxu0 0.0
    %2620 = vmatmul.mubr.f32.gmra.mxu0 %v2410
    %v2621 = vpop.f32.mrf.mxu0
    %v2622 = vadd.f32 %v2332, %v2621
    %v2623 = vpop.f32.mrf.mxu0
    %2624 = vmatprep.mubr.f32.mxu0 0.0
    %2625 = vmatmul.mubr.f32.gmra.mxu0 %v2413
    %v2626 = vpop.f32.mrf.mxu0
    %v2627 = vadd.f32 %v2332, %v2626
    %v2628 = vpop.f32.mrf.mxu0
    %2629 = vmatprep.mubr.f32.mxu0 0.0
    %2630 = vmatmul.mubr.f32.gmra.mxu0 %v2416
    %v2631 = vpop.f32.mrf.mxu0
    %v2632 = vadd.f32 %v2332, %v2631
    %v2633 = vpop.f32.mrf.mxu0
    %2634 = vmatprep.mubr.f32.mxu0 0.0
    %2635 = vmatmul.mubr.f32.gmra.mxu0 %v2419
    %v2636 = vpop.f32.mrf.mxu0
    %v2637 = vadd.f32 %v2332, %v2636
    %v2638 = vpop.f32.mrf.mxu0
    %2639 = vmatprep.mubr.f32.mxu0 0.0
    %2640 = vmatmul.mubr.f32.gmra.mxu0 %v2422
    %v2641 = vpop.f32.mrf.mxu0
    %v2642 = vadd.f32 %v2332, %v2641
    %v2643 = vpop.f32.mrf.mxu0
    %2644 = vmatprep.mubr.f32.mxu0 0.0
    %2645 = vmatmul.mubr.f32.gmra.mxu0 %v2425
    %v2646 = vpop.f32.mrf.mxu0
    %v2647 = vadd.f32 %v2332, %v2646
    %v2648 = vpop.f32.mrf.mxu0
    %2649 = vmatprep.mubr.f32.mxu0 0.0
    %2650 = vmatmul.mubr.f32.gmra.mxu0 %v2428
    %v2651 = vpop.f32.mrf.mxu0
    %v2652 = vadd.f32 %v2332, %v2651
    %v2653 = vpop.f32.mrf.mxu0
    %2654 = vdwg.mxu0
    %vm2655 = vcmp.gt.f32.partialorder %v2497, 0.0
    %vm2656 = vcmp.gt.f32.partialorder %v2502, 0.0
    %vm2657 = vcmp.gt.f32.partialorder %v2507, 0.0
    %vm2658 = vcmp.gt.f32.partialorder %v2512, 0.0
    %vm2659 = vcmp.gt.f32.partialorder %v2517, 0.0
    %vm2660 = vcmp.gt.f32.partialorder %v2522, 0.0
    %vm2661 = vcmp.gt.f32.partialorder %v2527, 0.0
    %vm2662 = vcmp.gt.f32.partialorder %v2532, 0.0
    %vm2663 = vcmp.gt.f32.partialorder %v2537, 0.0
    %vm2664 = vcmp.gt.f32.partialorder %v2542, 0.0
    %vm2665 = vcmp.gt.f32.partialorder %v2547, 0.0
    %vm2666 = vcmp.gt.f32.partialorder %v2552, 0.0
    %vm2667 = vcmp.gt.f32.partialorder %v2557, 0.0
    %vm2668 = vcmp.gt.f32.partialorder %v2562, 0.0
    %vm2669 = vcmp.gt.f32.partialorder %v2567, 0.0
    %vm2670 = vcmp.gt.f32.partialorder %v2572, 0.0
    %vm2671 = vcmp.gt.f32.partialorder %v2577, 0.0
    %vm2672 = vcmp.gt.f32.partialorder %v2582, 0.0
    %vm2673 = vcmp.gt.f32.partialorder %v2587, 0.0
    %vm2674 = vcmp.gt.f32.partialorder %v2592, 0.0
    %vm2675 = vcmp.gt.f32.partialorder %v2597, 0.0
    %vm2676 = vcmp.gt.f32.partialorder %v2602, 0.0
    %vm2677 = vcmp.gt.f32.partialorder %v2607, 0.0
    %vm2678 = vcmp.gt.f32.partialorder %v2612, 0.0
    %vm2679 = vcmp.gt.f32.partialorder %v2617, 0.0
    %vm2680 = vcmp.gt.f32.partialorder %v2622, 0.0
    %vm2681 = vcmp.gt.f32.partialorder %v2627, 0.0
    %vm2682 = vcmp.gt.f32.partialorder %v2632, 0.0
    %vm2683 = vcmp.gt.f32.partialorder %v2637, 0.0
    %vm2684 = vcmp.gt.f32.partialorder %v2642, 0.0
    %vm2685 = vcmp.gt.f32.partialorder %v2647, 0.0
    %vm2686 = vcmp.gt.f32.partialorder %v2652, 0.0
    %v2687 = vmul.f32 %v2497, 0.01
    %v2688 = vmul.f32 %v2502, 0.01
    %v2689 = vmul.f32 %v2507, 0.01
    %v2690 = vmul.f32 %v2512, 0.01
    %v2691 = vmul.f32 %v2517, 0.01
    %v2692 = vmul.f32 %v2522, 0.01
    %v2693 = vmul.f32 %v2527, 0.01
    %v2694 = vmul.f32 %v2532, 0.01
    %v2695 = vmul.f32 %v2537, 0.01
    %v2696 = vmul.f32 %v2542, 0.01
    %v2697 = vmul.f32 %v2547, 0.01
    %v2698 = vmul.f32 %v2552, 0.01
    %v2699 = vmul.f32 %v2557, 0.01
    %v2700 = vmul.f32 %v2562, 0.01
    %v2701 = vmul.f32 %v2567, 0.01
    %v2702 = vmul.f32 %v2572, 0.01
    %v2703 = vmul.f32 %v2577, 0.01
    %v2704 = vmul.f32 %v2582, 0.01
    %v2705 = vmul.f32 %v2587, 0.01
    %v2706 = vmul.f32 %v2592, 0.01
    %v2707 = vmul.f32 %v2597, 0.01
    %v2708 = vmul.f32 %v2602, 0.01
    %v2709 = vmul.f32 %v2607, 0.01
    %v2710 = vmul.f32 %v2612, 0.01
    %v2711 = vmul.f32 %v2617, 0.01
    %v2712 = vmul.f32 %v2622, 0.01
    %v2713 = vmul.f32 %v2627, 0.01
    %v2714 = vmul.f32 %v2632, 0.01
    %v2715 = vmul.f32 %v2637, 0.01
    %v2716 = vmul.f32 %v2642, 0.01
    %v2717 = vmul.f32 %v2647, 0.01
    %v2718 = vmul.f32 %v2652, 0.01
    %v2719 = vsel %vm2655, %v2497, %v2687
    %v2720 = vsel %vm2656, %v2502, %v2688
    %v2721 = vsel %vm2657, %v2507, %v2689
    %v2722 = vsel %vm2658, %v2512, %v2690
    %v2723 = vsel %vm2659, %v2517, %v2691
    %v2724 = vsel %vm2660, %v2522, %v2692
    %v2725 = vsel %vm2661, %v2527, %v2693
    %v2726 = vsel %vm2662, %v2532, %v2694
    %v2727 = vsel %vm2663, %v2537, %v2695
    %v2728 = vsel %vm2664, %v2542, %v2696
    %v2729 = vsel %vm2665, %v2547, %v2697
    %v2730 = vsel %vm2666, %v2552, %v2698
    %v2731 = vsel %vm2667, %v2557, %v2699
    %v2732 = vsel %vm2668, %v2562, %v2700
    %v2733 = vsel %vm2669, %v2567, %v2701
    %v2734 = vsel %vm2670, %v2572, %v2702
    %v2735 = vsel %vm2671, %v2577, %v2703
    %v2736 = vsel %vm2672, %v2582, %v2704
    %v2737 = vsel %vm2673, %v2587, %v2705
    %v2738 = vsel %vm2674, %v2592, %v2706
    %v2739 = vsel %vm2675, %v2597, %v2707
    %v2740 = vsel %vm2676, %v2602, %v2708
    %v2741 = vsel %vm2677, %v2607, %v2709
    %v2742 = vsel %vm2678, %v2612, %v2710
    %v2743 = vsel %vm2679, %v2617, %v2711
    %v2744 = vsel %vm2680, %v2622, %v2712
    %v2745 = vsel %vm2681, %v2627, %v2713
    %v2746 = vsel %vm2682, %v2632, %v2714
    %v2747 = vsel %vm2683, %v2637, %v2715
    %v2748 = vsel %vm2684, %v2642, %v2716
    %v2749 = vsel %vm2685, %v2647, %v2717
    %v2750 = vsel %vm2686, %v2652, %v2718
    %v2783 = vrot.slane %v2720, 7
    %vm2784 = vcmask 1041409
    %v2785 = vsel %vm2784, %v2783, %v2719
    %v2786 = vrot.slane %v2721, 6
    %vm2787 = vcmask 1042434
    %v2788 = vsel %vm2787, %v2786, %v2785
    %v2789 = vrot.slane %v2722, 5
    %vm2790 = vcmask 1043459
    %v2791 = vsel %vm2790, %v2789, %v2788
    %v2792 = vrot.slane %v2723, 4
    %vm2793 = vcmask 1044484
    %v2794 = vsel %vm2793, %v2792, %v2791
    %v2795 = vrot.slane %v2724, 3
    %vm2796 = vcmask 1045509
    %v2797 = vsel %vm2796, %v2795, %v2794
    %v2798 = vrot.slane %v2725, 2
    %vm2799 = vcmask 1046534
    %v2800 = vsel %vm2799, %v2798, %v2797
    %v2801 = vrot.slane %v2726, 1
    %vm2802 = vcmask 1047559
    %v2803 = vsel %vm2802, %v2801, %v2800
    %v2804 = vrot.slane %v2728, 7
    %v2805 = vsel %vm2784, %v2804, %v2727
    %v2806 = vrot.slane %v2729, 6
    %v2807 = vsel %vm2787, %v2806, %v2805
    %v2808 = vrot.slane %v2730, 5
    %v2809 = vsel %vm2790, %v2808, %v2807
    %v2810 = vrot.slane %v2731, 4
    %v2811 = vsel %vm2793, %v2810, %v2809
    %v2812 = vrot.slane %v2732, 3
    %v2813 = vsel %vm2796, %v2812, %v2811
    %v2814 = vrot.slane %v2733, 2
    %v2815 = vsel %vm2799, %v2814, %v2813
    %v2816 = vrot.slane %v2734, 1
    %v2817 = vsel %vm2802, %v2816, %v2815
    %v2818 = vrot.slane %v2736, 7
    %v2819 = vsel %vm2784, %v2818, %v2735
    %v2820 = vrot.slane %v2737, 6
    %v2821 = vsel %vm2787, %v2820, %v2819
    %v2822 = vrot.slane %v2738, 5
    %v2823 = vsel %vm2790, %v2822, %v2821
    %v2824 = vrot.slane %v2739, 4
    %v2825 = vsel %vm2793, %v2824, %v2823
    %v2826 = vrot.slane %v2740, 3
    %v2827 = vsel %vm2796, %v2826, %v2825
    %v2828 = vrot.slane %v2741, 2
    %v2829 = vsel %vm2799, %v2828, %v2827
    %v2830 = vrot.slane %v2742, 1
    %v2831 = vsel %vm2802, %v2830, %v2829
    %v2832 = vrot.slane %v2744, 7
    %v2833 = vsel %vm2784, %v2832, %v2743
    %v2834 = vrot.slane %v2745, 6
    %v2835 = vsel %vm2787, %v2834, %v2833
    %v2836 = vrot.slane %v2746, 5
    %v2837 = vsel %vm2790, %v2836, %v2835
    %v2838 = vrot.slane %v2747, 4
    %v2839 = vsel %vm2793, %v2838, %v2837
    %v2840 = vrot.slane %v2748, 3
    %v2841 = vsel %vm2796, %v2840, %v2839
    %v2842 = vrot.slane %v2749, 2
    %v2843 = vsel %vm2799, %v2842, %v2841
    %v2844 = vrot.slane %v2750, 1
    %v2845 = vsel %vm2802, %v2844, %v2843
    %v2850 = vrot.slane %v2719, 1
    %v2851 = vsel %vm2784, %v2720, %v2850
    %v2852 = vrot.slane %v2721, 7
    %v2853 = vsel %vm2787, %v2852, %v2851
    %v2854 = vrot.slane %v2722, 6
    %v2855 = vsel %vm2790, %v2854, %v2853
    %v2856 = vrot.slane %v2723, 5
    %v2857 = vsel %vm2793, %v2856, %v2855
    %v2858 = vrot.slane %v2724, 4
    %v2859 = vsel %vm2796, %v2858, %v2857
    %v2860 = vrot.slane %v2725, 3
    %v2861 = vsel %vm2799, %v2860, %v2859
    %v2862 = vrot.slane %v2726, 2
    %v2863 = vsel %vm2802, %v2862, %v2861
    %v2864 = vrot.slane %v2727, 1
    %v2865 = vsel %vm2784, %v2728, %v2864
    %v2866 = vrot.slane %v2729, 7
    %v2867 = vsel %vm2787, %v2866, %v2865
    %v2868 = vrot.slane %v2730, 6
    %v2869 = vsel %vm2790, %v2868, %v2867
    %v2870 = vrot.slane %v2731, 5
    %v2871 = vsel %vm2793, %v2870, %v2869
    %v2872 = vrot.slane %v2732, 4
    %v2873 = vsel %vm2796, %v2872, %v2871
    %v2874 = vrot.slane %v2733, 3
    %v2875 = vsel %vm2799, %v2874, %v2873
    %v2876 = vrot.slane %v2734, 2
    %v2877 = vsel %vm2802, %v2876, %v2875
    %v2878 = vrot.slane %v2735, 1
    %v2879 = vsel %vm2784, %v2736, %v2878
    %v2880 = vrot.slane %v2737, 7
    %v2881 = vsel %vm2787, %v2880, %v2879
    %v2882 = vrot.slane %v2738, 6
    %v2883 = vsel %vm2790, %v2882, %v2881
    %v2884 = vrot.slane %v2739, 5
    %v2885 = vsel %vm2793, %v2884, %v2883
    %v2886 = vrot.slane %v2740, 4
    %v2887 = vsel %vm2796, %v2886, %v2885
    %v2888 = vrot.slane %v2741, 3
    %v2889 = vsel %vm2799, %v2888, %v2887
    %v2890 = vrot.slane %v2742, 2
    %v2891 = vsel %vm2802, %v2890, %v2889
    %v2892 = vrot.slane %v2743, 1
    %v2893 = vsel %vm2784, %v2744, %v2892
    %v2894 = vrot.slane %v2745, 7
    %v2895 = vsel %vm2787, %v2894, %v2893
    %v2896 = vrot.slane %v2746, 6
    %v2897 = vsel %vm2790, %v2896, %v2895
    %v2898 = vrot.slane %v2747, 5
    %v2899 = vsel %vm2793, %v2898, %v2897
    %v2900 = vrot.slane %v2748, 4
    %v2901 = vsel %vm2796, %v2900, %v2899
    %v2902 = vrot.slane %v2749, 3
    %v2903 = vsel %vm2799, %v2902, %v2901
    %v2904 = vrot.slane %v2750, 2
    %v2905 = vsel %vm2802, %v2904, %v2903
    %2906 = vrot.lane.b32.xlu0 %v2863, 32
    %v2907 = vpop.permute.xlu0 %2906
    %2908 = vrot.lane.b32.xlu0 %v2877, 32
    %v2909 = vpop.permute.xlu0 %2908
    %2910 = vrot.lane.b32.xlu0 %v2891, 32
    %v2911 = vpop.permute.xlu0 %2910
    %2912 = vrot.lane.b32.xlu0 %v2905, 32
    %v2913 = vpop.permute.xlu0 %2912
    %v2918 = vrot.slane %v2719, 2
    %v2919 = vrot.slane %v2720, 1
    %v2920 = vsel %vm2784, %v2919, %v2918
    %v2921 = vsel %vm2787, %v2721, %v2920
    %v2922 = vrot.slane %v2722, 7
    %v2923 = vsel %vm2790, %v2922, %v2921
    %v2924 = vrot.slane %v2723, 6
    %v2925 = vsel %vm2793, %v2924, %v2923
    %v2926 = vrot.slane %v2724, 5
    %v2927 = vsel %vm2796, %v2926, %v2925
    %v2928 = vrot.slane %v2725, 4
    %v2929 = vsel %vm2799, %v2928, %v2927
    %v2930 = vrot.slane %v2726, 3
    %v2931 = vsel %vm2802, %v2930, %v2929
    %v2932 = vrot.slane %v2727, 2
    %v2933 = vrot.slane %v2728, 1
    %v2934 = vsel %vm2784, %v2933, %v2932
    %v2935 = vsel %vm2787, %v2729, %v2934
    %v2936 = vrot.slane %v2730, 7
    %v2937 = vsel %vm2790, %v2936, %v2935
    %v2938 = vrot.slane %v2731, 6
    %v2939 = vsel %vm2793, %v2938, %v2937
    %v2940 = vrot.slane %v2732, 5
    %v2941 = vsel %vm2796, %v2940, %v2939
    %v2942 = vrot.slane %v2733, 4
    %v2943 = vsel %vm2799, %v2942, %v2941
    %v2944 = vrot.slane %v2734, 3
    %v2945 = vsel %vm2802, %v2944, %v2943
    %v2946 = vrot.slane %v2735, 2
    %v2947 = vrot.slane %v2736, 1
    %v2948 = vsel %vm2784, %v2947, %v2946
    %v2949 = vsel %vm2787, %v2737, %v2948
    %v2950 = vrot.slane %v2738, 7
    %v2951 = vsel %vm2790, %v2950, %v2949
    %v2952 = vrot.slane %v2739, 6
    %v2953 = vsel %vm2793, %v2952, %v2951
    %v2954 = vrot.slane %v2740, 5
    %v2955 = vsel %vm2796, %v2954, %v2953
    %v2956 = vrot.slane %v2741, 4
    %v2957 = vsel %vm2799, %v2956, %v2955
    %v2958 = vrot.slane %v2742, 3
    %v2959 = vsel %vm2802, %v2958, %v2957
    %v2960 = vrot.slane %v2743, 2
    %v2961 = vrot.slane %v2744, 1
    %v2962 = vsel %vm2784, %v2961, %v2960
    %v2963 = vsel %vm2787, %v2745, %v2962
    %v2964 = vrot.slane %v2746, 7
    %v2965 = vsel %vm2790, %v2964, %v2963
    %v2966 = vrot.slane %v2747, 6
    %v2967 = vsel %vm2793, %v2966, %v2965
    %v2968 = vrot.slane %v2748, 5
    %v2969 = vsel %vm2796, %v2968, %v2967
    %v2970 = vrot.slane %v2749, 4
    %v2971 = vsel %vm2799, %v2970, %v2969
    %v2972 = vrot.slane %v2750, 3
    %v2973 = vsel %vm2802, %v2972, %v2971
    %2974 = vrot.lane.b32.xlu0 %v2931, 64
    %v2975 = vpop.permute.xlu0 %2974
    %2976 = vrot.lane.b32.xlu0 %v2945, 64
    %v2977 = vpop.permute.xlu0 %2976
    %2978 = vrot.lane.b32.xlu0 %v2959, 64
    %v2979 = vpop.permute.xlu0 %2978
    %2980 = vrot.lane.b32.xlu0 %v2973, 64
    %v2981 = vpop.permute.xlu0 %2980
    %v2986 = vrot.slane %v2719, 3
    %v2987 = vrot.slane %v2720, 2
    %v2988 = vsel %vm2784, %v2987, %v2986
    %v2989 = vrot.slane %v2721, 1
    %v2990 = vsel %vm2787, %v2989, %v2988
    %v2991 = vsel %vm2790, %v2722, %v2990
    %v2992 = vrot.slane %v2723, 7
    %v2993 = vsel %vm2793, %v2992, %v2991
    %v2994 = vrot.slane %v2724, 6
    %v2995 = vsel %vm2796, %v2994, %v2993
    %v2996 = vrot.slane %v2725, 5
    %v2997 = vsel %vm2799, %v2996, %v2995
    %v2998 = vrot.slane %v2726, 4
    %v2999 = vsel %vm2802, %v2998, %v2997
    %v3000 = vrot.slane %v2727, 3
    %v3001 = vrot.slane %v2728, 2
    %v3002 = vsel %vm2784, %v3001, %v3000
    %v3003 = vrot.slane %v2729, 1
    %v3004 = vsel %vm2787, %v3003, %v3002
    %v3005 = vsel %vm2790, %v2730, %v3004
    %v3006 = vrot.slane %v2731, 7
    %v3007 = vsel %vm2793, %v3006, %v3005
    %v3008 = vrot.slane %v2732, 6
    %v3009 = vsel %vm2796, %v3008, %v3007
    %v3010 = vrot.slane %v2733, 5
    %v3011 = vsel %vm2799, %v3010, %v3009
    %v3012 = vrot.slane %v2734, 4
    %v3013 = vsel %vm2802, %v3012, %v3011
    %v3014 = vrot.slane %v2735, 3
    %v3015 = vrot.slane %v2736, 2
    %v3016 = vsel %vm2784, %v3015, %v3014
    %v3017 = vrot.slane %v2737, 1
    %v3018 = vsel %vm2787, %v3017, %v3016
    %v3019 = vsel %vm2790, %v2738, %v3018
    %v3020 = vrot.slane %v2739, 7
    %v3021 = vsel %vm2793, %v3020, %v3019
    %v3022 = vrot.slane %v2740, 6
    %v3023 = vsel %vm2796, %v3022, %v3021
    %v3024 = vrot.slane %v2741, 5
    %v3025 = vsel %vm2799, %v3024, %v3023
    %v3026 = vrot.slane %v2742, 4
    %v3027 = vsel %vm2802, %v3026, %v3025
    %v3028 = vrot.slane %v2743, 3
    %v3029 = vrot.slane %v2744, 2
    %v3030 = vsel %vm2784, %v3029, %v3028
    %v3031 = vrot.slane %v2745, 1
    %v3032 = vsel %vm2787, %v3031, %v3030
    %v3033 = vsel %vm2790, %v2746, %v3032
    %v3034 = vrot.slane %v2747, 7
    %v3035 = vsel %vm2793, %v3034, %v3033
    %v3036 = vrot.slane %v2748, 6
    %v3037 = vsel %vm2796, %v3036, %v3035
    %v3038 = vrot.slane %v2749, 5
    %v3039 = vsel %vm2799, %v3038, %v3037
    %v3040 = vrot.slane %v2750, 4
    %v3041 = vsel %vm2802, %v3040, %v3039
    %3042 = vrot.lane.b32.xlu0 %v2999, 96
    %v3043 = vpop.permute.xlu0 %3042
    %3044 = vrot.lane.b32.xlu0 %v3013, 96
    %v3045 = vpop.permute.xlu0 %3044
    %3046 = vrot.lane.b32.xlu0 %v3027, 96
    %v3047 = vpop.permute.xlu0 %3046
    %3048 = vrot.lane.b32.xlu0 %v3041, 96
    %v3049 = vpop.permute.xlu0 %3048
    %v3054 = vrot.slane %v2719, 4
    %v3055 = vrot.slane %v2720, 3
    %v3056 = vsel %vm2784, %v3055, %v3054
    %v3057 = vrot.slane %v2721, 2
    %v3058 = vsel %vm2787, %v3057, %v3056
    %v3059 = vrot.slane %v2722, 1
    %v3060 = vsel %vm2790, %v3059, %v3058
    %v3061 = vsel %vm2793, %v2723, %v3060
    %v3062 = vrot.slane %v2724, 7
    %v3063 = vsel %vm2796, %v3062, %v3061
    %v3064 = vrot.slane %v2725, 6
    %v3065 = vsel %vm2799, %v3064, %v3063
    %v3066 = vrot.slane %v2726, 5
    %v3067 = vsel %vm2802, %v3066, %v3065
    %v3068 = vrot.slane %v2727, 4
    %v3069 = vrot.slane %v2728, 3
    %v3070 = vsel %vm2784, %v3069, %v3068
    %v3071 = vrot.slane %v2729, 2
    %v3072 = vsel %vm2787, %v3071, %v3070
    %v3073 = vrot.slane %v2730, 1
    %v3074 = vsel %vm2790, %v3073, %v3072
    %v3075 = vsel %vm2793, %v2731, %v3074
    %v3076 = vrot.slane %v2732, 7
    %v3077 = vsel %vm2796, %v3076, %v3075
    %v3078 = vrot.slane %v2733, 6
    %v3079 = vsel %vm2799, %v3078, %v3077
    %v3080 = vrot.slane %v2734, 5
    %v3081 = vsel %vm2802, %v3080, %v3079
    %v3082 = vrot.slane %v2735, 4
    %v3083 = vrot.slane %v2736, 3
    %v3084 = vsel %vm2784, %v3083, %v3082
    %v3085 = vrot.slane %v2737, 2
    %v3086 = vsel %vm2787, %v3085, %v3084
    %v3087 = vrot.slane %v2738, 1
    %v3088 = vsel %vm2790, %v3087, %v3086
    %v3089 = vsel %vm2793, %v2739, %v3088
    %v3090 = vrot.slane %v2740, 7
    %v3091 = vsel %vm2796, %v3090, %v3089
    %v3092 = vrot.slane %v2741, 6
    %v3093 = vsel %vm2799, %v3092, %v3091
    %v3094 = vrot.slane %v2742, 5
    %v3095 = vsel %vm2802, %v3094, %v3093
    %v3096 = vrot.slane %v2743, 4
    %v3097 = vrot.slane %v2744, 3
    %v3098 = vsel %vm2784, %v3097, %v3096
    %v3099 = vrot.slane %v2745, 2
    %v3100 = vsel %vm2787, %v3099, %v3098
    %v3101 = vrot.slane %v2746, 1
    %v3102 = vsel %vm2790, %v3101, %v3100
    %v3103 = vsel %vm2793, %v2747, %v3102
    %v3104 = vrot.slane %v2748, 7
    %v3105 = vsel %vm2796, %v3104, %v3103
    %v3106 = vrot.slane %v2749, 6
    %v3107 = vsel %vm2799, %v3106, %v3105
    %v3108 = vrot.slane %v2750, 5
    %v3109 = vsel %vm2802, %v3108, %v3107
    %v3114 = vrot.slane %v2719, 5
    %v3115 = vrot.slane %v2720, 4
    %v3116 = vsel %vm2784, %v3115, %v3114
    %v3117 = vrot.slane %v2721, 3
    %v3118 = vsel %vm2787, %v3117, %v3116
    %v3119 = vrot.slane %v2722, 2
    %v3120 = vsel %vm2790, %v3119, %v3118
    %v3121 = vrot.slane %v2723, 1
    %v3122 = vsel %vm2793, %v3121, %v3120
    %v3123 = vsel %vm2796, %v2724, %v3122
    %v3124 = vrot.slane %v2725, 7
    %v3125 = vsel %vm2799, %v3124, %v3123
    %v3126 = vrot.slane %v2726, 6
    %v3127 = vsel %vm2802, %v3126, %v3125
    %v3128 = vrot.slane %v2727, 5
    %v3129 = vrot.slane %v2728, 4
    %v3130 = vsel %vm2784, %v3129, %v3128
    %v3131 = vrot.slane %v2729, 3
    %v3132 = vsel %vm2787, %v3131, %v3130
    %v3133 = vrot.slane %v2730, 2
    %v3134 = vsel %vm2790, %v3133, %v3132
    %v3135 = vrot.slane %v2731, 1
    %v3136 = vsel %vm2793, %v3135, %v3134
    %v3137 = vsel %vm2796, %v2732, %v3136
    %v3138 = vrot.slane %v2733, 7
    %v3139 = vsel %vm2799, %v3138, %v3137
    %v3140 = vrot.slane %v2734, 6
    %v3141 = vsel %vm2802, %v3140, %v3139
    %v3142 = vrot.slane %v2735, 5
    %v3143 = vrot.slane %v2736, 4
    %v3144 = vsel %vm2784, %v3143, %v3142
    %v3145 = vrot.slane %v2737, 3
    %v3146 = vsel %vm2787, %v3145, %v3144
    %v3147 = vrot.slane %v2738, 2
    %v3148 = vsel %vm2790, %v3147, %v3146
    %v3149 = vrot.slane %v2739, 1
    %v3150 = vsel %vm2793, %v3149, %v3148
    %v3151 = vsel %vm2796, %v2740, %v3150
    %v3152 = vrot.slane %v2741, 7
    %v3153 = vsel %vm2799, %v3152, %v3151
    %v3154 = vrot.slane %v2742, 6
    %v3155 = vsel %vm2802, %v3154, %v3153
    %v3156 = vrot.slane %v2743, 5
    %v3157 = vrot.slane %v2744, 4
    %v3158 = vsel %vm2784, %v3157, %v3156
    %v3159 = vrot.slane %v2745, 3
    %v3160 = vsel %vm2787, %v3159, %v3158
    %v3161 = vrot.slane %v2746, 2
    %v3162 = vsel %vm2790, %v3161, %v3160
    %v3163 = vrot.slane %v2747, 1
    %v3164 = vsel %vm2793, %v3163, %v3162
    %v3165 = vsel %vm2796, %v2748, %v3164
    %v3166 = vrot.slane %v2749, 7
    %v3167 = vsel %vm2799, %v3166, %v3165
    %v3168 = vrot.slane %v2750, 6
    %v3169 = vsel %vm2802, %v3168, %v3167
    %3170 = vrot.lane.b32.xlu0 %v3127, 32
    %v3171 = vpop.permute.xlu0 %3170
    %3172 = vrot.lane.b32.xlu0 %v3141, 32
    %v3173 = vpop.permute.xlu0 %3172
    %3174 = vrot.lane.b32.xlu0 %v3155, 32
    %v3175 = vpop.permute.xlu0 %3174
    %3176 = vrot.lane.b32.xlu0 %v3169, 32
    %v3177 = vpop.permute.xlu0 %3176
    %v3182 = vrot.slane %v2719, 6
    %v3183 = vrot.slane %v2720, 5
    %v3184 = vsel %vm2784, %v3183, %v3182
    %v3185 = vrot.slane %v2721, 4
    %v3186 = vsel %vm2787, %v3185, %v3184
    %v3187 = vrot.slane %v2722, 3
    %v3188 = vsel %vm2790, %v3187, %v3186
    %v3189 = vrot.slane %v2723, 2
    %v3190 = vsel %vm2793, %v3189, %v3188
    %v3191 = vrot.slane %v2724, 1
    %v3192 = vsel %vm2796, %v3191, %v3190
    %v3193 = vsel %vm2799, %v2725, %v3192
    %v3194 = vrot.slane %v2726, 7
    %v3195 = vsel %vm2802, %v3194, %v3193
    %v3196 = vrot.slane %v2727, 6
    %v3197 = vrot.slane %v2728, 5
    %v3198 = vsel %vm2784, %v3197, %v3196
    %v3199 = vrot.slane %v2729, 4
    %v3200 = vsel %vm2787, %v3199, %v3198
    %v3201 = vrot.slane %v2730, 3
    %v3202 = vsel %vm2790, %v3201, %v3200
    %v3203 = vrot.slane %v2731, 2
    %v3204 = vsel %vm2793, %v3203, %v3202
    %v3205 = vrot.slane %v2732, 1
    %v3206 = vsel %vm2796, %v3205, %v3204
    %v3207 = vsel %vm2799, %v2733, %v3206
    %v3208 = vrot.slane %v2734, 7
    %v3209 = vsel %vm2802, %v3208, %v3207
    %v3210 = vrot.slane %v2735, 6
    %v3211 = vrot.slane %v2736, 5
    %v3212 = vsel %vm2784, %v3211, %v3210
    %v3213 = vrot.slane %v2737, 4
    %v3214 = vsel %vm2787, %v3213, %v3212
    %v3215 = vrot.slane %v2738, 3
    %v3216 = vsel %vm2790, %v3215, %v3214
    %v3217 = vrot.slane %v2739, 2
    %v3218 = vsel %vm2793, %v3217, %v3216
    %v3219 = vrot.slane %v2740, 1
    %v3220 = vsel %vm2796, %v3219, %v3218
    %v3221 = vsel %vm2799, %v2741, %v3220
    %v3222 = vrot.slane %v2742, 7
    %v3223 = vsel %vm2802, %v3222, %v3221
    %v3224 = vrot.slane %v2743, 6
    %v3225 = vrot.slane %v2744, 5
    %v3226 = vsel %vm2784, %v3225, %v3224
    %v3227 = vrot.slane %v2745, 4
    %v3228 = vsel %vm2787, %v3227, %v3226
    %v3229 = vrot.slane %v2746, 3
    %v3230 = vsel %vm2790, %v3229, %v3228
    %v3231 = vrot.slane %v2747, 2
    %v3232 = vsel %vm2793, %v3231, %v3230
    %v3233 = vrot.slane %v2748, 1
    %v3234 = vsel %vm2796, %v3233, %v3232
    %v3235 = vsel %vm2799, %v2749, %v3234
    %v3236 = vrot.slane %v2750, 7
    %v3237 = vsel %vm2802, %v3236, %v3235
    %3238 = vrot.lane.b32.xlu0 %v3195, 64
    %v3239 = vpop.permute.xlu0 %3238
    %3240 = vrot.lane.b32.xlu0 %v3209, 64
    %v3241 = vpop.permute.xlu0 %3240
    %3242 = vrot.lane.b32.xlu0 %v3223, 64
    %v3243 = vpop.permute.xlu0 %3242
    %3244 = vrot.lane.b32.xlu0 %v3237, 64
    %v3245 = vpop.permute.xlu0 %3244
    %v3250 = vrot.slane %v2719, 7
    %v3251 = vrot.slane %v2720, 6
    %v3252 = vsel %vm2784, %v3251, %v3250
    %v3253 = vrot.slane %v2721, 5
    %v3254 = vsel %vm2787, %v3253, %v3252
    %v3255 = vrot.slane %v2722, 4
    %v3256 = vsel %vm2790, %v3255, %v3254
    %v3257 = vrot.slane %v2723, 3
    %v3258 = vsel %vm2793, %v3257, %v3256
    %v3259 = vrot.slane %v2724, 2
    %v3260 = vsel %vm2796, %v3259, %v3258
    %v3261 = vrot.slane %v2725, 1
    %v3262 = vsel %vm2799, %v3261, %v3260
    %v3263 = vsel %vm2802, %v2726, %v3262
    %v3264 = vrot.slane %v2727, 7
    %v3265 = vrot.slane %v2728, 6
    %v3266 = vsel %vm2784, %v3265, %v3264
    %v3267 = vrot.slane %v2729, 5
    %v3268 = vsel %vm2787, %v3267, %v3266
    %v3269 = vrot.slane %v2730, 4
    %v3270 = vsel %vm2790, %v3269, %v3268
    %v3271 = vrot.slane %v2731, 3
    %v3272 = vsel %vm2793, %v3271, %v3270
    %v3273 = vrot.slane %v2732, 2
    %v3274 = vsel %vm2796, %v3273, %v3272
    %v3275 = vrot.slane %v2733, 1
    %v3276 = vsel %vm2799, %v3275, %v3274
    %v3277 = vsel %vm2802, %v2734, %v3276
    %v3278 = vrot.slane %v2735, 7
    %v3279 = vrot.slane %v2736, 6
    %v3280 = vsel %vm2784, %v3279, %v3278
    %v3281 = vrot.slane %v2737, 5
    %v3282 = vsel %vm2787, %v3281, %v3280
    %v3283 = vrot.slane %v2738, 4
    %v3284 = vsel %vm2790, %v3283, %v3282
    %v3285 = vrot.slane %v2739, 3
    %v3286 = vsel %vm2793, %v3285, %v3284
    %v3287 = vrot.slane %v2740, 2
    %v3288 = vsel %vm2796, %v3287, %v3286
    %v3289 = vrot.slane %v2741, 1
    %v3290 = vsel %vm2799, %v3289, %v3288
    %v3291 = vsel %vm2802, %v2742, %v3290
    %v3292 = vrot.slane %v2743, 7
    %v3293 = vrot.slane %v2744, 6
    %v3294 = vsel %vm2784, %v3293, %v3292
    %v3295 = vrot.slane %v2745, 5
    %v3296 = vsel %vm2787, %v3295, %v3294
    %v3297 = vrot.slane %v2746, 4
    %v3298 = vsel %vm2790, %v3297, %v3296
    %v3299 = vrot.slane %v2747, 3
    %v3300 = vsel %vm2793, %v3299, %v3298
    %v3301 = vrot.slane %v2748, 2
    %v3302 = vsel %vm2796, %v3301, %v3300
    %v3303 = vrot.slane %v2749, 1
    %v3304 = vsel %vm2799, %v3303, %v3302
    %v3305 = vsel %vm2802, %v2750, %v3304
    %3306 = vrot.lane.b32.xlu0 %v3263, 96
    %v3307 = vpop.permute.xlu0 %3306
    %3308 = vrot.lane.b32.xlu0 %v3277, 96
    %v3309 = vpop.permute.xlu0 %3308
    %3310 = vrot.lane.b32.xlu0 %v3291, 96
    %v3311 = vpop.permute.xlu0 %3310
    %3312 = vrot.lane.b32.xlu0 %v3305, 96
    %v3313 = vpop.permute.xlu0 %3312
    %v3318 = vsel %vm1816, %v2803, %v2907
    %v3319 = vsel %vm1816, %v2817, %v2909
    %v3320 = vsel %vm1816, %v2831, %v2911
    %v3321 = vsel %vm1816, %v2845, %v2913
    %v3322 = vsel %vm1849, %v3318, %v2975
    %v3323 = vsel %vm1849, %v3319, %v2977
    %v3324 = vsel %vm1849, %v3320, %v2979
    %v3325 = vsel %vm1849, %v3321, %v2981
    %v3326 = vsel %vm1901, %v3322, %v3043
    %v3327 = vsel %vm1901, %v3323, %v3045
    %v3328 = vsel %vm1901, %v3324, %v3047
    %v3329 = vsel %vm1901, %v3325, %v3049
    %v3330 = vsel %vm1816, %v3067, %v3171
    %v3331 = vsel %vm1816, %v3081, %v3173
    %v3332 = vsel %vm1816, %v3095, %v3175
    %v3333 = vsel %vm1816, %v3109, %v3177
    %v3334 = vsel %vm1849, %v3330, %v3239
    %v3335 = vsel %vm1849, %v3331, %v3241
    %v3336 = vsel %vm1849, %v3332, %v3243
    %v3337 = vsel %vm1849, %v3333, %v3245
    %v3338 = vsel %vm1901, %v3334, %v3307
    %v3339 = vsel %vm1901, %v3335, %v3309
    %v3340 = vsel %vm1901, %v3336, %v3311
    %v3341 = vsel %vm1901, %v3337, %v3313
    %3342 = vst [vmem:[#allocation7] sm:$0xff] %v3326
    %3343 = vst [vmem:[#allocation7 + $0x8] sm:$0xff] %v3338
    %3344 = vst [vmem:[#allocation7 + $0x10] sm:$0xff] %v3327
    %3345 = vst [vmem:[#allocation7 + $0x18] sm:$0xff] %v3339
    %3346 = vst [vmem:[#allocation7 + $0x20] sm:$0xff] %v3328
    %3347 = vst [vmem:[#allocation7 + $0x28] sm:$0xff] %v3340
    %3348 = vst [vmem:[#allocation7 + $0x30] sm:$0xff] %v3329
    %3349 = vst [vmem:[#allocation7 + $0x38] sm:$0xff] %v3341
    // Predicated region
    $region38: #{tpu_custom_call.1} parent=1 // pred_check
      _
    $region39: #{tpu_custom_call.1} parent=1 // pred_check_branch
      %3351 = sbr.rel (0) target = $region41
    $region40: #{tpu_custom_call.1} parent=1 // pred_region
      %s3353 = ssub.s32 1024, 1024
      %3354 = vsyncadd [#allocation4], %s3353
      %s3355 = sshll.u32 [#allocation7], 4
      %s3356 = int_to_ptr.vmem [resolvable:$true] %s3355
      %3361 = dma.vmem_to_hbm [thread:$0]  %s3356, 1024, %s7, [#allocation4], 256, 256, 16
    $region41: #{tpu_custom_call.1} parent=1 // pred_fallthru
      _
    // Predicated region
    $region42: #{tpu_custom_call.1} parent=1 // pred_check
      _
    $region43: #{tpu_custom_call.1} parent=1 // pred_check_branch
      %3363 = sbr.rel (0) target = $region45
    $region44: #{tpu_custom_call.1} parent=1 // pred_region
      %3364 = dma.done [#allocation4], 1024
    $region45: #{tpu_custom_call.1} parent=1 // pred_fallthru
      _
    %3365 = vsyncpa [#allocation3], 1
    %3366 = vsyncpa [#allocation6], 1
    %3367 = vsyncpa [#allocation4], 1

</llo_original>
